<compile_context>
chip_gen: v5e
topology: v5e:2x2
jax: 0.10.0
libtpu: 0.0.40
codegen_flags: <defaults>
</compile_context>

<pallas_src>
import functools

import jax
import jax.numpy as jnp
from jax.experimental import pallas as pl
from jax.experimental.pallas import tpu as pltpu

_LANES = 128        # lane-dense last dim (exactly one vreg of lanes)
_RC = 16            # rows per in-kernel chunk (two f32 vregs per slab)
_TR_MAX = 512       # max rows per grid step


def _cdiv(a, b):
    return -(-a // b)


def _round_up(a, b):
    return _cdiv(a, b) * b


def _vmem_capacity_bytes():
    try:
        info = pltpu.get_tpu_info()
        cap = getattr(info, "vmem_capacity_bytes", None)
        if cap:
            return int(cap)
    except Exception:
        pass
    return 64 * 1024 * 1024


_VMEM_CAP = _vmem_capacity_bytes()
# Per-step input bytes (each input block is double-buffered by BlockSpec).
_VMEM_BUDGET = max(8 * 1024 * 1024, min(24 * 1024 * 1024, _VMEM_CAP // 4))
_VMEM_LIMIT = min(_VMEM_CAP * 3 // 4, 2 * _VMEM_BUDGET + 16 * 1024 * 1024)


# ----------------------------- Pallas kernel ------------------------------ #

def _fused_multiscale_kernel(*refs, scales, kmax, k_list, r_list, n_chunks, use_epe):
    """Fused multi-scale avg-pool + (masked smooth-L1 | L1) partial reduction.

    refs = (tph_ref, iph_ref_0, ..., iph_ref_{scales-1}, sum_ref[, cnt_ref])
      tph_ref   : (kmax*kmax, TR, 128)   target phases (phase p = di*kmax + dj)
      iph_ref_i : (r_i*r_i,   TR, 128)   prediction phases at scale i
      sum_ref   : (1, scales, RC, 128)   per-scale elementwise loss accumulators
      cnt_ref   : (1, scales, RC, 128)   per-scale valid-pixel counts (EPE only)
    """
    tph_ref = refs[0]
    iph_refs = refs[1:1 + scales]
    sum_ref = refs[1 + scales]
    cnt_ref = refs[2 + scales] if use_epe else None

    # First step along the (arbitrary) reduction axis: zero this core's accumulators.
    @pl.when(pl.program_id(1) == 0)
    def _init():
        sum_ref[...] = jnp.zeros_like(sum_ref)
        if use_epe:
            cnt_ref[...] = jnp.zeros_like(cnt_ref)

    k0 = k_list[0]
    inv = [1.0 / float(k * k) for k in k_list]

    def chunk_body(c, carry):
        # Carry the per-scale accumulators across chunks (no per-chunk VMEM RMW).
        sums = list(carry[0])
        cnts = list(carry[1])
        row = pl.multiple_of(c * _RC, _RC)

        def visit(level, a, b):
            # Returns the SUM of raw target phases covered by pooled-phase (a, b) of
            # `level` and accumulates that level's loss contribution for this group.
            if level == 0:
                s = None
                for di in range(a * k0, (a + 1) * k0):
                    for dj in range(b * k0, (b + 1) * k0):
                        t = tph_ref[di * kmax + dj, pl.ds(row, _RC), :].astype(jnp.float32)
                        s = t if s is None else s + t
            else:
                # Hierarchical reuse: scale-i group = 2x2 sum of scale-(i-1) groups.
                s = None
                for aa in (2 * a, 2 * a + 1):
                    for bb in (2 * b, 2 * b + 1):
                        sub = visit(level - 1, aa, bb)
                        s = sub if s is None else s + sub

            pooled = s * inv[level] if k_list[level] > 1 else s
            r = r_list[level]
            ip = iph_refs[level][a * r + b, pl.ds(row, _RC), :].astype(jnp.float32)
            d = ip - pooled
            ad = jnp.abs(d)
            if use_epe:
                cv = (pooled < 192.0).astype(jnp.float32)
                q = jnp.minimum(ad, 1.0)                 # branch-free smooth-L1
                sums[level] = sums[level] + (q * (ad - 0.5 * q)) * cv
                cnts[level] = cnts[level] + cv
            else:
                sums[level] = sums[level] + ad           # L1; divisor is static outside
            return s

        visit(scales - 1, 0, 0)
        return tuple(sums), tuple(cnts)

    zero = jnp.zeros((_RC, _LANES), jnp.float32)
    init = (tuple(zero for _ in range(scales)),
            tuple(zero for _ in range(scales)) if use_epe else ())
    sums, cnts = jax.lax.fori_loop(0, n_chunks, chunk_body, init)

    # One read-modify-write per scale per GRID STEP (pure VPU adds; no cross-lane reduce).
    for i in range(scales):
        sum_ref[0, i] = sum_ref[0, i] + sums[i]
        if use_epe:
            cnt_ref[0, i] = cnt_ref[0, i] + cnts[i]


# ------------------------------- glue (JAX) -------------------------------- #

def _phase_decompose_flat(x_nchw, k):
    """(N,C,H,W) -> (k*k, N*C*(H//k)*(W//k)); phase p=di*k+dj holds x[:, :, di::k, dj::k]."""
    N, C, H, W = x_nchw.shape
    h, w = H // k, W // k
    t = x_nchw.reshape(N * C, h, k, w, k)
    t = jnp.transpose(t, (2, 4, 0, 1, 3))            # (k, k, B, h, w)
    return t.reshape(k * k, N * C * h * w)


def _pad_to_rows(flat_phases, rows, pad_value):
    kk, m = flat_phases.shape
    total = rows * _LANES
    if total != m:
        flat_phases = jnp.pad(flat_phases, ((0, 0), (0, total - m)),
                              constant_values=pad_value)
    return flat_phases.reshape(kk, rows, _LANES)


def _row_layout(m, slabs):
    """Choose (tile_rows, tiles, nchunk) for m flattened elements and `slabs` phase planes."""
    rows = max(1, _cdiv(m, _LANES))
    # Cap per-step VMEM footprint: slabs * tr * 128 * 4 B, double-buffered.
    cap = max(_RC, (_VMEM_BUDGET // (2 * slabs * _LANES * 4)) // _RC * _RC)
    tr_max = min(_TR_MAX, cap)
    tiles = _cdiv(rows, tr_max)
    if tiles == 1 and rows >= 2 * _RC:
        tiles = 2                       # guarantee a 2-way parallel axis (v7x megacore)
    tr = _round_up(_cdiv(rows, tiles), _RC)
    tiles = _cdiv(rows, tr)
    nchunk = 2 if tiles >= 2 else 1     # leading "parallel" axis
    tiles = _round_up(tiles, nchunk)
    return tr, tiles, nchunk


def _multiscale_loss_sums(inputs, target, *, downscale, use_epe, allow_fusion):
    """One fused pallas_call over all scales; returns per-scale (loss_sum, valid_count)."""
    scales = len(inputs)
    N, C, H, W = target.shape
    k_list = [downscale * (2 ** i) for i in range(scales)]
    kmax = k_list[-1]
    # TODO(synk): AvgPool2d silently floors non-divisible spatial dims; not supported here.
    assert H % kmax == 0 and W % kmax == 0, "H, W must be divisible by downscale * 2**(scales-1)"
    r_list = [kmax // k for k in k_list]
    h, w = H // kmax, W // kmax
    m = N * C * h * w

    slabs = kmax * kmax + sum(r * r for r in r_list)
    tr, tiles, nchunk = _row_layout(m, slabs)
    rows = tiles * tr
    tpc = tiles // nchunk

    # Padding: for EPE the pad value >= 192 so padded positions are masked out of both the
    # loss sum and the count; for plain L1 both sides pad with 0 so |d| = 0 at padding.
    pad_t = 1.0e9 if use_epe else 0.0
    tph = _pad_to_rows(_phase_decompose_flat(target, kmax), rows, pad_t)
    iphs = [_pad_to_rows(_phase_decompose_flat(inp, r_list[i]), rows, 0.0)
            for i, inp in enumerate(inputs)]

    kernel = functools.partial(
        _fused_multiscale_kernel,
        scales=scales, kmax=kmax, k_list=tuple(k_list), r_list=tuple(r_list),
        n_chunks=tr // _RC, use_epe=use_epe)

    in_specs = [pl.BlockSpec((kmax * kmax, tr, _LANES), lambda p, g: (0, p * tpc + g, 0))]
    in_specs += [pl.BlockSpec((r * r, tr, _LANES), lambda p, g: (0, p * tpc + g, 0))
                 for r in r_list]
    n_out = 2 if use_epe else 1
    out_specs = [pl.BlockSpec((1, scales, _RC, _LANES), lambda p, g: (p, 0, 0, 0))] * n_out
    out_shape = [jax.ShapeDtypeStruct((nchunk, scales, _RC, _LANES), jnp.float32)] * n_out

    params = dict(dimension_semantics=("parallel", "arbitrary"),
                  vmem_limit_bytes=_VMEM_LIMIT)
    if allow_fusion:
        # Let XLA fuse the phase-decompose / pad producers into the operand read.
        params["allow_input_fusion"] = [True] * (1 + scales)

    outs = pl.pallas_call(
        kernel,
        grid=(nchunk, tpc),
        in_specs=in_specs,
        out_specs=out_specs,
        out_shape=out_shape,
        compiler_params=pltpu.CompilerParams(**params),
    )(tph, *iphs)

    # Tiny final cross-lane reduce done once in JAX (dense, unmasked (RC,128) output blocks).
    s = jnp.sum(outs[0], axis=(0, 2, 3))                       # (scales,)
    c = jnp.sum(outs[1], axis=(0, 2, 3)) if use_epe else None  # (scales,)
    return s, c


_loss_sums_jit = jax.jit(_multiscale_loss_sums,
                         static_argnames=("downscale", "use_epe", "allow_fusion"))


def _run_sums(inputs, target, *, downscale, use_epe):
    try:
        out = _loss_sums_jit(inputs, target, downscale=downscale,
                             use_epe=use_epe, allow_fusion=True)
        return jax.block_until_ready(out)
    except Exception:
        # TODO(synk): allow_input_fusion is a best-effort HBM-traffic optimization; fall back
        # cleanly if this XLA/Mosaic build rejects fusing the phase-decompose producers.
        out = _loss_sums_jit(inputs, target, downscale=downscale,
                             use_epe=use_epe, allow_fusion=False)
        return jax.block_until_ready(out)


class MultiScaleLossPallas:
    """JAX/Pallas port of MultiScaleLoss (downsample=True, mask=False, loss='L1')."""

    def __init__(self, scales, weights=None, downscale=1):
        self.scales = scales
        self.downscale = downscale  # undefined in the PyTorch reference; assumed 1
        self.weights = (jnp.ones((scales,), jnp.float32) if weights is None
                        else jnp.asarray(weights, jnp.float32))
        assert self.weights.shape[0] == scales
        # TODO(synk): downsample=False (bilinear nn.Upsample) branch not implemented.
        # TODO(synk): loss='MSE'/'SmoothL1' strings for the single-tensor branch not implemented.

    def __call__(self, inputs, target):
        if isinstance(inputs, (tuple, list)):
            s, c = _run_sums(list(inputs), target,
                             downscale=self.downscale, use_epe=True)
            # If some scale has no valid (<192) pixel, c==0 yields NaN, matching PyTorch.
            return jnp.sum(self.weights * (s / c))
        # single-tensor path: nn.L1Loss(input, AvgPool(downscale)(target)) — mean over ALL
        # elements, so the divisor is a compile-time constant (never computed in-kernel).
        N, C, H, W = target.shape
        k = self.downscale
        s, _ = _run_sums([inputs], target,
                         downscale=self.downscale, use_epe=False)
        return s[0] / jnp.float32(N * C * (H // k) * (W // k))


# -------------------------- pure-JAX reference ----------------------------- #

def _reference_multiscale(inputs, target, weights, downscale):
    out = jnp.float32(0.0)
    N, C, H, W = target.shape
    for i, inp in enumerate(inputs):
        k = downscale * (2 ** i)
        pooled = target.reshape(N, C, H // k, k, W // k, k).mean(axis=(3, 5))
        valid = pooled < 192.0
        d = inp - pooled
        ad = jnp.abs(d)
        sl1 = jnp.where(ad < 1.0, 0.5 * d * d, ad - 0.5)
        out = out + weights[i] * (jnp.sum(jnp.where(valid, sl1, 0.0)) / jnp.sum(valid))
    return out


# ---------------------------------- main ----------------------------------- #

if __name__ == "__main__":
    key = jax.random.PRNGKey(0)
    N, C, H, W = 2, 4, 16, 16
    scales, downscale = 3, 1

    k_t, k0, k1, k2, k3 = jax.random.split(key, 5)
    # target in [0, 250): some values exceed the 192 validity threshold.
    target = jax.random.uniform(k_t, (N, C, H, W), jnp.float32, 0.0, 250.0)
    inputs = [
        jax.random.uniform(k0, (N, C, H, W), jnp.float32, 0.0, 200.0),
        jax.random.uniform(k1, (N, C, H // 2, W // 2), jnp.float32, 0.0, 200.0),
        jax.random.uniform(k2, (N, C, H // 4, W // 4), jnp.float32, 0.0, 200.0),
    ]

    loss_mod = MultiScaleLossPallas(scales=scales, weights=None, downscale=downscale)

    # multi-scale (list) path
    out = jax.block_until_ready(loss_mod(inputs, target))
    ref = _reference_multiscale(inputs, target, loss_mod.weights, downscale)
    assert jnp.allclose(out, ref, rtol=1e-5, atol=1e-5), (out, ref)

    # single-tensor path (L1Loss vs AvgPool(1) == identity)
    single_in = jax.random.uniform(k3, (N, C, H, W), jnp.float32, 0.0, 200.0)
    out2 = jax.block_until_ready(loss_mod(single_in, target))
    ref2 = jnp.mean(jnp.abs(single_in - target))
    assert jnp.allclose(out2, ref2, rtol=1e-5, atol=1e-5), (out2, ref2)

    print("KERNEL_OK")
</pallas_src>

<mosaic_0001>
module attributes {stable_mosaic.version = 11 : i64} {
  func.func @_fused_multiscale_kernel(%arg0: i32, %arg1: i32, %arg2: memref<16x16x128xf32, #tpu.memory_space<vmem>>, %arg3: memref<16x16x128xf32, #tpu.memory_space<vmem>>, %arg4: memref<4x16x128xf32, #tpu.memory_space<vmem>>, %arg5: memref<1x16x128xf32, #tpu.memory_space<vmem>>, %arg6: memref<1x3x16x128xf32, #tpu.memory_space<vmem>>, %arg7: memref<1x3x16x128xf32, #tpu.memory_space<vmem>>) attributes {dimension_semantics = [#tpu.dimension_semantics<parallel>, #tpu.dimension_semantics<arbitrary>], iteration_bounds = array<i64: 1, 1>, scalar_prefetch = 0 : i64, scratch_operands = 0 : i64, tpu.core_type = #tpu.core_type<tc>, window_params = [{transform_indices = @transform_0, window_bounds = array<i64: 16, 16, 128>}, {transform_indices = @transform_1, window_bounds = array<i64: 16, 16, 128>}, {transform_indices = @transform_2, window_bounds = array<i64: 4, 16, 128>}, {transform_indices = @transform_3, window_bounds = array<i64: 1, 16, 128>}, {transform_indices = @transform_4, window_bounds = array<i64: 1, 3, 16, 128>}, {transform_indices = @transform_5, window_bounds = array<i64: 1, 3, 16, 128>}]} {
    %c0_i32 = arith.constant 0 : i32
    %0 = arith.cmpi eq, %arg1, %c0_i32 : i32
    %1 = arith.extui %0 : i1 to i32
    %c0_i32_0 = arith.constant 0 : i32
    %2 = arith.cmpi ne, %1, %c0_i32_0 : i32
    scf.if %2 {
      %cst_176 = arith.constant 0.000000e+00 : f32
      %493 = vector.broadcast %cst_176 : f32 to vector<1x3x16x128xf32>
      %c0_177 = arith.constant 0 : index
      %c0_178 = arith.constant 0 : index
      %c0_179 = arith.constant 0 : index
      %c0_180 = arith.constant 0 : index
      %494 = vector.load %arg6[%c0_177, %c0_178, %c0_179, %c0_180] : memref<1x3x16x128xf32, #tpu.memory_space<vmem>>, vector<1x3x16x128xf32>
      tpu.vector_store %arg6[%c0_177, %c0_178, %c0_179, %c0_180], %493 {strides = array<i32>} : memref<1x3x16x128xf32, #tpu.memory_space<vmem>>, vector<1x3x16x128xf32>,
      %cst_181 = arith.constant 0.000000e+00 : f32
      %495 = vector.broadcast %cst_181 : f32 to vector<1x3x16x128xf32>
      %c0_182 = arith.constant 0 : index
      %c0_183 = arith.constant 0 : index
      %c0_184 = arith.constant 0 : index
      %c0_185 = arith.constant 0 : index
      %496 = vector.load %arg7[%c0_182, %c0_183, %c0_184, %c0_185] : memref<1x3x16x128xf32, #tpu.memory_space<vmem>>, vector<1x3x16x128xf32>
      tpu.vector_store %arg7[%c0_182, %c0_183, %c0_184, %c0_185], %495 {strides = array<i32>} : memref<1x3x16x128xf32, #tpu.memory_space<vmem>>, vector<1x3x16x128xf32>,
    } else {
    }
    %cst = arith.constant 0.000000e+00 : f32
    %3 = vector.broadcast %cst : f32 to vector<16x128xf32>
    %c0_i32_1 = arith.constant 0 : i32
    %c16_i32 = arith.constant 16 : i32
    %4 = arith.muli %c0_i32_1, %c16_i32 : i32
    %5 = tpu.assume_multiple %4, 16 : i32
    %c0 = arith.constant 0 : index
    %6 = arith.index_cast %5 : i32 to index
    %c0_2 = arith.constant 0 : index
    %7 = vector.load %arg2[%c0, %6, %c0_2] : memref<16x16x128xf32, #tpu.memory_space<vmem>>, vector<1x16x128xf32>
    %8 = vector.shape_cast %7 : vector<1x16x128xf32> to vector<16x128xf32>
    %c0_3 = arith.constant 0 : index
    %9 = arith.index_cast %5 : i32 to index
    %c0_4 = arith.constant 0 : index
    %10 = vector.load %arg3[%c0_3, %9, %c0_4] : memref<16x16x128xf32, #tpu.memory_space<vmem>>, vector<1x16x128xf32>
    %11 = vector.shape_cast %10 : vector<1x16x128xf32> to vector<16x128xf32>
    %12 = arith.subf %11, %8 : vector<16x128xf32>
    %13 = math.absf %12 : vector<16x128xf32>
    %cst_5 = arith.constant 1.920000e+02 : f32
    %14 = vector.broadcast %cst_5 : f32 to vector<16x128xf32>
    %15 = arith.cmpf olt, %8, %14 : vector<16x128xf32>
    %16 = arith.extui %15 : vector<16x128xi1> to vector<16x128xi32>
    %17 = arith.sitofp %16 : vector<16x128xi32> to vector<16x128xf32>
    %cst_6 = arith.constant 1.000000e+00 : f32
    %18 = vector.broadcast %cst_6 : f32 to vector<16x128xf32>
    %19 = arith.minimumf %13, %18 : vector<16x128xf32>
    %cst_7 = arith.constant 5.000000e-01 : f32
    %20 = vector.broadcast %cst_7 : f32 to vector<16x128xf32>
    %21 = arith.mulf %20, %19 : vector<16x128xf32>
    %22 = arith.subf %13, %21 : vector<16x128xf32>
    %23 = arith.mulf %19, %22 : vector<16x128xf32>
    %24 = arith.mulf %23, %17 : vector<16x128xf32>
    %25 = arith.addf %3, %24 : vector<16x128xf32>
    %26 = arith.addf %3, %17 : vector<16x128xf32>
    %c1 = arith.constant 1 : index
    %27 = arith.index_cast %5 : i32 to index
    %c0_8 = arith.constant 0 : index
    %28 = vector.load %arg2[%c1, %27, %c0_8] : memref<16x16x128xf32, #tpu.memory_space<vmem>>, vector<1x16x128xf32>
    %29 = vector.shape_cast %28 : vector<1x16x128xf32> to vector<16x128xf32>
    %c1_9 = arith.constant 1 : index
    %30 = arith.index_cast %5 : i32 to index
    %c0_10 = arith.constant 0 : index
    %31 = vector.load %arg3[%c1_9, %30, %c0_10] : memref<16x16x128xf32, #tpu.memory_space<vmem>>, vector<1x16x128xf32>
    %32 = vector.shape_cast %31 : vector<1x16x128xf32> to vector<16x128xf32>
    %33 = arith.subf %32, %29 : vector<16x128xf32>
    %34 = math.absf %33 : vector<16x128xf32>
    %cst_11 = arith.constant 1.920000e+02 : f32
    %35 = vector.broadcast %cst_11 : f32 to vector<16x128xf32>
    %36 = arith.cmpf olt, %29, %35 : vector<16x128xf32>
    %37 = arith.extui %36 : vector<16x128xi1> to vector<16x128xi32>
    %38 = arith.sitofp %37 : vector<16x128xi32> to vector<16x128xf32>
    %cst_12 = arith.constant 1.000000e+00 : f32
    %39 = vector.broadcast %cst_12 : f32 to vector<16x128xf32>
    %40 = arith.minimumf %34, %39 : vector<16x128xf32>
    %cst_13 = arith.constant 5.000000e-01 : f32
    %41 = vector.broadcast %cst_13 : f32 to vector<16x128xf32>
    %42 = arith.mulf %41, %40 : vector<16x128xf32>
    %43 = arith.subf %34, %42 : vector<16x128xf32>
    %44 = arith.mulf %40, %43 : vector<16x128xf32>
    %45 = arith.mulf %44, %38 : vector<16x128xf32>
    %46 = arith.addf %25, %45 : vector<16x128xf32>
    %47 = arith.addf %26, %38 : vector<16x128xf32>
    %48 = arith.addf %8, %29 : vector<16x128xf32>
    %c4 = arith.constant 4 : index
    %49 = arith.index_cast %5 : i32 to index
    %c0_14 = arith.constant 0 : index
    %50 = vector.load %arg2[%c4, %49, %c0_14] : memref<16x16x128xf32, #tpu.memory_space<vmem>>, vector<1x16x128xf32>
    %51 = vector.shape_cast %50 : vector<1x16x128xf32> to vector<16x128xf32>
    %c4_15 = arith.constant 4 : index
    %52 = arith.index_cast %5 : i32 to index
    %c0_16 = arith.constant 0 : index
    %53 = vector.load %arg3[%c4_15, %52, %c0_16] : memref<16x16x128xf32, #tpu.memory_space<vmem>>, vector<1x16x128xf32>
    %54 = vector.shape_cast %53 : vector<1x16x128xf32> to vector<16x128xf32>
    %55 = arith.subf %54, %51 : vector<16x128xf32>
    %56 = math.absf %55 : vector<16x128xf32>
    %cst_17 = arith.constant 1.920000e+02 : f32
    %57 = vector.broadcast %cst_17 : f32 to vector<16x128xf32>
    %58 = arith.cmpf olt, %51, %57 : vector<16x128xf32>
    %59 = arith.extui %58 : vector<16x128xi1> to vector<16x128xi32>
    %60 = arith.sitofp %59 : vector<16x128xi32> to vector<16x128xf32>
    %cst_18 = arith.constant 1.000000e+00 : f32
    %61 = vector.broadcast %cst_18 : f32 to vector<16x128xf32>
    %62 = arith.minimumf %56, %61 : vector<16x128xf32>
    %cst_19 = arith.constant 5.000000e-01 : f32
    %63 = vector.broadcast %cst_19 : f32 to vector<16x128xf32>
    %64 = arith.mulf %63, %62 : vector<16x128xf32>
    %65 = arith.subf %56, %64 : vector<16x128xf32>
    %66 = arith.mulf %62, %65 : vector<16x128xf32>
    %67 = arith.mulf %66, %60 : vector<16x128xf32>
    %68 = arith.addf %46, %67 : vector<16x128xf32>
    %69 = arith.addf %47, %60 : vector<16x128xf32>
    %70 = arith.addf %48, %51 : vector<16x128xf32>
    %c5 = arith.constant 5 : index
    %71 = arith.index_cast %5 : i32 to index
    %c0_20 = arith.constant 0 : index
    %72 = vector.load %arg2[%c5, %71, %c0_20] : memref<16x16x128xf32, #tpu.memory_space<vmem>>, vector<1x16x128xf32>
    %73 = vector.shape_cast %72 : vector<1x16x128xf32> to vector<16x128xf32>
    %c5_21 = arith.constant 5 : index
    %74 = arith.index_cast %5 : i32 to index
    %c0_22 = arith.constant 0 : index
    %75 = vector.load %arg3[%c5_21, %74, %c0_22] : memref<16x16x128xf32, #tpu.memory_space<vmem>>, vector<1x16x128xf32>
    %76 = vector.shape_cast %75 : vector<1x16x128xf32> to vector<16x128xf32>
    %77 = arith.subf %76, %73 : vector<16x128xf32>
    %78 = math.absf %77 : vector<16x128xf32>
    %cst_23 = arith.constant 1.920000e+02 : f32
    %79 = vector.broadcast %cst_23 : f32 to vector<16x128xf32>
    %80 = arith.cmpf olt, %73, %79 : vector<16x128xf32>
    %81 = arith.extui %80 : vector<16x128xi1> to vector<16x128xi32>
    %82 = arith.sitofp %81 : vector<16x128xi32> to vector<16x128xf32>
    %cst_24 = arith.constant 1.000000e+00 : f32
    %83 = vector.broadcast %cst_24 : f32 to vector<16x128xf32>
    %84 = arith.minimumf %78, %83 : vector<16x128xf32>
    %cst_25 = arith.constant 5.000000e-01 : f32
    %85 = vector.broadcast %cst_25 : f32 to vector<16x128xf32>
    %86 = arith.mulf %85, %84 : vector<16x128xf32>
    %87 = arith.subf %78, %86 : vector<16x128xf32>
    %88 = arith.mulf %84, %87 : vector<16x128xf32>
    %89 = arith.mulf %88, %82 : vector<16x128xf32>
    %90 = arith.addf %68, %89 : vector<16x128xf32>
    %91 = arith.addf %69, %82 : vector<16x128xf32>
    %92 = arith.addf %70, %73 : vector<16x128xf32>
    %cst_26 = arith.constant 2.500000e-01 : f32
    %93 = vector.broadcast %cst_26 : f32 to vector<16x128xf32>
    %94 = arith.mulf %92, %93 : vector<16x128xf32>
    %c0_27 = arith.constant 0 : index
    %95 = arith.index_cast %5 : i32 to index
    %c0_28 = arith.constant 0 : index
    %96 = vector.load %arg4[%c0_27, %95, %c0_28] : memref<4x16x128xf32, #tpu.memory_space<vmem>>, vector<1x16x128xf32>
    %97 = vector.shape_cast %96 : vector<1x16x128xf32> to vector<16x128xf32>
    %98 = arith.subf %97, %94 : vector<16x128xf32>
    %99 = math.absf %98 : vector<16x128xf32>
    %cst_29 = arith.constant 1.920000e+02 : f32
    %100 = vector.broadcast %cst_29 : f32 to vector<16x128xf32>
    %101 = arith.cmpf olt, %94, %100 : vector<16x128xf32>
    %102 = arith.extui %101 : vector<16x128xi1> to vector<16x128xi32>
    %103 = arith.sitofp %102 : vector<16x128xi32> to vector<16x128xf32>
    %cst_30 = arith.constant 1.000000e+00 : f32
    %104 = vector.broadcast %cst_30 : f32 to vector<16x128xf32>
    %105 = arith.minimumf %99, %104 : vector<16x128xf32>
    %cst_31 = arith.constant 5.000000e-01 : f32
    %106 = vector.broadcast %cst_31 : f32 to vector<16x128xf32>
    %107 = arith.mulf %106, %105 : vector<16x128xf32>
    %108 = arith.subf %99, %107 : vector<16x128xf32>
    %109 = arith.mulf %105, %108 : vector<16x128xf32>
    %110 = arith.mulf %109, %103 : vector<16x128xf32>
    %111 = arith.addf %3, %110 : vector<16x128xf32>
    %112 = arith.addf %3, %103 : vector<16x128xf32>
    %c2 = arith.constant 2 : index
    %113 = arith.index_cast %5 : i32 to index
    %c0_32 = arith.constant 0 : index
    %114 = vector.load %arg2[%c2, %113, %c0_32] : memref<16x16x128xf32, #tpu.memory_space<vmem>>, vector<1x16x128xf32>
    %115 = vector.shape_cast %114 : vector<1x16x128xf32> to vector<16x128xf32>
    %c2_33 = arith.constant 2 : index
    %116 = arith.index_cast %5 : i32 to index
    %c0_34 = arith.constant 0 : index
    %117 = vector.load %arg3[%c2_33, %116, %c0_34] : memref<16x16x128xf32, #tpu.memory_space<vmem>>, vector<1x16x128xf32>
    %118 = vector.shape_cast %117 : vector<1x16x128xf32> to vector<16x128xf32>
    %119 = arith.subf %118, %115 : vector<16x128xf32>
    %120 = math.absf %119 : vector<16x128xf32>
    %cst_35 = arith.constant 1.920000e+02 : f32
    %121 = vector.broadcast %cst_35 : f32 to vector<16x128xf32>
    %122 = arith.cmpf olt, %115, %121 : vector<16x128xf32>
    %123 = arith.extui %122 : vector<16x128xi1> to vector<16x128xi32>
    %124 = arith.sitofp %123 : vector<16x128xi32> to vector<16x128xf32>
    %cst_36 = arith.constant 1.000000e+00 : f32
    %125 = vector.broadcast %cst_36 : f32 to vector<16x128xf32>
    %126 = arith.minimumf %120, %125 : vector<16x128xf32>
    %cst_37 = arith.constant 5.000000e-01 : f32
    %127 = vector.broadcast %cst_37 : f32 to vector<16x128xf32>
    %128 = arith.mulf %127, %126 : vector<16x128xf32>
    %129 = arith.subf %120, %128 : vector<16x128xf32>
    %130 = arith.mulf %126, %129 : vector<16x128xf32>
    %131 = arith.mulf %130, %124 : vector<16x128xf32>
    %132 = arith.addf %90, %131 : vector<16x128xf32>
    %133 = arith.addf %91, %124 : vector<16x128xf32>
    %c3 = arith.constant 3 : index
    %134 = arith.index_cast %5 : i32 to index
    %c0_38 = arith.constant 0 : index
    %135 = vector.load %arg2[%c3, %134, %c0_38] : memref<16x16x128xf32, #tpu.memory_space<vmem>>, vector<1x16x128xf32>
    %136 = vector.shape_cast %135 : vector<1x16x128xf32> to vector<16x128xf32>
    %c3_39 = arith.constant 3 : index
    %137 = arith.index_cast %5 : i32 to index
    %c0_40 = arith.constant 0 : index
    %138 = vector.load %arg3[%c3_39, %137, %c0_40] : memref<16x16x128xf32, #tpu.memory_space<vmem>>, vector<1x16x128xf32>
    %139 = vector.shape_cast %138 : vector<1x16x128xf32> to vector<16x128xf32>
    %140 = arith.subf %139, %136 : vector<16x128xf32>
    %141 = math.absf %140 : vector<16x128xf32>
    %cst_41 = arith.constant 1.920000e+02 : f32
    %142 = vector.broadcast %cst_41 : f32 to vector<16x128xf32>
    %143 = arith.cmpf olt, %136, %142 : vector<16x128xf32>
    %144 = arith.extui %143 : vector<16x128xi1> to vector<16x128xi32>
    %145 = arith.sitofp %144 : vector<16x128xi32> to vector<16x128xf32>
    %cst_42 = arith.constant 1.000000e+00 : f32
    %146 = vector.broadcast %cst_42 : f32 to vector<16x128xf32>
    %147 = arith.minimumf %141, %146 : vector<16x128xf32>
    %cst_43 = arith.constant 5.000000e-01 : f32
    %148 = vector.broadcast %cst_43 : f32 to vector<16x128xf32>
    %149 = arith.mulf %148, %147 : vector<16x128xf32>
    %150 = arith.subf %141, %149 : vector<16x128xf32>
    %151 = arith.mulf %147, %150 : vector<16x128xf32>
    %152 = arith.mulf %151, %145 : vector<16x128xf32>
    %153 = arith.addf %132, %152 : vector<16x128xf32>
    %154 = arith.addf %133, %145 : vector<16x128xf32>
    %155 = arith.addf %115, %136 : vector<16x128xf32>
    %c6 = arith.constant 6 : index
    %156 = arith.index_cast %5 : i32 to index
    %c0_44 = arith.constant 0 : index
    %157 = vector.load %arg2[%c6, %156, %c0_44] : memref<16x16x128xf32, #tpu.memory_space<vmem>>, vector<1x16x128xf32>
    %158 = vector.shape_cast %157 : vector<1x16x128xf32> to vector<16x128xf32>
    %c6_45 = arith.constant 6 : index
    %159 = arith.index_cast %5 : i32 to index
    %c0_46 = arith.constant 0 : index
    %160 = vector.load %arg3[%c6_45, %159, %c0_46] : memref<16x16x128xf32, #tpu.memory_space<vmem>>, vector<1x16x128xf32>
    %161 = vector.shape_cast %160 : vector<1x16x128xf32> to vector<16x128xf32>
    %162 = arith.subf %161, %158 : vector<16x128xf32>
    %163 = math.absf %162 : vector<16x128xf32>
    %cst_47 = arith.constant 1.920000e+02 : f32
    %164 = vector.broadcast %cst_47 : f32 to vector<16x128xf32>
    %165 = arith.cmpf olt, %158, %164 : vector<16x128xf32>
    %166 = arith.extui %165 : vector<16x128xi1> to vector<16x128xi32>
    %167 = arith.sitofp %166 : vector<16x128xi32> to vector<16x128xf32>
    %cst_48 = arith.constant 1.000000e+00 : f32
    %168 = vector.broadcast %cst_48 : f32 to vector<16x128xf32>
    %169 = arith.minimumf %163, %168 : vector<16x128xf32>
    %cst_49 = arith.constant 5.000000e-01 : f32
    %170 = vector.broadcast %cst_49 : f32 to vector<16x128xf32>
    %171 = arith.mulf %170, %169 : vector<16x128xf32>
    %172 = arith.subf %163, %171 : vector<16x128xf32>
    %173 = arith.mulf %169, %172 : vector<16x128xf32>
    %174 = arith.mulf %173, %167 : vector<16x128xf32>
    %175 = arith.addf %153, %174 : vector<16x128xf32>
    %176 = arith.addf %154, %167 : vector<16x128xf32>
    %177 = arith.addf %155, %158 : vector<16x128xf32>
    %c7 = arith.constant 7 : index
    %178 = arith.index_cast %5 : i32 to index
    %c0_50 = arith.constant 0 : index
    %179 = vector.load %arg2[%c7, %178, %c0_50] : memref<16x16x128xf32, #tpu.memory_space<vmem>>, vector<1x16x128xf32>
    %180 = vector.shape_cast %179 : vector<1x16x128xf32> to vector<16x128xf32>
    %c7_51 = arith.constant 7 : index
    %181 = arith.index_cast %5 : i32 to index
    %c0_52 = arith.constant 0 : index
    %182 = vector.load %arg3[%c7_51, %181, %c0_52] : memref<16x16x128xf32, #tpu.memory_space<vmem>>, vector<1x16x128xf32>
    %183 = vector.shape_cast %182 : vector<1x16x128xf32> to vector<16x128xf32>
    %184 = arith.subf %183, %180 : vector<16x128xf32>
    %185 = math.absf %184 : vector<16x128xf32>
    %cst_53 = arith.constant 1.920000e+02 : f32
    %186 = vector.broadcast %cst_53 : f32 to vector<16x128xf32>
    %187 = arith.cmpf olt, %180, %186 : vector<16x128xf32>
    %188 = arith.extui %187 : vector<16x128xi1> to vector<16x128xi32>
    %189 = arith.sitofp %188 : vector<16x128xi32> to vector<16x128xf32>
    %cst_54 = arith.constant 1.000000e+00 : f32
    %190 = vector.broadcast %cst_54 : f32 to vector<16x128xf32>
    %191 = arith.minimumf %185, %190 : vector<16x128xf32>
    %cst_55 = arith.constant 5.000000e-01 : f32
    %192 = vector.broadcast %cst_55 : f32 to vector<16x128xf32>
    %193 = arith.mulf %192, %191 : vector<16x128xf32>
    %194 = arith.subf %185, %193 : vector<16x128xf32>
    %195 = arith.mulf %191, %194 : vector<16x128xf32>
    %196 = arith.mulf %195, %189 : vector<16x128xf32>
    %197 = arith.addf %175, %196 : vector<16x128xf32>
    %198 = arith.addf %176, %189 : vector<16x128xf32>
    %199 = arith.addf %177, %180 : vector<16x128xf32>
    %cst_56 = arith.constant 2.500000e-01 : f32
    %200 = vector.broadcast %cst_56 : f32 to vector<16x128xf32>
    %201 = arith.mulf %199, %200 : vector<16x128xf32>
    %c1_57 = arith.constant 1 : index
    %202 = arith.index_cast %5 : i32 to index
    %c0_58 = arith.constant 0 : index
    %203 = vector.load %arg4[%c1_57, %202, %c0_58] : memref<4x16x128xf32, #tpu.memory_space<vmem>>, vector<1x16x128xf32>
    %204 = vector.shape_cast %203 : vector<1x16x128xf32> to vector<16x128xf32>
    %205 = arith.subf %204, %201 : vector<16x128xf32>
    %206 = math.absf %205 : vector<16x128xf32>
    %cst_59 = arith.constant 1.920000e+02 : f32
    %207 = vector.broadcast %cst_59 : f32 to vector<16x128xf32>
    %208 = arith.cmpf olt, %201, %207 : vector<16x128xf32>
    %209 = arith.extui %208 : vector<16x128xi1> to vector<16x128xi32>
    %210 = arith.sitofp %209 : vector<16x128xi32> to vector<16x128xf32>
    %cst_60 = arith.constant 1.000000e+00 : f32
    %211 = vector.broadcast %cst_60 : f32 to vector<16x128xf32>
    %212 = arith.minimumf %206, %211 : vector<16x128xf32>
    %cst_61 = arith.constant 5.000000e-01 : f32
    %213 = vector.broadcast %cst_61 : f32 to vector<16x128xf32>
    %214 = arith.mulf %213, %212 : vector<16x128xf32>
    %215 = arith.subf %206, %214 : vector<16x128xf32>
    %216 = arith.mulf %212, %215 : vector<16x128xf32>
    %217 = arith.mulf %216, %210 : vector<16x128xf32>
    %218 = arith.addf %111, %217 : vector<16x128xf32>
    %219 = arith.addf %112, %210 : vector<16x128xf32>
    %220 = arith.addf %92, %199 : vector<16x128xf32>
    %c8 = arith.constant 8 : index
    %221 = arith.index_cast %5 : i32 to index
    %c0_62 = arith.constant 0 : index
    %222 = vector.load %arg2[%c8, %221, %c0_62] : memref<16x16x128xf32, #tpu.memory_space<vmem>>, vector<1x16x128xf32>
    %223 = vector.shape_cast %222 : vector<1x16x128xf32> to vector<16x128xf32>
    %c8_63 = arith.constant 8 : index
    %224 = arith.index_cast %5 : i32 to index
    %c0_64 = arith.constant 0 : index
    %225 = vector.load %arg3[%c8_63, %224, %c0_64] : memref<16x16x128xf32, #tpu.memory_space<vmem>>, vector<1x16x128xf32>
    %226 = vector.shape_cast %225 : vector<1x16x128xf32> to vector<16x128xf32>
    %227 = arith.subf %226, %223 : vector<16x128xf32>
    %228 = math.absf %227 : vector<16x128xf32>
    %cst_65 = arith.constant 1.920000e+02 : f32
    %229 = vector.broadcast %cst_65 : f32 to vector<16x128xf32>
    %230 = arith.cmpf olt, %223, %229 : vector<16x128xf32>
    %231 = arith.extui %230 : vector<16x128xi1> to vector<16x128xi32>
    %232 = arith.sitofp %231 : vector<16x128xi32> to vector<16x128xf32>
    %cst_66 = arith.constant 1.000000e+00 : f32
    %233 = vector.broadcast %cst_66 : f32 to vector<16x128xf32>
    %234 = arith.minimumf %228, %233 : vector<16x128xf32>
    %cst_67 = arith.constant 5.000000e-01 : f32
    %235 = vector.broadcast %cst_67 : f32 to vector<16x128xf32>
    %236 = arith.mulf %235, %234 : vector<16x128xf32>
    %237 = arith.subf %228, %236 : vector<16x128xf32>
    %238 = arith.mulf %234, %237 : vector<16x128xf32>
    %239 = arith.mulf %238, %232 : vector<16x128xf32>
    %240 = arith.addf %197, %239 : vector<16x128xf32>
    %241 = arith.addf %198, %232 : vector<16x128xf32>
    %c9 = arith.constant 9 : index
    %242 = arith.index_cast %5 : i32 to index
    %c0_68 = arith.constant 0 : index
    %243 = vector.load %arg2[%c9, %242, %c0_68] : memref<16x16x128xf32, #tpu.memory_space<vmem>>, vector<1x16x128xf32>
    %244 = vector.shape_cast %243 : vector<1x16x128xf32> to vector<16x128xf32>
    %c9_69 = arith.constant 9 : index
    %245 = arith.index_cast %5 : i32 to index
    %c0_70 = arith.constant 0 : index
    %246 = vector.load %arg3[%c9_69, %245, %c0_70] : memref<16x16x128xf32, #tpu.memory_space<vmem>>, vector<1x16x128xf32>
    %247 = vector.shape_cast %246 : vector<1x16x128xf32> to vector<16x128xf32>
    %248 = arith.subf %247, %244 : vector<16x128xf32>
    %249 = math.absf %248 : vector<16x128xf32>
    %cst_71 = arith.constant 1.920000e+02 : f32
    %250 = vector.broadcast %cst_71 : f32 to vector<16x128xf32>
    %251 = arith.cmpf olt, %244, %250 : vector<16x128xf32>
    %252 = arith.extui %251 : vector<16x128xi1> to vector<16x128xi32>
    %253 = arith.sitofp %252 : vector<16x128xi32> to vector<16x128xf32>
    %cst_72 = arith.constant 1.000000e+00 : f32
    %254 = vector.broadcast %cst_72 : f32 to vector<16x128xf32>
    %255 = arith.minimumf %249, %254 : vector<16x128xf32>
    %cst_73 = arith.constant 5.000000e-01 : f32
    %256 = vector.broadcast %cst_73 : f32 to vector<16x128xf32>
    %257 = arith.mulf %256, %255 : vector<16x128xf32>
    %258 = arith.subf %249, %257 : vector<16x128xf32>
    %259 = arith.mulf %255, %258 : vector<16x128xf32>
    %260 = arith.mulf %259, %253 : vector<16x128xf32>
    %261 = arith.addf %240, %260 : vector<16x128xf32>
    %262 = arith.addf %241, %253 : vector<16x128xf32>
    %263 = arith.addf %223, %244 : vector<16x128xf32>
    %c12 = arith.constant 12 : index
    %264 = arith.index_cast %5 : i32 to index
    %c0_74 = arith.constant 0 : index
    %265 = vector.load %arg2[%c12, %264, %c0_74] : memref<16x16x128xf32, #tpu.memory_space<vmem>>, vector<1x16x128xf32>
    %266 = vector.shape_cast %265 : vector<1x16x128xf32> to vector<16x128xf32>
    %c12_75 = arith.constant 12 : index
    %267 = arith.index_cast %5 : i32 to index
    %c0_76 = arith.constant 0 : index
    %268 = vector.load %arg3[%c12_75, %267, %c0_76] : memref<16x16x128xf32, #tpu.memory_space<vmem>>, vector<1x16x128xf32>
    %269 = vector.shape_cast %268 : vector<1x16x128xf32> to vector<16x128xf32>
    %270 = arith.subf %269, %266 : vector<16x128xf32>
    %271 = math.absf %270 : vector<16x128xf32>
    %cst_77 = arith.constant 1.920000e+02 : f32
    %272 = vector.broadcast %cst_77 : f32 to vector<16x128xf32>
    %273 = arith.cmpf olt, %266, %272 : vector<16x128xf32>
    %274 = arith.extui %273 : vector<16x128xi1> to vector<16x128xi32>
    %275 = arith.sitofp %274 : vector<16x128xi32> to vector<16x128xf32>
    %cst_78 = arith.constant 1.000000e+00 : f32
    %276 = vector.broadcast %cst_78 : f32 to vector<16x128xf32>
    %277 = arith.minimumf %271, %276 : vector<16x128xf32>
    %cst_79 = arith.constant 5.000000e-01 : f32
    %278 = vector.broadcast %cst_79 : f32 to vector<16x128xf32>
    %279 = arith.mulf %278, %277 : vector<16x128xf32>
    %280 = arith.subf %271, %279 : vector<16x128xf32>
    %281 = arith.mulf %277, %280 : vector<16x128xf32>
    %282 = arith.mulf %281, %275 : vector<16x128xf32>
    %283 = arith.addf %261, %282 : vector<16x128xf32>
    %284 = arith.addf %262, %275 : vector<16x128xf32>
    %285 = arith.addf %263, %266 : vector<16x128xf32>
    %c13 = arith.constant 13 : index
    %286 = arith.index_cast %5 : i32 to index
    %c0_80 = arith.constant 0 : index
    %287 = vector.load %arg2[%c13, %286, %c0_80] : memref<16x16x128xf32, #tpu.memory_space<vmem>>, vector<1x16x128xf32>
    %288 = vector.shape_cast %287 : vector<1x16x128xf32> to vector<16x128xf32>
    %c13_81 = arith.constant 13 : index
    %289 = arith.index_cast %5 : i32 to index
    %c0_82 = arith.constant 0 : index
    %290 = vector.load %arg3[%c13_81, %289, %c0_82] : memref<16x16x128xf32, #tpu.memory_space<vmem>>, vector<1x16x128xf32>
    %291 = vector.shape_cast %290 : vector<1x16x128xf32> to vector<16x128xf32>
    %292 = arith.subf %291, %288 : vector<16x128xf32>
    %293 = math.absf %292 : vector<16x128xf32>
    %cst_83 = arith.constant 1.920000e+02 : f32
    %294 = vector.broadcast %cst_83 : f32 to vector<16x128xf32>
    %295 = arith.cmpf olt, %288, %294 : vector<16x128xf32>
    %296 = arith.extui %295 : vector<16x128xi1> to vector<16x128xi32>
    %297 = arith.sitofp %296 : vector<16x128xi32> to vector<16x128xf32>
    %cst_84 = arith.constant 1.000000e+00 : f32
    %298 = vector.broadcast %cst_84 : f32 to vector<16x128xf32>
    %299 = arith.minimumf %293, %298 : vector<16x128xf32>
    %cst_85 = arith.constant 5.000000e-01 : f32
    %300 = vector.broadcast %cst_85 : f32 to vector<16x128xf32>
    %301 = arith.mulf %300, %299 : vector<16x128xf32>
    %302 = arith.subf %293, %301 : vector<16x128xf32>
    %303 = arith.mulf %299, %302 : vector<16x128xf32>
    %304 = arith.mulf %303, %297 : vector<16x128xf32>
    %305 = arith.addf %283, %304 : vector<16x128xf32>
    %306 = arith.addf %284, %297 : vector<16x128xf32>
    %307 = arith.addf %285, %288 : vector<16x128xf32>
    %cst_86 = arith.constant 2.500000e-01 : f32
    %308 = vector.broadcast %cst_86 : f32 to vector<16x128xf32>
    %309 = arith.mulf %307, %308 : vector<16x128xf32>
    %c2_87 = arith.constant 2 : index
    %310 = arith.index_cast %5 : i32 to index
    %c0_88 = arith.constant 0 : index
    %311 = vector.load %arg4[%c2_87, %310, %c0_88] : memref<4x16x128xf32, #tpu.memory_space<vmem>>, vector<1x16x128xf32>
    %312 = vector.shape_cast %311 : vector<1x16x128xf32> to vector<16x128xf32>
    %313 = arith.subf %312, %309 : vector<16x128xf32>
    %314 = math.absf %313 : vector<16x128xf32>
    %cst_89 = arith.constant 1.920000e+02 : f32
    %315 = vector.broadcast %cst_89 : f32 to vector<16x128xf32>
    %316 = arith.cmpf olt, %309, %315 : vector<16x128xf32>
    %317 = arith.extui %316 : vector<16x128xi1> to vector<16x128xi32>
    %318 = arith.sitofp %317 : vector<16x128xi32> to vector<16x128xf32>
    %cst_90 = arith.constant 1.000000e+00 : f32
    %319 = vector.broadcast %cst_90 : f32 to vector<16x128xf32>
    %320 = arith.minimumf %314, %319 : vector<16x128xf32>
    %cst_91 = arith.constant 5.000000e-01 : f32
    %321 = vector.broadcast %cst_91 : f32 to vector<16x128xf32>
    %322 = arith.mulf %321, %320 : vector<16x128xf32>
    %323 = arith.subf %314, %322 : vector<16x128xf32>
    %324 = arith.mulf %320, %323 : vector<16x128xf32>
    %325 = arith.mulf %324, %318 : vector<16x128xf32>
    %326 = arith.addf %218, %325 : vector<16x128xf32>
    %327 = arith.addf %219, %318 : vector<16x128xf32>
    %328 = arith.addf %220, %307 : vector<16x128xf32>
    %c10 = arith.constant 10 : index
    %329 = arith.index_cast %5 : i32 to index
    %c0_92 = arith.constant 0 : index
    %330 = vector.load %arg2[%c10, %329, %c0_92] : memref<16x16x128xf32, #tpu.memory_space<vmem>>, vector<1x16x128xf32>
    %331 = vector.shape_cast %330 : vector<1x16x128xf32> to vector<16x128xf32>
    %c10_93 = arith.constant 10 : index
    %332 = arith.index_cast %5 : i32 to index
    %c0_94 = arith.constant 0 : index
    %333 = vector.load %arg3[%c10_93, %332, %c0_94] : memref<16x16x128xf32, #tpu.memory_space<vmem>>, vector<1x16x128xf32>
    %334 = vector.shape_cast %333 : vector<1x16x128xf32> to vector<16x128xf32>
    %335 = arith.subf %334, %331 : vector<16x128xf32>
    %336 = math.absf %335 : vector<16x128xf32>
    %cst_95 = arith.constant 1.920000e+02 : f32
    %337 = vector.broadcast %cst_95 : f32 to vector<16x128xf32>
    %338 = arith.cmpf olt, %331, %337 : vector<16x128xf32>
    %339 = arith.extui %338 : vector<16x128xi1> to vector<16x128xi32>
    %340 = arith.sitofp %339 : vector<16x128xi32> to vector<16x128xf32>
    %cst_96 = arith.constant 1.000000e+00 : f32
    %341 = vector.broadcast %cst_96 : f32 to vector<16x128xf32>
    %342 = arith.minimumf %336, %341 : vector<16x128xf32>
    %cst_97 = arith.constant 5.000000e-01 : f32
    %343 = vector.broadcast %cst_97 : f32 to vector<16x128xf32>
    %344 = arith.mulf %343, %342 : vector<16x128xf32>
    %345 = arith.subf %336, %344 : vector<16x128xf32>
    %346 = arith.mulf %342, %345 : vector<16x128xf32>
    %347 = arith.mulf %346, %340 : vector<16x128xf32>
    %348 = arith.addf %305, %347 : vector<16x128xf32>
    %349 = arith.addf %306, %340 : vector<16x128xf32>
    %c11 = arith.constant 11 : index
    %350 = arith.index_cast %5 : i32 to index
    %c0_98 = arith.constant 0 : index
    %351 = vector.load %arg2[%c11, %350, %c0_98] : memref<16x16x128xf32, #tpu.memory_space<vmem>>, vector<1x16x128xf32>
    %352 = vector.shape_cast %351 : vector<1x16x128xf32> to vector<16x128xf32>
    %c11_99 = arith.constant 11 : index
    %353 = arith.index_cast %5 : i32 to index
    %c0_100 = arith.constant 0 : index
    %354 = vector.load %arg3[%c11_99, %353, %c0_100] : memref<16x16x128xf32, #tpu.memory_space<vmem>>, vector<1x16x128xf32>
    %355 = vector.shape_cast %354 : vector<1x16x128xf32> to vector<16x128xf32>
    %356 = arith.subf %355, %352 : vector<16x128xf32>
    %357 = math.absf %356 : vector<16x128xf32>
    %cst_101 = arith.constant 1.920000e+02 : f32
    %358 = vector.broadcast %cst_101 : f32 to vector<16x128xf32>
    %359 = arith.cmpf olt, %352, %358 : vector<16x128xf32>
    %360 = arith.extui %359 : vector<16x128xi1> to vector<16x128xi32>
    %361 = arith.sitofp %360 : vector<16x128xi32> to vector<16x128xf32>
    %cst_102 = arith.constant 1.000000e+00 : f32
    %362 = vector.broadcast %cst_102 : f32 to vector<16x128xf32>
    %363 = arith.minimumf %357, %362 : vector<16x128xf32>
    %cst_103 = arith.constant 5.000000e-01 : f32
    %364 = vector.broadcast %cst_103 : f32 to vector<16x128xf32>
    %365 = arith.mulf %364, %363 : vector<16x128xf32>
    %366 = arith.subf %357, %365 : vector<16x128xf32>
    %367 = arith.mulf %363, %366 : vector<16x128xf32>
    %368 = arith.mulf %367, %361 : vector<16x128xf32>
    %369 = arith.addf %348, %368 : vector<16x128xf32>
    %370 = arith.addf %349, %361 : vector<16x128xf32>
    %371 = arith.addf %331, %352 : vector<16x128xf32>
    %c14 = arith.constant 14 : index
    %372 = arith.index_cast %5 : i32 to index
    %c0_104 = arith.constant 0 : index
    %373 = vector.load %arg2[%c14, %372, %c0_104] : memref<16x16x128xf32, #tpu.memory_space<vmem>>, vector<1x16x128xf32>
    %374 = vector.shape_cast %373 : vector<1x16x128xf32> to vector<16x128xf32>
    %c14_105 = arith.constant 14 : index
    %375 = arith.index_cast %5 : i32 to index
    %c0_106 = arith.constant 0 : index
    %376 = vector.load %arg3[%c14_105, %375, %c0_106] : memref<16x16x128xf32, #tpu.memory_space<vmem>>, vector<1x16x128xf32>
    %377 = vector.shape_cast %376 : vector<1x16x128xf32> to vector<16x128xf32>
    %378 = arith.subf %377, %374 : vector<16x128xf32>
    %379 = math.absf %378 : vector<16x128xf32>
    %cst_107 = arith.constant 1.920000e+02 : f32
    %380 = vector.broadcast %cst_107 : f32 to vector<16x128xf32>
    %381 = arith.cmpf olt, %374, %380 : vector<16x128xf32>
    %382 = arith.extui %381 : vector<16x128xi1> to vector<16x128xi32>
    %383 = arith.sitofp %382 : vector<16x128xi32> to vector<16x128xf32>
    %cst_108 = arith.constant 1.000000e+00 : f32
    %384 = vector.broadcast %cst_108 : f32 to vector<16x128xf32>
    %385 = arith.minimumf %379, %384 : vector<16x128xf32>
    %cst_109 = arith.constant 5.000000e-01 : f32
    %386 = vector.broadcast %cst_109 : f32 to vector<16x128xf32>
    %387 = arith.mulf %386, %385 : vector<16x128xf32>
    %388 = arith.subf %379, %387 : vector<16x128xf32>
    %389 = arith.mulf %385, %388 : vector<16x128xf32>
    %390 = arith.mulf %389, %383 : vector<16x128xf32>
    %391 = arith.addf %369, %390 : vector<16x128xf32>
    %392 = arith.addf %370, %383 : vector<16x128xf32>
    %393 = arith.addf %371, %374 : vector<16x128xf32>
    %c15 = arith.constant 15 : index
    %394 = arith.index_cast %5 : i32 to index
    %c0_110 = arith.constant 0 : index
    %395 = vector.load %arg2[%c15, %394, %c0_110] : memref<16x16x128xf32, #tpu.memory_space<vmem>>, vector<1x16x128xf32>
    %396 = vector.shape_cast %395 : vector<1x16x128xf32> to vector<16x128xf32>
    %c15_111 = arith.constant 15 : index
    %397 = arith.index_cast %5 : i32 to index
    %c0_112 = arith.constant 0 : index
    %398 = vector.load %arg3[%c15_111, %397, %c0_112] : memref<16x16x128xf32, #tpu.memory_space<vmem>>, vector<1x16x128xf32>
    %399 = vector.shape_cast %398 : vector<1x16x128xf32> to vector<16x128xf32>
    %400 = arith.subf %399, %396 : vector<16x128xf32>
    %401 = math.absf %400 : vector<16x128xf32>
    %cst_113 = arith.constant 1.920000e+02 : f32
    %402 = vector.broadcast %cst_113 : f32 to vector<16x128xf32>
    %403 = arith.cmpf olt, %396, %402 : vector<16x128xf32>
    %404 = arith.extui %403 : vector<16x128xi1> to vector<16x128xi32>
    %405 = arith.sitofp %404 : vector<16x128xi32> to vector<16x128xf32>
    %cst_114 = arith.constant 1.000000e+00 : f32
    %406 = vector.broadcast %cst_114 : f32 to vector<16x128xf32>
    %407 = arith.minimumf %401, %406 : vector<16x128xf32>
    %cst_115 = arith.constant 5.000000e-01 : f32
    %408 = vector.broadcast %cst_115 : f32 to vector<16x128xf32>
    %409 = arith.mulf %408, %407 : vector<16x128xf32>
    %410 = arith.subf %401, %409 : vector<16x128xf32>
    %411 = arith.mulf %407, %410 : vector<16x128xf32>
    %412 = arith.mulf %411, %405 : vector<16x128xf32>
    %413 = arith.addf %391, %412 : vector<16x128xf32>
    %414 = arith.addf %392, %405 : vector<16x128xf32>
    %415 = arith.addf %393, %396 : vector<16x128xf32>
    %cst_116 = arith.constant 2.500000e-01 : f32
    %416 = vector.broadcast %cst_116 : f32 to vector<16x128xf32>
    %417 = arith.mulf %415, %416 : vector<16x128xf32>
    %c3_117 = arith.constant 3 : index
    %418 = arith.index_cast %5 : i32 to index
    %c0_118 = arith.constant 0 : index
    %419 = vector.load %arg4[%c3_117, %418, %c0_118] : memref<4x16x128xf32, #tpu.memory_space<vmem>>, vector<1x16x128xf32>
    %420 = vector.shape_cast %419 : vector<1x16x128xf32> to vector<16x128xf32>
    %421 = arith.subf %420, %417 : vector<16x128xf32>
    %422 = math.absf %421 : vector<16x128xf32>
    %cst_119 = arith.constant 1.920000e+02 : f32
    %423 = vector.broadcast %cst_119 : f32 to vector<16x128xf32>
    %424 = arith.cmpf olt, %417, %423 : vector<16x128xf32>
    %425 = arith.extui %424 : vector<16x128xi1> to vector<16x128xi32>
    %426 = arith.sitofp %425 : vector<16x128xi32> to vector<16x128xf32>
    %cst_120 = arith.constant 1.000000e+00 : f32
    %427 = vector.broadcast %cst_120 : f32 to vector<16x128xf32>
    %428 = arith.minimumf %422, %427 : vector<16x128xf32>
    %cst_121 = arith.constant 5.000000e-01 : f32
    %429 = vector.broadcast %cst_121 : f32 to vector<16x128xf32>
    %430 = arith.mulf %429, %428 : vector<16x128xf32>
    %431 = arith.subf %422, %430 : vector<16x128xf32>
    %432 = arith.mulf %428, %431 : vector<16x128xf32>
    %433 = arith.mulf %432, %426 : vector<16x128xf32>
    %434 = arith.addf %326, %433 : vector<16x128xf32>
    %435 = arith.addf %327, %426 : vector<16x128xf32>
    %436 = arith.addf %328, %415 : vector<16x128xf32>
    %cst_122 = arith.constant 6.250000e-02 : f32
    %437 = vector.broadcast %cst_122 : f32 to vector<16x128xf32>
    %438 = arith.mulf %436, %437 : vector<16x128xf32>
    %c0_123 = arith.constant 0 : index
    %439 = arith.index_cast %5 : i32 to index
    %c0_124 = arith.constant 0 : index
    %440 = vector.load %arg5[%c0_123, %439, %c0_124] : memref<1x16x128xf32, #tpu.memory_space<vmem>>, vector<1x16x128xf32>
    %441 = vector.shape_cast %440 : vector<1x16x128xf32> to vector<16x128xf32>
    %442 = arith.subf %441, %438 : vector<16x128xf32>
    %443 = math.absf %442 : vector<16x128xf32>
    %cst_125 = arith.constant 1.920000e+02 : f32
    %444 = vector.broadcast %cst_125 : f32 to vector<16x128xf32>
    %445 = arith.cmpf olt, %438, %444 : vector<16x128xf32>
    %446 = arith.extui %445 : vector<16x128xi1> to vector<16x128xi32>
    %447 = arith.sitofp %446 : vector<16x128xi32> to vector<16x128xf32>
    %cst_126 = arith.constant 1.000000e+00 : f32
    %448 = vector.broadcast %cst_126 : f32 to vector<16x128xf32>
    %449 = arith.minimumf %443, %448 : vector<16x128xf32>
    %cst_127 = arith.constant 5.000000e-01 : f32
    %450 = vector.broadcast %cst_127 : f32 to vector<16x128xf32>
    %451 = arith.mulf %450, %449 : vector<16x128xf32>
    %452 = arith.subf %443, %451 : vector<16x128xf32>
    %453 = arith.mulf %449, %452 : vector<16x128xf32>
    %454 = arith.mulf %453, %447 : vector<16x128xf32>
    %455 = arith.addf %3, %454 : vector<16x128xf32>
    %456 = arith.addf %3, %447 : vector<16x128xf32>
    %c1_i32 = arith.constant 1 : i32
    %c0_128 = arith.constant 0 : index
    %c0_129 = arith.constant 0 : index
    %c0_130 = arith.constant 0 : index
    %c0_131 = arith.constant 0 : index
    %457 = vector.load %arg6[%c0_128, %c0_129, %c0_130, %c0_131] : memref<1x3x16x128xf32, #tpu.memory_space<vmem>>, vector<1x1x16x128xf32>
    %458 = vector.shape_cast %457 : vector<1x1x16x128xf32> to vector<16x128xf32>
    %459 = arith.addf %458, %413 : vector<16x128xf32>
    %c0_132 = arith.constant 0 : index
    %c0_133 = arith.constant 0 : index
    %c0_134 = arith.constant 0 : index
    %c0_135 = arith.constant 0 : index
    %460 = vector.load %arg6[%c0_132, %c0_133, %c0_134, %c0_135] : memref<1x3x16x128xf32, #tpu.memory_space<vmem>>, vector<1x1x16x128xf32>
    %461 = vector.shape_cast %460 : vector<1x1x16x128xf32> to vector<16x128xf32>
    %462 = vector.shape_cast %459 : vector<16x128xf32> to vector<1x1x16x128xf32>
    tpu.vector_store %arg6[%c0_132, %c0_133, %c0_134, %c0_135], %462 {strides = array<i32>} : memref<1x3x16x128xf32, #tpu.memory_space<vmem>>, vector<1x1x16x128xf32>,
    %c0_136 = arith.constant 0 : index
    %c0_137 = arith.constant 0 : index
    %c0_138 = arith.constant 0 : index
    %c0_139 = arith.constant 0 : index
    %463 = vector.load %arg7[%c0_136, %c0_137, %c0_138, %c0_139] : memref<1x3x16x128xf32, #tpu.memory_space<vmem>>, vector<1x1x16x128xf32>
    %464 = vector.shape_cast %463 : vector<1x1x16x128xf32> to vector<16x128xf32>
    %465 = arith.addf %464, %414 : vector<16x128xf32>
    %c0_140 = arith.constant 0 : index
    %c0_141 = arith.constant 0 : index
    %c0_142 = arith.constant 0 : index
    %c0_143 = arith.constant 0 : index
    %466 = vector.load %arg7[%c0_140, %c0_141, %c0_142, %c0_143] : memref<1x3x16x128xf32, #tpu.memory_space<vmem>>, vector<1x1x16x128xf32>
    %467 = vector.shape_cast %466 : vector<1x1x16x128xf32> to vector<16x128xf32>
    %468 = vector.shape_cast %465 : vector<16x128xf32> to vector<1x1x16x128xf32>
    tpu.vector_store %arg7[%c0_140, %c0_141, %c0_142, %c0_143], %468 {strides = array<i32>} : memref<1x3x16x128xf32, #tpu.memory_space<vmem>>, vector<1x1x16x128xf32>,
    %c0_144 = arith.constant 0 : index
    %c1_145 = arith.constant 1 : index
    %c0_146 = arith.constant 0 : index
    %c0_147 = arith.constant 0 : index
    %469 = vector.load %arg6[%c0_144, %c1_145, %c0_146, %c0_147] : memref<1x3x16x128xf32, #tpu.memory_space<vmem>>, vector<1x1x16x128xf32>
    %470 = vector.shape_cast %469 : vector<1x1x16x128xf32> to vector<16x128xf32>
    %471 = arith.addf %470, %434 : vector<16x128xf32>
    %c0_148 = arith.constant 0 : index
    %c1_149 = arith.constant 1 : index
    %c0_150 = arith.constant 0 : index
    %c0_151 = arith.constant 0 : index
    %472 = vector.load %arg6[%c0_148, %c1_149, %c0_150, %c0_151] : memref<1x3x16x128xf32, #tpu.memory_space<vmem>>, vector<1x1x16x128xf32>
    %473 = vector.shape_cast %472 : vector<1x1x16x128xf32> to vector<16x128xf32>
    %474 = vector.shape_cast %471 : vector<16x128xf32> to vector<1x1x16x128xf32>
    tpu.vector_store %arg6[%c0_148, %c1_149, %c0_150, %c0_151], %474 {strides = array<i32>} : memref<1x3x16x128xf32, #tpu.memory_space<vmem>>, vector<1x1x16x128xf32>,
    %c0_152 = arith.constant 0 : index
    %c1_153 = arith.constant 1 : index
    %c0_154 = arith.constant 0 : index
    %c0_155 = arith.constant 0 : index
    %475 = vector.load %arg7[%c0_152, %c1_153, %c0_154, %c0_155] : memref<1x3x16x128xf32, #tpu.memory_space<vmem>>, vector<1x1x16x128xf32>
    %476 = vector.shape_cast %475 : vector<1x1x16x128xf32> to vector<16x128xf32>
    %477 = arith.addf %476, %435 : vector<16x128xf32>
    %c0_156 = arith.constant 0 : index
    %c1_157 = arith.constant 1 : index
    %c0_158 = arith.constant 0 : index
    %c0_159 = arith.constant 0 : index
    %478 = vector.load %arg7[%c0_156, %c1_157, %c0_158, %c0_159] : memref<1x3x16x128xf32, #tpu.memory_space<vmem>>, vector<1x1x16x128xf32>
    %479 = vector.shape_cast %478 : vector<1x1x16x128xf32> to vector<16x128xf32>
    %480 = vector.shape_cast %477 : vector<16x128xf32> to vector<1x1x16x128xf32>
    tpu.vector_store %arg7[%c0_156, %c1_157, %c0_158, %c0_159], %480 {strides = array<i32>} : memref<1x3x16x128xf32, #tpu.memory_space<vmem>>, vector<1x1x16x128xf32>,
    %c0_160 = arith.constant 0 : index
    %c2_161 = arith.constant 2 : index
    %c0_162 = arith.constant 0 : index
    %c0_163 = arith.constant 0 : index
    %481 = vector.load %arg6[%c0_160, %c2_161, %c0_162, %c0_163] : memref<1x3x16x128xf32, #tpu.memory_space<vmem>>, vector<1x1x16x128xf32>
    %482 = vector.shape_cast %481 : vector<1x1x16x128xf32> to vector<16x128xf32>
    %483 = arith.addf %482, %455 : vector<16x128xf32>
    %c0_164 = arith.constant 0 : index
    %c2_165 = arith.constant 2 : index
    %c0_166 = arith.constant 0 : index
    %c0_167 = arith.constant 0 : index
    %484 = vector.load %arg6[%c0_164, %c2_165, %c0_166, %c0_167] : memref<1x3x16x128xf32, #tpu.memory_space<vmem>>, vector<1x1x16x128xf32>
    %485 = vector.shape_cast %484 : vector<1x1x16x128xf32> to vector<16x128xf32>
    %486 = vector.shape_cast %483 : vector<16x128xf32> to vector<1x1x16x128xf32>
    tpu.vector_store %arg6[%c0_164, %c2_165, %c0_166, %c0_167], %486 {strides = array<i32>} : memref<1x3x16x128xf32, #tpu.memory_space<vmem>>, vector<1x1x16x128xf32>,
    %c0_168 = arith.constant 0 : index
    %c2_169 = arith.constant 2 : index
    %c0_170 = arith.constant 0 : index
    %c0_171 = arith.constant 0 : index
    %487 = vector.load %arg7[%c0_168, %c2_169, %c0_170, %c0_171] : memref<1x3x16x128xf32, #tpu.memory_space<vmem>>, vector<1x1x16x128xf32>
    %488 = vector.shape_cast %487 : vector<1x1x16x128xf32> to vector<16x128xf32>
    %489 = arith.addf %488, %456 : vector<16x128xf32>
    %c0_172 = arith.constant 0 : index
    %c2_173 = arith.constant 2 : index
    %c0_174 = arith.constant 0 : index
    %c0_175 = arith.constant 0 : index
    %490 = vector.load %arg7[%c0_172, %c2_173, %c0_174, %c0_175] : memref<1x3x16x128xf32, #tpu.memory_space<vmem>>, vector<1x1x16x128xf32>
    %491 = vector.shape_cast %490 : vector<1x1x16x128xf32> to vector<16x128xf32>
    %492 = vector.shape_cast %489 : vector<16x128xf32> to vector<1x1x16x128xf32>
    tpu.vector_store %arg7[%c0_172, %c2_173, %c0_174, %c0_175], %492 {strides = array<i32>} : memref<1x3x16x128xf32, #tpu.memory_space<vmem>>, vector<1x1x16x128xf32>,
    return
  }
  func.func @transform_0(%arg0: i32, %arg1: i32) -> (i32, i32, i32) {
    %c1_i32 = arith.constant 1 : i32
    %0 = arith.muli %arg0, %c1_i32 : i32
    %1 = arith.addi %0, %arg1 : i32
    %c0_i32 = arith.constant 0 : i32
    %c0_i32_0 = arith.constant 0 : i32
    %c0_i32_1 = arith.constant 0 : i32
    return %c0_i32, %1, %c0_i32_0 : i32, i32, i32
  }
  func.func @transform_1(%arg0: i32, %arg1: i32) -> (i32, i32, i32) {
    %c1_i32 = arith.constant 1 : i32
    %0 = arith.muli %arg0, %c1_i32 : i32
    %1 = arith.addi %0, %arg1 : i32
    %c0_i32 = arith.constant 0 : i32
    %c0_i32_0 = arith.constant 0 : i32
    %c0_i32_1 = arith.constant 0 : i32
    return %c0_i32, %1, %c0_i32_0 : i32, i32, i32
  }
  func.func @transform_2(%arg0: i32, %arg1: i32) -> (i32, i32, i32) {
    %c1_i32 = arith.constant 1 : i32
    %0 = arith.muli %arg0, %c1_i32 : i32
    %1 = arith.addi %0, %arg1 : i32
    %c0_i32 = arith.constant 0 : i32
    %c0_i32_0 = arith.constant 0 : i32
    %c0_i32_1 = arith.constant 0 : i32
    return %c0_i32, %1, %c0_i32_0 : i32, i32, i32
  }
  func.func @transform_3(%arg0: i32, %arg1: i32) -> (i32, i32, i32) {
    %c1_i32 = arith.constant 1 : i32
    %0 = arith.muli %arg0, %c1_i32 : i32
    %1 = arith.addi %0, %arg1 : i32
    %c0_i32 = arith.constant 0 : i32
    %c0_i32_0 = arith.constant 0 : i32
    %c0_i32_1 = arith.constant 0 : i32
    return %c0_i32, %1, %c0_i32_0 : i32, i32, i32
  }
  func.func @transform_4(%arg0: i32, %arg1: i32) -> (i32, i32, i32, i32) {
    %c0_i32 = arith.constant 0 : i32
    %c0_i32_0 = arith.constant 0 : i32
    %c0_i32_1 = arith.constant 0 : i32
    %c0_i32_2 = arith.constant 0 : i32
    return %arg0, %c0_i32, %c0_i32_0, %c0_i32_1 : i32, i32, i32, i32
  }
  func.func @transform_5(%arg0: i32, %arg1: i32) -> (i32, i32, i32, i32) {
    %c0_i32 = arith.constant 0 : i32
    %c0_i32_0 = arith.constant 0 : i32
    %c0_i32_1 = arith.constant 0 : i32
    %c0_i32_2 = arith.constant 0 : i32
    return %arg0, %c0_i32, %c0_i32_0, %c0_i32_1 : i32, i32, i32, i32
  }
}

module attributes {stable_mosaic.version = 11 : i64} {
  func.func @_fused_multiscale_kernel(%arg0: i32, %arg1: i32, %arg2: memref<16x16x128xf32, #tpu.memory_space<vmem>>, %arg3: memref<16x16x128xf32, #tpu.memory_space<vmem>>, %arg4: memref<4x16x128xf32, #tpu.memory_space<vmem>>, %arg5: memref<1x16x128xf32, #tpu.memory_space<vmem>>, %arg6: memref<1x3x16x128xf32, #tpu.memory_space<vmem>>, %arg7: memref<1x3x16x128xf32, #tpu.memory_space<vmem>>) attributes {dimension_semantics = [#tpu.dimension_semantics<parallel>, #tpu.dimension_semantics<arbitrary>], iteration_bounds = array<i64: 1, 1>, scalar_prefetch = 0 : i64, scratch_operands = 0 : i64, tpu.core_type = #tpu.core_type<tc>, window_params = [{transform_indices = @transform_0, window_bounds = array<i64: 16, 16, 128>}, {transform_indices = @transform_1, window_bounds = array<i64: 16, 16, 128>}, {transform_indices = @transform_2, window_bounds = array<i64: 4, 16, 128>}, {transform_indices = @transform_3, window_bounds = array<i64: 1, 16, 128>}, {transform_indices = @transform_4, window_bounds = array<i64: 1, 3, 16, 128>}, {transform_indices = @transform_5, window_bounds = array<i64: 1, 3, 16, 128>}]} {
    %c0_i32 = arith.constant 0 : i32
    %0 = arith.cmpi eq, %arg1, %c0_i32 : i32
    %1 = arith.extui %0 : i1 to i32
    %c0_i32_0 = arith.constant 0 : i32
    %2 = arith.cmpi ne, %1, %c0_i32_0 : i32
    scf.if %2 {
      %cst_176 = arith.constant 0.000000e+00 : f32
      %493 = vector.broadcast %cst_176 : f32 to vector<1x3x16x128xf32>
      %c0_177 = arith.constant 0 : index
      %c0_178 = arith.constant 0 : index
      %c0_179 = arith.constant 0 : index
      %c0_180 = arith.constant 0 : index
      %494 = vector.load %arg6[%c0_177, %c0_178, %c0_179, %c0_180] : memref<1x3x16x128xf32, #tpu.memory_space<vmem>>, vector<1x3x16x128xf32>
      tpu.vector_store %arg6[%c0_177, %c0_178, %c0_179, %c0_180], %493 {strides = array<i32>} : memref<1x3x16x128xf32, #tpu.memory_space<vmem>>, vector<1x3x16x128xf32>,
      %cst_181 = arith.constant 0.000000e+00 : f32
      %495 = vector.broadcast %cst_181 : f32 to vector<1x3x16x128xf32>
      %c0_182 = arith.constant 0 : index
      %c0_183 = arith.constant 0 : index
      %c0_184 = arith.constant 0 : index
      %c0_185 = arith.constant 0 : index
      %496 = vector.load %arg7[%c0_182, %c0_183, %c0_184, %c0_185] : memref<1x3x16x128xf32, #tpu.memory_space<vmem>>, vector<1x3x16x128xf32>
      tpu.vector_store %arg7[%c0_182, %c0_183, %c0_184, %c0_185], %495 {strides = array<i32>} : memref<1x3x16x128xf32, #tpu.memory_space<vmem>>, vector<1x3x16x128xf32>,
    } else {
    }
    %cst = arith.constant 0.000000e+00 : f32
    %3 = vector.broadcast %cst : f32 to vector<16x128xf32>
    %c0_i32_1 = arith.constant 0 : i32
    %c16_i32 = arith.constant 16 : i32
    %4 = arith.muli %c0_i32_1, %c16_i32 : i32
    %5 = tpu.assume_multiple %4, 16 : i32
    %c0 = arith.constant 0 : index
    %6 = arith.index_cast %5 : i32 to index
    %c0_2 = arith.constant 0 : index
    %7 = vector.load %arg2[%c0, %6, %c0_2] : memref<16x16x128xf32, #tpu.memory_space<vmem>>, vector<1x16x128xf32>
    %8 = vector.shape_cast %7 : vector<1x16x128xf32> to vector<16x128xf32>
    %c0_3 = arith.constant 0 : index
    %9 = arith.index_cast %5 : i32 to index
    %c0_4 = arith.constant 0 : index
    %10 = vector.load %arg3[%c0_3, %9, %c0_4] : memref<16x16x128xf32, #tpu.memory_space<vmem>>, vector<1x16x128xf32>
    %11 = vector.shape_cast %10 : vector<1x16x128xf32> to vector<16x128xf32>
    %12 = arith.subf %11, %8 : vector<16x128xf32>
    %13 = math.absf %12 : vector<16x128xf32>
    %cst_5 = arith.constant 1.920000e+02 : f32
    %14 = vector.broadcast %cst_5 : f32 to vector<16x128xf32>
    %15 = arith.cmpf olt, %8, %14 : vector<16x128xf32>
    %16 = arith.extui %15 : vector<16x128xi1> to vector<16x128xi32>
    %17 = arith.sitofp %16 : vector<16x128xi32> to vector<16x128xf32>
    %cst_6 = arith.constant 1.000000e+00 : f32
    %18 = vector.broadcast %cst_6 : f32 to vector<16x128xf32>
    %19 = arith.minimumf %13, %18 : vector<16x128xf32>
    %cst_7 = arith.constant 5.000000e-01 : f32
    %20 = vector.broadcast %cst_7 : f32 to vector<16x128xf32>
    %21 = arith.mulf %20, %19 : vector<16x128xf32>
    %22 = arith.subf %13, %21 : vector<16x128xf32>
    %23 = arith.mulf %19, %22 : vector<16x128xf32>
    %24 = arith.mulf %23, %17 : vector<16x128xf32>
    %25 = arith.addf %3, %24 : vector<16x128xf32>
    %26 = arith.addf %3, %17 : vector<16x128xf32>
    %c1 = arith.constant 1 : index
    %27 = arith.index_cast %5 : i32 to index
    %c0_8 = arith.constant 0 : index
    %28 = vector.load %arg2[%c1, %27, %c0_8] : memref<16x16x128xf32, #tpu.memory_space<vmem>>, vector<1x16x128xf32>
    %29 = vector.shape_cast %28 : vector<1x16x128xf32> to vector<16x128xf32>
    %c1_9 = arith.constant 1 : index
    %30 = arith.index_cast %5 : i32 to index
    %c0_10 = arith.constant 0 : index
    %31 = vector.load %arg3[%c1_9, %30, %c0_10] : memref<16x16x128xf32, #tpu.memory_space<vmem>>, vector<1x16x128xf32>
    %32 = vector.shape_cast %31 : vector<1x16x128xf32> to vector<16x128xf32>
    %33 = arith.subf %32, %29 : vector<16x128xf32>
    %34 = math.absf %33 : vector<16x128xf32>
    %cst_11 = arith.constant 1.920000e+02 : f32
    %35 = vector.broadcast %cst_11 : f32 to vector<16x128xf32>
    %36 = arith.cmpf olt, %29, %35 : vector<16x128xf32>
    %37 = arith.extui %36 : vector<16x128xi1> to vector<16x128xi32>
    %38 = arith.sitofp %37 : vector<16x128xi32> to vector<16x128xf32>
    %cst_12 = arith.constant 1.000000e+00 : f32
    %39 = vector.broadcast %cst_12 : f32 to vector<16x128xf32>
    %40 = arith.minimumf %34, %39 : vector<16x128xf32>
    %cst_13 = arith.constant 5.000000e-01 : f32
    %41 = vector.broadcast %cst_13 : f32 to vector<16x128xf32>
    %42 = arith.mulf %41, %40 : vector<16x128xf32>
    %43 = arith.subf %34, %42 : vector<16x128xf32>
    %44 = arith.mulf %40, %43 : vector<16x128xf32>
    %45 = arith.mulf %44, %38 : vector<16x128xf32>
    %46 = arith.addf %25, %45 : vector<16x128xf32>
    %47 = arith.addf %26, %38 : vector<16x128xf32>
    %48 = arith.addf %8, %29 : vector<16x128xf32>
    %c4 = arith.constant 4 : index
    %49 = arith.index_cast %5 : i32 to index
    %c0_14 = arith.constant 0 : index
    %50 = vector.load %arg2[%c4, %49, %c0_14] : memref<16x16x128xf32, #tpu.memory_space<vmem>>, vector<1x16x128xf32>
    %51 = vector.shape_cast %50 : vector<1x16x128xf32> to vector<16x128xf32>
    %c4_15 = arith.constant 4 : index
    %52 = arith.index_cast %5 : i32 to index
    %c0_16 = arith.constant 0 : index
    %53 = vector.load %arg3[%c4_15, %52, %c0_16] : memref<16x16x128xf32, #tpu.memory_space<vmem>>, vector<1x16x128xf32>
    %54 = vector.shape_cast %53 : vector<1x16x128xf32> to vector<16x128xf32>
    %55 = arith.subf %54, %51 : vector<16x128xf32>
    %56 = math.absf %55 : vector<16x128xf32>
    %cst_17 = arith.constant 1.920000e+02 : f32
    %57 = vector.broadcast %cst_17 : f32 to vector<16x128xf32>
    %58 = arith.cmpf olt, %51, %57 : vector<16x128xf32>
    %59 = arith.extui %58 : vector<16x128xi1> to vector<16x128xi32>
    %60 = arith.sitofp %59 : vector<16x128xi32> to vector<16x128xf32>
    %cst_18 = arith.constant 1.000000e+00 : f32
    %61 = vector.broadcast %cst_18 : f32 to vector<16x128xf32>
    %62 = arith.minimumf %56, %61 : vector<16x128xf32>
    %cst_19 = arith.constant 5.000000e-01 : f32
    %63 = vector.broadcast %cst_19 : f32 to vector<16x128xf32>
    %64 = arith.mulf %63, %62 : vector<16x128xf32>
    %65 = arith.subf %56, %64 : vector<16x128xf32>
    %66 = arith.mulf %62, %65 : vector<16x128xf32>
    %67 = arith.mulf %66, %60 : vector<16x128xf32>
    %68 = arith.addf %46, %67 : vector<16x128xf32>
    %69 = arith.addf %47, %60 : vector<16x128xf32>
    %70 = arith.addf %48, %51 : vector<16x128xf32>
    %c5 = arith.constant 5 : index
    %71 = arith.index_cast %5 : i32 to index
    %c0_20 = arith.constant 0 : index
    %72 = vector.load %arg2[%c5, %71, %c0_20] : memref<16x16x128xf32, #tpu.memory_space<vmem>>, vector<1x16x128xf32>
    %73 = vector.shape_cast %72 : vector<1x16x128xf32> to vector<16x128xf32>
    %c5_21 = arith.constant 5 : index
    %74 = arith.index_cast %5 : i32 to index
    %c0_22 = arith.constant 0 : index
    %75 = vector.load %arg3[%c5_21, %74, %c0_22] : memref<16x16x128xf32, #tpu.memory_space<vmem>>, vector<1x16x128xf32>
    %76 = vector.shape_cast %75 : vector<1x16x128xf32> to vector<16x128xf32>
    %77 = arith.subf %76, %73 : vector<16x128xf32>
    %78 = math.absf %77 : vector<16x128xf32>
    %cst_23 = arith.constant 1.920000e+02 : f32
    %79 = vector.broadcast %cst_23 : f32 to vector<16x128xf32>
    %80 = arith.cmpf olt, %73, %79 : vector<16x128xf32>
    %81 = arith.extui %80 : vector<16x128xi1> to vector<16x128xi32>
    %82 = arith.sitofp %81 : vector<16x128xi32> to vector<16x128xf32>
    %cst_24 = arith.constant 1.000000e+00 : f32
    %83 = vector.broadcast %cst_24 : f32 to vector<16x128xf32>
    %84 = arith.minimumf %78, %83 : vector<16x128xf32>
    %cst_25 = arith.constant 5.000000e-01 : f32
    %85 = vector.broadcast %cst_25 : f32 to vector<16x128xf32>
    %86 = arith.mulf %85, %84 : vector<16x128xf32>
    %87 = arith.subf %78, %86 : vector<16x128xf32>
    %88 = arith.mulf %84, %87 : vector<16x128xf32>
    %89 = arith.mulf %88, %82 : vector<16x128xf32>
    %90 = arith.addf %68, %89 : vector<16x128xf32>
    %91 = arith.addf %69, %82 : vector<16x128xf32>
    %92 = arith.addf %70, %73 : vector<16x128xf32>
    %cst_26 = arith.constant 2.500000e-01 : f32
    %93 = vector.broadcast %cst_26 : f32 to vector<16x128xf32>
    %94 = arith.mulf %92, %93 : vector<16x128xf32>
    %c0_27 = arith.constant 0 : index
    %95 = arith.index_cast %5 : i32 to index
    %c0_28 = arith.constant 0 : index
    %96 = vector.load %arg4[%c0_27, %95, %c0_28] : memref<4x16x128xf32, #tpu.memory_space<vmem>>, vector<1x16x128xf32>
    %97 = vector.shape_cast %96 : vector<1x16x128xf32> to vector<16x128xf32>
    %98 = arith.subf %97, %94 : vector<16x128xf32>
    %99 = math.absf %98 : vector<16x128xf32>
    %cst_29 = arith.constant 1.920000e+02 : f32
    %100 = vector.broadcast %cst_29 : f32 to vector<16x128xf32>
    %101 = arith.cmpf olt, %94, %100 : vector<16x128xf32>
    %102 = arith.extui %101 : vector<16x128xi1> to vector<16x128xi32>
    %103 = arith.sitofp %102 : vector<16x128xi32> to vector<16x128xf32>
    %cst_30 = arith.constant 1.000000e+00 : f32
    %104 = vector.broadcast %cst_30 : f32 to vector<16x128xf32>
    %105 = arith.minimumf %99, %104 : vector<16x128xf32>
    %cst_31 = arith.constant 5.000000e-01 : f32
    %106 = vector.broadcast %cst_31 : f32 to vector<16x128xf32>
    %107 = arith.mulf %106, %105 : vector<16x128xf32>
    %108 = arith.subf %99, %107 : vector<16x128xf32>
    %109 = arith.mulf %105, %108 : vector<16x128xf32>
    %110 = arith.mulf %109, %103 : vector<16x128xf32>
    %111 = arith.addf %3, %110 : vector<16x128xf32>
    %112 = arith.addf %3, %103 : vector<16x128xf32>
    %c2 = arith.constant 2 : index
    %113 = arith.index_cast %5 : i32 to index
    %c0_32 = arith.constant 0 : index
    %114 = vector.load %arg2[%c2, %113, %c0_32] : memref<16x16x128xf32, #tpu.memory_space<vmem>>, vector<1x16x128xf32>
    %115 = vector.shape_cast %114 : vector<1x16x128xf32> to vector<16x128xf32>
    %c2_33 = arith.constant 2 : index
    %116 = arith.index_cast %5 : i32 to index
    %c0_34 = arith.constant 0 : index
    %117 = vector.load %arg3[%c2_33, %116, %c0_34] : memref<16x16x128xf32, #tpu.memory_space<vmem>>, vector<1x16x128xf32>
    %118 = vector.shape_cast %117 : vector<1x16x128xf32> to vector<16x128xf32>
    %119 = arith.subf %118, %115 : vector<16x128xf32>
    %120 = math.absf %119 : vector<16x128xf32>
    %cst_35 = arith.constant 1.920000e+02 : f32
    %121 = vector.broadcast %cst_35 : f32 to vector<16x128xf32>
    %122 = arith.cmpf olt, %115, %121 : vector<16x128xf32>
    %123 = arith.extui %122 : vector<16x128xi1> to vector<16x128xi32>
    %124 = arith.sitofp %123 : vector<16x128xi32> to vector<16x128xf32>
    %cst_36 = arith.constant 1.000000e+00 : f32
    %125 = vector.broadcast %cst_36 : f32 to vector<16x128xf32>
    %126 = arith.minimumf %120, %125 : vector<16x128xf32>
    %cst_37 = arith.constant 5.000000e-01 : f32
    %127 = vector.broadcast %cst_37 : f32 to vector<16x128xf32>
    %128 = arith.mulf %127, %126 : vector<16x128xf32>
    %129 = arith.subf %120, %128 : vector<16x128xf32>
    %130 = arith.mulf %126, %129 : vector<16x128xf32>
    %131 = arith.mulf %130, %124 : vector<16x128xf32>
    %132 = arith.addf %90, %131 : vector<16x128xf32>
    %133 = arith.addf %91, %124 : vector<16x128xf32>
    %c3 = arith.constant 3 : index
    %134 = arith.index_cast %5 : i32 to index
    %c0_38 = arith.constant 0 : index
    %135 = vector.load %arg2[%c3, %134, %c0_38] : memref<16x16x128xf32, #tpu.memory_space<vmem>>, vector<1x16x128xf32>
    %136 = vector.shape_cast %135 : vector<1x16x128xf32> to vector<16x128xf32>
    %c3_39 = arith.constant 3 : index
    %137 = arith.index_cast %5 : i32 to index
    %c0_40 = arith.constant 0 : index
    %138 = vector.load %arg3[%c3_39, %137, %c0_40] : memref<16x16x128xf32, #tpu.memory_space<vmem>>, vector<1x16x128xf32>
    %139 = vector.shape_cast %138 : vector<1x16x128xf32> to vector<16x128xf32>
    %140 = arith.subf %139, %136 : vector<16x128xf32>
    %141 = math.absf %140 : vector<16x128xf32>
    %cst_41 = arith.constant 1.920000e+02 : f32
    %142 = vector.broadcast %cst_41 : f32 to vector<16x128xf32>
    %143 = arith.cmpf olt, %136, %142 : vector<16x128xf32>
    %144 = arith.extui %143 : vector<16x128xi1> to vector<16x128xi32>
    %145 = arith.sitofp %144 : vector<16x128xi32> to vector<16x128xf32>
    %cst_42 = arith.constant 1.000000e+00 : f32
    %146 = vector.broadcast %cst_42 : f32 to vector<16x128xf32>
    %147 = arith.minimumf %141, %146 : vector<16x128xf32>
    %cst_43 = arith.constant 5.000000e-01 : f32
    %148 = vector.broadcast %cst_43 : f32 to vector<16x128xf32>
    %149 = arith.mulf %148, %147 : vector<16x128xf32>
    %150 = arith.subf %141, %149 : vector<16x128xf32>
    %151 = arith.mulf %147, %150 : vector<16x128xf32>
    %152 = arith.mulf %151, %145 : vector<16x128xf32>
    %153 = arith.addf %132, %152 : vector<16x128xf32>
    %154 = arith.addf %133, %145 : vector<16x128xf32>
    %155 = arith.addf %115, %136 : vector<16x128xf32>
    %c6 = arith.constant 6 : index
    %156 = arith.index_cast %5 : i32 to index
    %c0_44 = arith.constant 0 : index
    %157 = vector.load %arg2[%c6, %156, %c0_44] : memref<16x16x128xf32, #tpu.memory_space<vmem>>, vector<1x16x128xf32>
    %158 = vector.shape_cast %157 : vector<1x16x128xf32> to vector<16x128xf32>
    %c6_45 = arith.constant 6 : index
    %159 = arith.index_cast %5 : i32 to index
    %c0_46 = arith.constant 0 : index
    %160 = vector.load %arg3[%c6_45, %159, %c0_46] : memref<16x16x128xf32, #tpu.memory_space<vmem>>, vector<1x16x128xf32>
    %161 = vector.shape_cast %160 : vector<1x16x128xf32> to vector<16x128xf32>
    %162 = arith.subf %161, %158 : vector<16x128xf32>
    %163 = math.absf %162 : vector<16x128xf32>
    %cst_47 = arith.constant 1.920000e+02 : f32
    %164 = vector.broadcast %cst_47 : f32 to vector<16x128xf32>
    %165 = arith.cmpf olt, %158, %164 : vector<16x128xf32>
    %166 = arith.extui %165 : vector<16x128xi1> to vector<16x128xi32>
    %167 = arith.sitofp %166 : vector<16x128xi32> to vector<16x128xf32>
    %cst_48 = arith.constant 1.000000e+00 : f32
    %168 = vector.broadcast %cst_48 : f32 to vector<16x128xf32>
    %169 = arith.minimumf %163, %168 : vector<16x128xf32>
    %cst_49 = arith.constant 5.000000e-01 : f32
    %170 = vector.broadcast %cst_49 : f32 to vector<16x128xf32>
    %171 = arith.mulf %170, %169 : vector<16x128xf32>
    %172 = arith.subf %163, %171 : vector<16x128xf32>
    %173 = arith.mulf %169, %172 : vector<16x128xf32>
    %174 = arith.mulf %173, %167 : vector<16x128xf32>
    %175 = arith.addf %153, %174 : vector<16x128xf32>
    %176 = arith.addf %154, %167 : vector<16x128xf32>
    %177 = arith.addf %155, %158 : vector<16x128xf32>
    %c7 = arith.constant 7 : index
    %178 = arith.index_cast %5 : i32 to index
    %c0_50 = arith.constant 0 : index
    %179 = vector.load %arg2[%c7, %178, %c0_50] : memref<16x16x128xf32, #tpu.memory_space<vmem>>, vector<1x16x128xf32>
    %180 = vector.shape_cast %179 : vector<1x16x128xf32> to vector<16x128xf32>
    %c7_51 = arith.constant 7 : index
    %181 = arith.index_cast %5 : i32 to index
    %c0_52 = arith.constant 0 : index
    %182 = vector.load %arg3[%c7_51, %181, %c0_52] : memref<16x16x128xf32, #tpu.memory_space<vmem>>, vector<1x16x128xf32>
    %183 = vector.shape_cast %182 : vector<1x16x128xf32> to vector<16x128xf32>
    %184 = arith.subf %183, %180 : vector<16x128xf32>
    %185 = math.absf %184 : vector<16x128xf32>
    %cst_53 = arith.constant 1.920000e+02 : f32
    %186 = vector.broadcast %cst_53 : f32 to vector<16x128xf32>
    %187 = arith.cmpf olt, %180, %186 : vector<16x128xf32>
    %188 = arith.extui %187 : vector<16x128xi1> to vector<16x128xi32>
    %189 = arith.sitofp %188 : vector<16x128xi32> to vector<16x128xf32>
    %cst_54 = arith.constant 1.000000e+00 : f32
    %190 = vector.broadcast %cst_54 : f32 to vector<16x128xf32>
    %191 = arith.minimumf %185, %190 : vector<16x128xf32>
    %cst_55 = arith.constant 5.000000e-01 : f32
    %192 = vector.broadcast %cst_55 : f32 to vector<16x128xf32>
    %193 = arith.mulf %192, %191 : vector<16x128xf32>
    %194 = arith.subf %185, %193 : vector<16x128xf32>
    %195 = arith.mulf %191, %194 : vector<16x128xf32>
    %196 = arith.mulf %195, %189 : vector<16x128xf32>
    %197 = arith.addf %175, %196 : vector<16x128xf32>
    %198 = arith.addf %176, %189 : vector<16x128xf32>
    %199 = arith.addf %177, %180 : vector<16x128xf32>
    %cst_56 = arith.constant 2.500000e-01 : f32
    %200 = vector.broadcast %cst_56 : f32 to vector<16x128xf32>
    %201 = arith.mulf %199, %200 : vector<16x128xf32>
    %c1_57 = arith.constant 1 : index
    %202 = arith.index_cast %5 : i32 to index
    %c0_58 = arith.constant 0 : index
    %203 = vector.load %arg4[%c1_57, %202, %c0_58] : memref<4x16x128xf32, #tpu.memory_space<vmem>>, vector<1x16x128xf32>
    %204 = vector.shape_cast %203 : vector<1x16x128xf32> to vector<16x128xf32>
    %205 = arith.subf %204, %201 : vector<16x128xf32>
    %206 = math.absf %205 : vector<16x128xf32>
    %cst_59 = arith.constant 1.920000e+02 : f32
    %207 = vector.broadcast %cst_59 : f32 to vector<16x128xf32>
    %208 = arith.cmpf olt, %201, %207 : vector<16x128xf32>
    %209 = arith.extui %208 : vector<16x128xi1> to vector<16x128xi32>
    %210 = arith.sitofp %209 : vector<16x128xi32> to vector<16x128xf32>
    %cst_60 = arith.constant 1.000000e+00 : f32
    %211 = vector.broadcast %cst_60 : f32 to vector<16x128xf32>
    %212 = arith.minimumf %206, %211 : vector<16x128xf32>
    %cst_61 = arith.constant 5.000000e-01 : f32
    %213 = vector.broadcast %cst_61 : f32 to vector<16x128xf32>
    %214 = arith.mulf %213, %212 : vector<16x128xf32>
    %215 = arith.subf %206, %214 : vector<16x128xf32>
    %216 = arith.mulf %212, %215 : vector<16x128xf32>
    %217 = arith.mulf %216, %210 : vector<16x128xf32>
    %218 = arith.addf %111, %217 : vector<16x128xf32>
    %219 = arith.addf %112, %210 : vector<16x128xf32>
    %220 = arith.addf %92, %199 : vector<16x128xf32>
    %c8 = arith.constant 8 : index
    %221 = arith.index_cast %5 : i32 to index
    %c0_62 = arith.constant 0 : index
    %222 = vector.load %arg2[%c8, %221, %c0_62] : memref<16x16x128xf32, #tpu.memory_space<vmem>>, vector<1x16x128xf32>
    %223 = vector.shape_cast %222 : vector<1x16x128xf32> to vector<16x128xf32>
    %c8_63 = arith.constant 8 : index
    %224 = arith.index_cast %5 : i32 to index
    %c0_64 = arith.constant 0 : index
    %225 = vector.load %arg3[%c8_63, %224, %c0_64] : memref<16x16x128xf32, #tpu.memory_space<vmem>>, vector<1x16x128xf32>
    %226 = vector.shape_cast %225 : vector<1x16x128xf32> to vector<16x128xf32>
    %227 = arith.subf %226, %223 : vector<16x128xf32>
    %228 = math.absf %227 : vector<16x128xf32>
    %cst_65 = arith.constant 1.920000e+02 : f32
    %229 = vector.broadcast %cst_65 : f32 to vector<16x128xf32>
    %230 = arith.cmpf olt, %223, %229 : vector<16x128xf32>
    %231 = arith.extui %230 : vector<16x128xi1> to vector<16x128xi32>
    %232 = arith.sitofp %231 : vector<16x128xi32> to vector<16x128xf32>
    %cst_66 = arith.constant 1.000000e+00 : f32
    %233 = vector.broadcast %cst_66 : f32 to vector<16x128xf32>
    %234 = arith.minimumf %228, %233 : vector<16x128xf32>
    %cst_67 = arith.constant 5.000000e-01 : f32
    %235 = vector.broadcast %cst_67 : f32 to vector<16x128xf32>
    %236 = arith.mulf %235, %234 : vector<16x128xf32>
    %237 = arith.subf %228, %236 : vector<16x128xf32>
    %238 = arith.mulf %234, %237 : vector<16x128xf32>
    %239 = arith.mulf %238, %232 : vector<16x128xf32>
    %240 = arith.addf %197, %239 : vector<16x128xf32>
    %241 = arith.addf %198, %232 : vector<16x128xf32>
    %c9 = arith.constant 9 : index
    %242 = arith.index_cast %5 : i32 to index
    %c0_68 = arith.constant 0 : index
    %243 = vector.load %arg2[%c9, %242, %c0_68] : memref<16x16x128xf32, #tpu.memory_space<vmem>>, vector<1x16x128xf32>
    %244 = vector.shape_cast %243 : vector<1x16x128xf32> to vector<16x128xf32>
    %c9_69 = arith.constant 9 : index
    %245 = arith.index_cast %5 : i32 to index
    %c0_70 = arith.constant 0 : index
    %246 = vector.load %arg3[%c9_69, %245, %c0_70] : memref<16x16x128xf32, #tpu.memory_space<vmem>>, vector<1x16x128xf32>
    %247 = vector.shape_cast %246 : vector<1x16x128xf32> to vector<16x128xf32>
    %248 = arith.subf %247, %244 : vector<16x128xf32>
    %249 = math.absf %248 : vector<16x128xf32>
    %cst_71 = arith.constant 1.920000e+02 : f32
    %250 = vector.broadcast %cst_71 : f32 to vector<16x128xf32>
    %251 = arith.cmpf olt, %244, %250 : vector<16x128xf32>
    %252 = arith.extui %251 : vector<16x128xi1> to vector<16x128xi32>
    %253 = arith.sitofp %252 : vector<16x128xi32> to vector<16x128xf32>
    %cst_72 = arith.constant 1.000000e+00 : f32
    %254 = vector.broadcast %cst_72 : f32 to vector<16x128xf32>
    %255 = arith.minimumf %249, %254 : vector<16x128xf32>
    %cst_73 = arith.constant 5.000000e-01 : f32
    %256 = vector.broadcast %cst_73 : f32 to vector<16x128xf32>
    %257 = arith.mulf %256, %255 : vector<16x128xf32>
    %258 = arith.subf %249, %257 : vector<16x128xf32>
    %259 = arith.mulf %255, %258 : vector<16x128xf32>
    %260 = arith.mulf %259, %253 : vector<16x128xf32>
    %261 = arith.addf %240, %260 : vector<16x128xf32>
    %262 = arith.addf %241, %253 : vector<16x128xf32>
    %263 = arith.addf %223, %244 : vector<16x128xf32>
    %c12 = arith.constant 12 : index
    %264 = arith.index_cast %5 : i32 to index
    %c0_74 = arith.constant 0 : index
    %265 = vector.load %arg2[%c12, %264, %c0_74] : memref<16x16x128xf32, #tpu.memory_space<vmem>>, vector<1x16x128xf32>
    %266 = vector.shape_cast %265 : vector<1x16x128xf32> to vector<16x128xf32>
    %c12_75 = arith.constant 12 : index
    %267 = arith.index_cast %5 : i32 to index
    %c0_76 = arith.constant 0 : index
    %268 = vector.load %arg3[%c12_75, %267, %c0_76] : memref<16x16x128xf32, #tpu.memory_space<vmem>>, vector<1x16x128xf32>
    %269 = vector.shape_cast %268 : vector<1x16x128xf32> to vector<16x128xf32>
    %270 = arith.subf %269, %266 : vector<16x128xf32>
    %271 = math.absf %270 : vector<16x128xf32>
    %cst_77 = arith.constant 1.920000e+02 : f32
    %272 = vector.broadcast %cst_77 : f32 to vector<16x128xf32>
    %273 = arith.cmpf olt, %266, %272 : vector<16x128xf32>
    %274 = arith.extui %273 : vector<16x128xi1> to vector<16x128xi32>
    %275 = arith.sitofp %274 : vector<16x128xi32> to vector<16x128xf32>
    %cst_78 = arith.constant 1.000000e+00 : f32
    %276 = vector.broadcast %cst_78 : f32 to vector<16x128xf32>
    %277 = arith.minimumf %271, %276 : vector<16x128xf32>
    %cst_79 = arith.constant 5.000000e-01 : f32
    %278 = vector.broadcast %cst_79 : f32 to vector<16x128xf32>
    %279 = arith.mulf %278, %277 : vector<16x128xf32>
    %280 = arith.subf %271, %279 : vector<16x128xf32>
    %281 = arith.mulf %277, %280 : vector<16x128xf32>
    %282 = arith.mulf %281, %275 : vector<16x128xf32>
    %283 = arith.addf %261, %282 : vector<16x128xf32>
    %284 = arith.addf %262, %275 : vector<16x128xf32>
    %285 = arith.addf %263, %266 : vector<16x128xf32>
    %c13 = arith.constant 13 : index
    %286 = arith.index_cast %5 : i32 to index
    %c0_80 = arith.constant 0 : index
    %287 = vector.load %arg2[%c13, %286, %c0_80] : memref<16x16x128xf32, #tpu.memory_space<vmem>>, vector<1x16x128xf32>
    %288 = vector.shape_cast %287 : vector<1x16x128xf32> to vector<16x128xf32>
    %c13_81 = arith.constant 13 : index
    %289 = arith.index_cast %5 : i32 to index
    %c0_82 = arith.constant 0 : index
    %290 = vector.load %arg3[%c13_81, %289, %c0_82] : memref<16x16x128xf32, #tpu.memory_space<vmem>>, vector<1x16x128xf32>
    %291 = vector.shape_cast %290 : vector<1x16x128xf32> to vector<16x128xf32>
    %292 = arith.subf %291, %288 : vector<16x128xf32>
    %293 = math.absf %292 : vector<16x128xf32>
    %cst_83 = arith.constant 1.920000e+02 : f32
    %294 = vector.broadcast %cst_83 : f32 to vector<16x128xf32>
    %295 = arith.cmpf olt, %288, %294 : vector<16x128xf32>
    %296 = arith.extui %295 : vector<16x128xi1> to vector<16x128xi32>
    %297 = arith.sitofp %296 : vector<16x128xi32> to vector<16x128xf32>
    %cst_84 = arith.constant 1.000000e+00 : f32
    %298 = vector.broadcast %cst_84 : f32 to vector<16x128xf32>
    %299 = arith.minimumf %293, %298 : vector<16x128xf32>
    %cst_85 = arith.constant 5.000000e-01 : f32
    %300 = vector.broadcast %cst_85 : f32 to vector<16x128xf32>
    %301 = arith.mulf %300, %299 : vector<16x128xf32>
    %302 = arith.subf %293, %301 : vector<16x128xf32>
    %303 = arith.mulf %299, %302 : vector<16x128xf32>
    %304 = arith.mulf %303, %297 : vector<16x128xf32>
    %305 = arith.addf %283, %304 : vector<16x128xf32>
    %306 = arith.addf %284, %297 : vector<16x128xf32>
    %307 = arith.addf %285, %288 : vector<16x128xf32>
    %cst_86 = arith.constant 2.500000e-01 : f32
    %308 = vector.broadcast %cst_86 : f32 to vector<16x128xf32>
    %309 = arith.mulf %307, %308 : vector<16x128xf32>
    %c2_87 = arith.constant 2 : index
    %310 = arith.index_cast %5 : i32 to index
    %c0_88 = arith.constant 0 : index
    %311 = vector.load %arg4[%c2_87, %310, %c0_88] : memref<4x16x128xf32, #tpu.memory_space<vmem>>, vector<1x16x128xf32>
    %312 = vector.shape_cast %311 : vector<1x16x128xf32> to vector<16x128xf32>
    %313 = arith.subf %312, %309 : vector<16x128xf32>
    %314 = math.absf %313 : vector<16x128xf32>
    %cst_89 = arith.constant 1.920000e+02 : f32
    %315 = vector.broadcast %cst_89 : f32 to vector<16x128xf32>
    %316 = arith.cmpf olt, %309, %315 : vector<16x128xf32>
    %317 = arith.extui %316 : vector<16x128xi1> to vector<16x128xi32>
    %318 = arith.sitofp %317 : vector<16x128xi32> to vector<16x128xf32>
    %cst_90 = arith.constant 1.000000e+00 : f32
    %319 = vector.broadcast %cst_90 : f32 to vector<16x128xf32>
    %320 = arith.minimumf %314, %319 : vector<16x128xf32>
    %cst_91 = arith.constant 5.000000e-01 : f32
    %321 = vector.broadcast %cst_91 : f32 to vector<16x128xf32>
    %322 = arith.mulf %321, %320 : vector<16x128xf32>
    %323 = arith.subf %314, %322 : vector<16x128xf32>
    %324 = arith.mulf %320, %323 : vector<16x128xf32>
    %325 = arith.mulf %324, %318 : vector<16x128xf32>
    %326 = arith.addf %218, %325 : vector<16x128xf32>
    %327 = arith.addf %219, %318 : vector<16x128xf32>
    %328 = arith.addf %220, %307 : vector<16x128xf32>
    %c10 = arith.constant 10 : index
    %329 = arith.index_cast %5 : i32 to index
    %c0_92 = arith.constant 0 : index
    %330 = vector.load %arg2[%c10, %329, %c0_92] : memref<16x16x128xf32, #tpu.memory_space<vmem>>, vector<1x16x128xf32>
    %331 = vector.shape_cast %330 : vector<1x16x128xf32> to vector<16x128xf32>
    %c10_93 = arith.constant 10 : index
    %332 = arith.index_cast %5 : i32 to index
    %c0_94 = arith.constant 0 : index
    %333 = vector.load %arg3[%c10_93, %332, %c0_94] : memref<16x16x128xf32, #tpu.memory_space<vmem>>, vector<1x16x128xf32>
    %334 = vector.shape_cast %333 : vector<1x16x128xf32> to vector<16x128xf32>
    %335 = arith.subf %334, %331 : vector<16x128xf32>
    %336 = math.absf %335 : vector<16x128xf32>
    %cst_95 = arith.constant 1.920000e+02 : f32
    %337 = vector.broadcast %cst_95 : f32 to vector<16x128xf32>
    %338 = arith.cmpf olt, %331, %337 : vector<16x128xf32>
    %339 = arith.extui %338 : vector<16x128xi1> to vector<16x128xi32>
    %340 = arith.sitofp %339 : vector<16x128xi32> to vector<16x128xf32>
    %cst_96 = arith.constant 1.000000e+00 : f32
    %341 = vector.broadcast %cst_96 : f32 to vector<16x128xf32>
    %342 = arith.minimumf %336, %341 : vector<16x128xf32>
    %cst_97 = arith.constant 5.000000e-01 : f32
    %343 = vector.broadcast %cst_97 : f32 to vector<16x128xf32>
    %344 = arith.mulf %343, %342 : vector<16x128xf32>
    %345 = arith.subf %336, %344 : vector<16x128xf32>
    %346 = arith.mulf %342, %345 : vector<16x128xf32>
    %347 = arith.mulf %346, %340 : vector<16x128xf32>
    %348 = arith.addf %305, %347 : vector<16x128xf32>
    %349 = arith.addf %306, %340 : vector<16x128xf32>
    %c11 = arith.constant 11 : index
    %350 = arith.index_cast %5 : i32 to index
    %c0_98 = arith.constant 0 : index
    %351 = vector.load %arg2[%c11, %350, %c0_98] : memref<16x16x128xf32, #tpu.memory_space<vmem>>, vector<1x16x128xf32>
    %352 = vector.shape_cast %351 : vector<1x16x128xf32> to vector<16x128xf32>
    %c11_99 = arith.constant 11 : index
    %353 = arith.index_cast %5 : i32 to index
    %c0_100 = arith.constant 0 : index
    %354 = vector.load %arg3[%c11_99, %353, %c0_100] : memref<16x16x128xf32, #tpu.memory_space<vmem>>, vector<1x16x128xf32>
    %355 = vector.shape_cast %354 : vector<1x16x128xf32> to vector<16x128xf32>
    %356 = arith.subf %355, %352 : vector<16x128xf32>
    %357 = math.absf %356 : vector<16x128xf32>
    %cst_101 = arith.constant 1.920000e+02 : f32
    %358 = vector.broadcast %cst_101 : f32 to vector<16x128xf32>
    %359 = arith.cmpf olt, %352, %358 : vector<16x128xf32>
    %360 = arith.extui %359 : vector<16x128xi1> to vector<16x128xi32>
    %361 = arith.sitofp %360 : vector<16x128xi32> to vector<16x128xf32>
    %cst_102 = arith.constant 1.000000e+00 : f32
    %362 = vector.broadcast %cst_102 : f32 to vector<16x128xf32>
    %363 = arith.minimumf %357, %362 : vector<16x128xf32>
    %cst_103 = arith.constant 5.000000e-01 : f32
    %364 = vector.broadcast %cst_103 : f32 to vector<16x128xf32>
    %365 = arith.mulf %364, %363 : vector<16x128xf32>
    %366 = arith.subf %357, %365 : vector<16x128xf32>
    %367 = arith.mulf %363, %366 : vector<16x128xf32>
    %368 = arith.mulf %367, %361 : vector<16x128xf32>
    %369 = arith.addf %348, %368 : vector<16x128xf32>
    %370 = arith.addf %349, %361 : vector<16x128xf32>
    %371 = arith.addf %331, %352 : vector<16x128xf32>
    %c14 = arith.constant 14 : index
    %372 = arith.index_cast %5 : i32 to index
    %c0_104 = arith.constant 0 : index
    %373 = vector.load %arg2[%c14, %372, %c0_104] : memref<16x16x128xf32, #tpu.memory_space<vmem>>, vector<1x16x128xf32>
    %374 = vector.shape_cast %373 : vector<1x16x128xf32> to vector<16x128xf32>
    %c14_105 = arith.constant 14 : index
    %375 = arith.index_cast %5 : i32 to index
    %c0_106 = arith.constant 0 : index
    %376 = vector.load %arg3[%c14_105, %375, %c0_106] : memref<16x16x128xf32, #tpu.memory_space<vmem>>, vector<1x16x128xf32>
    %377 = vector.shape_cast %376 : vector<1x16x128xf32> to vector<16x128xf32>
    %378 = arith.subf %377, %374 : vector<16x128xf32>
    %379 = math.absf %378 : vector<16x128xf32>
    %cst_107 = arith.constant 1.920000e+02 : f32
    %380 = vector.broadcast %cst_107 : f32 to vector<16x128xf32>
    %381 = arith.cmpf olt, %374, %380 : vector<16x128xf32>
    %382 = arith.extui %381 : vector<16x128xi1> to vector<16x128xi32>
    %383 = arith.sitofp %382 : vector<16x128xi32> to vector<16x128xf32>
    %cst_108 = arith.constant 1.000000e+00 : f32
    %384 = vector.broadcast %cst_108 : f32 to vector<16x128xf32>
    %385 = arith.minimumf %379, %384 : vector<16x128xf32>
    %cst_109 = arith.constant 5.000000e-01 : f32
    %386 = vector.broadcast %cst_109 : f32 to vector<16x128xf32>
    %387 = arith.mulf %386, %385 : vector<16x128xf32>
    %388 = arith.subf %379, %387 : vector<16x128xf32>
    %389 = arith.mulf %385, %388 : vector<16x128xf32>
    %390 = arith.mulf %389, %383 : vector<16x128xf32>
    %391 = arith.addf %369, %390 : vector<16x128xf32>
    %392 = arith.addf %370, %383 : vector<16x128xf32>
    %393 = arith.addf %371, %374 : vector<16x128xf32>
    %c15 = arith.constant 15 : index
    %394 = arith.index_cast %5 : i32 to index
    %c0_110 = arith.constant 0 : index
    %395 = vector.load %arg2[%c15, %394, %c0_110] : memref<16x16x128xf32, #tpu.memory_space<vmem>>, vector<1x16x128xf32>
    %396 = vector.shape_cast %395 : vector<1x16x128xf32> to vector<16x128xf32>
    %c15_111 = arith.constant 15 : index
    %397 = arith.index_cast %5 : i32 to index
    %c0_112 = arith.constant 0 : index
    %398 = vector.load %arg3[%c15_111, %397, %c0_112] : memref<16x16x128xf32, #tpu.memory_space<vmem>>, vector<1x16x128xf32>
    %399 = vector.shape_cast %398 : vector<1x16x128xf32> to vector<16x128xf32>
    %400 = arith.subf %399, %396 : vector<16x128xf32>
    %401 = math.absf %400 : vector<16x128xf32>
    %cst_113 = arith.constant 1.920000e+02 : f32
    %402 = vector.broadcast %cst_113 : f32 to vector<16x128xf32>
    %403 = arith.cmpf olt, %396, %402 : vector<16x128xf32>
    %404 = arith.extui %403 : vector<16x128xi1> to vector<16x128xi32>
    %405 = arith.sitofp %404 : vector<16x128xi32> to vector<16x128xf32>
    %cst_114 = arith.constant 1.000000e+00 : f32
    %406 = vector.broadcast %cst_114 : f32 to vector<16x128xf32>
    %407 = arith.minimumf %401, %406 : vector<16x128xf32>
    %cst_115 = arith.constant 5.000000e-01 : f32
    %408 = vector.broadcast %cst_115 : f32 to vector<16x128xf32>
    %409 = arith.mulf %408, %407 : vector<16x128xf32>
    %410 = arith.subf %401, %409 : vector<16x128xf32>
    %411 = arith.mulf %407, %410 : vector<16x128xf32>
    %412 = arith.mulf %411, %405 : vector<16x128xf32>
    %413 = arith.addf %391, %412 : vector<16x128xf32>
    %414 = arith.addf %392, %405 : vector<16x128xf32>
    %415 = arith.addf %393, %396 : vector<16x128xf32>
    %cst_116 = arith.constant 2.500000e-01 : f32
    %416 = vector.broadcast %cst_116 : f32 to vector<16x128xf32>
    %417 = arith.mulf %415, %416 : vector<16x128xf32>
    %c3_117 = arith.constant 3 : index
    %418 = arith.index_cast %5 : i32 to index
    %c0_118 = arith.constant 0 : index
    %419 = vector.load %arg4[%c3_117, %418, %c0_118] : memref<4x16x128xf32, #tpu.memory_space<vmem>>, vector<1x16x128xf32>
    %420 = vector.shape_cast %419 : vector<1x16x128xf32> to vector<16x128xf32>
    %421 = arith.subf %420, %417 : vector<16x128xf32>
    %422 = math.absf %421 : vector<16x128xf32>
    %cst_119 = arith.constant 1.920000e+02 : f32
    %423 = vector.broadcast %cst_119 : f32 to vector<16x128xf32>
    %424 = arith.cmpf olt, %417, %423 : vector<16x128xf32>
    %425 = arith.extui %424 : vector<16x128xi1> to vector<16x128xi32>
    %426 = arith.sitofp %425 : vector<16x128xi32> to vector<16x128xf32>
    %cst_120 = arith.constant 1.000000e+00 : f32
    %427 = vector.broadcast %cst_120 : f32 to vector<16x128xf32>
    %428 = arith.minimumf %422, %427 : vector<16x128xf32>
    %cst_121 = arith.constant 5.000000e-01 : f32
    %429 = vector.broadcast %cst_121 : f32 to vector<16x128xf32>
    %430 = arith.mulf %429, %428 : vector<16x128xf32>
    %431 = arith.subf %422, %430 : vector<16x128xf32>
    %432 = arith.mulf %428, %431 : vector<16x128xf32>
    %433 = arith.mulf %432, %426 : vector<16x128xf32>
    %434 = arith.addf %326, %433 : vector<16x128xf32>
    %435 = arith.addf %327, %426 : vector<16x128xf32>
    %436 = arith.addf %328, %415 : vector<16x128xf32>
    %cst_122 = arith.constant 6.250000e-02 : f32
    %437 = vector.broadcast %cst_122 : f32 to vector<16x128xf32>
    %438 = arith.mulf %436, %437 : vector<16x128xf32>
    %c0_123 = arith.constant 0 : index
    %439 = arith.index_cast %5 : i32 to index
    %c0_124 = arith.constant 0 : index
    %440 = vector.load %arg5[%c0_123, %439, %c0_124] : memref<1x16x128xf32, #tpu.memory_space<vmem>>, vector<1x16x128xf32>
    %441 = vector.shape_cast %440 : vector<1x16x128xf32> to vector<16x128xf32>
    %442 = arith.subf %441, %438 : vector<16x128xf32>
    %443 = math.absf %442 : vector<16x128xf32>
    %cst_125 = arith.constant 1.920000e+02 : f32
    %444 = vector.broadcast %cst_125 : f32 to vector<16x128xf32>
    %445 = arith.cmpf olt, %438, %444 : vector<16x128xf32>
    %446 = arith.extui %445 : vector<16x128xi1> to vector<16x128xi32>
    %447 = arith.sitofp %446 : vector<16x128xi32> to vector<16x128xf32>
    %cst_126 = arith.constant 1.000000e+00 : f32
    %448 = vector.broadcast %cst_126 : f32 to vector<16x128xf32>
    %449 = arith.minimumf %443, %448 : vector<16x128xf32>
    %cst_127 = arith.constant 5.000000e-01 : f32
    %450 = vector.broadcast %cst_127 : f32 to vector<16x128xf32>
    %451 = arith.mulf %450, %449 : vector<16x128xf32>
    %452 = arith.subf %443, %451 : vector<16x128xf32>
    %453 = arith.mulf %449, %452 : vector<16x128xf32>
    %454 = arith.mulf %453, %447 : vector<16x128xf32>
    %455 = arith.addf %3, %454 : vector<16x128xf32>
    %456 = arith.addf %3, %447 : vector<16x128xf32>
    %c1_i32 = arith.constant 1 : i32
    %c0_128 = arith.constant 0 : index
    %c0_129 = arith.constant 0 : index
    %c0_130 = arith.constant 0 : index
    %c0_131 = arith.constant 0 : index
    %457 = vector.load %arg6[%c0_128, %c0_129, %c0_130, %c0_131] : memref<1x3x16x128xf32, #tpu.memory_space<vmem>>, vector<1x1x16x128xf32>
    %458 = vector.shape_cast %457 : vector<1x1x16x128xf32> to vector<16x128xf32>
    %459 = arith.addf %458, %413 : vector<16x128xf32>
    %c0_132 = arith.constant 0 : index
    %c0_133 = arith.constant 0 : index
    %c0_134 = arith.constant 0 : index
    %c0_135 = arith.constant 0 : index
    %460 = vector.load %arg6[%c0_132, %c0_133, %c0_134, %c0_135] : memref<1x3x16x128xf32, #tpu.memory_space<vmem>>, vector<1x1x16x128xf32>
    %461 = vector.shape_cast %460 : vector<1x1x16x128xf32> to vector<16x128xf32>
    %462 = vector.shape_cast %459 : vector<16x128xf32> to vector<1x1x16x128xf32>
    tpu.vector_store %arg6[%c0_132, %c0_133, %c0_134, %c0_135], %462 {strides = array<i32>} : memref<1x3x16x128xf32, #tpu.memory_space<vmem>>, vector<1x1x16x128xf32>,
    %c0_136 = arith.constant 0 : index
    %c0_137 = arith.constant 0 : index
    %c0_138 = arith.constant 0 : index
    %c0_139 = arith.constant 0 : index
    %463 = vector.load %arg7[%c0_136, %c0_137, %c0_138, %c0_139] : memref<1x3x16x128xf32, #tpu.memory_space<vmem>>, vector<1x1x16x128xf32>
    %464 = vector.shape_cast %463 : vector<1x1x16x128xf32> to vector<16x128xf32>
    %465 = arith.addf %464, %414 : vector<16x128xf32>
    %c0_140 = arith.constant 0 : index
    %c0_141 = arith.constant 0 : index
    %c0_142 = arith.constant 0 : index
    %c0_143 = arith.constant 0 : index
    %466 = vector.load %arg7[%c0_140, %c0_141, %c0_142, %c0_143] : memref<1x3x16x128xf32, #tpu.memory_space<vmem>>, vector<1x1x16x128xf32>
    %467 = vector.shape_cast %466 : vector<1x1x16x128xf32> to vector<16x128xf32>
    %468 = vector.shape_cast %465 : vector<16x128xf32> to vector<1x1x16x128xf32>
    tpu.vector_store %arg7[%c0_140, %c0_141, %c0_142, %c0_143], %468 {strides = array<i32>} : memref<1x3x16x128xf32, #tpu.memory_space<vmem>>, vector<1x1x16x128xf32>,
    %c0_144 = arith.constant 0 : index
    %c1_145 = arith.constant 1 : index
    %c0_146 = arith.constant 0 : index
    %c0_147 = arith.constant 0 : index
    %469 = vector.load %arg6[%c0_144, %c1_145, %c0_146, %c0_147] : memref<1x3x16x128xf32, #tpu.memory_space<vmem>>, vector<1x1x16x128xf32>
    %470 = vector.shape_cast %469 : vector<1x1x16x128xf32> to vector<16x128xf32>
    %471 = arith.addf %470, %434 : vector<16x128xf32>
    %c0_148 = arith.constant 0 : index
    %c1_149 = arith.constant 1 : index
    %c0_150 = arith.constant 0 : index
    %c0_151 = arith.constant 0 : index
    %472 = vector.load %arg6[%c0_148, %c1_149, %c0_150, %c0_151] : memref<1x3x16x128xf32, #tpu.memory_space<vmem>>, vector<1x1x16x128xf32>
    %473 = vector.shape_cast %472 : vector<1x1x16x128xf32> to vector<16x128xf32>
    %474 = vector.shape_cast %471 : vector<16x128xf32> to vector<1x1x16x128xf32>
    tpu.vector_store %arg6[%c0_148, %c1_149, %c0_150, %c0_151], %474 {strides = array<i32>} : memref<1x3x16x128xf32, #tpu.memory_space<vmem>>, vector<1x1x16x128xf32>,
    %c0_152 = arith.constant 0 : index
    %c1_153 = arith.constant 1 : index
    %c0_154 = arith.constant 0 : index
    %c0_155 = arith.constant 0 : index
    %475 = vector.load %arg7[%c0_152, %c1_153, %c0_154, %c0_155] : memref<1x3x16x128xf32, #tpu.memory_space<vmem>>, vector<1x1x16x128xf32>
    %476 = vector.shape_cast %475 : vector<1x1x16x128xf32> to vector<16x128xf32>
    %477 = arith.addf %476, %435 : vector<16x128xf32>
    %c0_156 = arith.constant 0 : index
    %c1_157 = arith.constant 1 : index
    %c0_158 = arith.constant 0 : index
    %c0_159 = arith.constant 0 : index
    %478 = vector.load %arg7[%c0_156, %c1_157, %c0_158, %c0_159] : memref<1x3x16x128xf32, #tpu.memory_space<vmem>>, vector<1x1x16x128xf32>
    %479 = vector.shape_cast %478 : vector<1x1x16x128xf32> to vector<16x128xf32>
    %480 = vector.shape_cast %477 : vector<16x128xf32> to vector<1x1x16x128xf32>
    tpu.vector_store %arg7[%c0_156, %c1_157, %c0_158, %c0_159], %480 {strides = array<i32>} : memref<1x3x16x128xf32, #tpu.memory_space<vmem>>, vector<1x1x16x128xf32>,
    %c0_160 = arith.constant 0 : index
    %c2_161 = arith.constant 2 : index
    %c0_162 = arith.constant 0 : index
    %c0_163 = arith.constant 0 : index
    %481 = vector.load %arg6[%c0_160, %c2_161, %c0_162, %c0_163] : memref<1x3x16x128xf32, #tpu.memory_space<vmem>>, vector<1x1x16x128xf32>
    %482 = vector.shape_cast %481 : vector<1x1x16x128xf32> to vector<16x128xf32>
    %483 = arith.addf %482, %455 : vector<16x128xf32>
    %c0_164 = arith.constant 0 : index
    %c2_165 = arith.constant 2 : index
    %c0_166 = arith.constant 0 : index
    %c0_167 = arith.constant 0 : index
    %484 = vector.load %arg6[%c0_164, %c2_165, %c0_166, %c0_167] : memref<1x3x16x128xf32, #tpu.memory_space<vmem>>, vector<1x1x16x128xf32>
    %485 = vector.shape_cast %484 : vector<1x1x16x128xf32> to vector<16x128xf32>
    %486 = vector.shape_cast %483 : vector<16x128xf32> to vector<1x1x16x128xf32>
    tpu.vector_store %arg6[%c0_164, %c2_165, %c0_166, %c0_167], %486 {strides = array<i32>} : memref<1x3x16x128xf32, #tpu.memory_space<vmem>>, vector<1x1x16x128xf32>,
    %c0_168 = arith.constant 0 : index
    %c2_169 = arith.constant 2 : index
    %c0_170 = arith.constant 0 : index
    %c0_171 = arith.constant 0 : index
    %487 = vector.load %arg7[%c0_168, %c2_169, %c0_170, %c0_171] : memref<1x3x16x128xf32, #tpu.memory_space<vmem>>, vector<1x1x16x128xf32>
    %488 = vector.shape_cast %487 : vector<1x1x16x128xf32> to vector<16x128xf32>
    %489 = arith.addf %488, %456 : vector<16x128xf32>
    %c0_172 = arith.constant 0 : index
    %c2_173 = arith.constant 2 : index
    %c0_174 = arith.constant 0 : index
    %c0_175 = arith.constant 0 : index
    %490 = vector.load %arg7[%c0_172, %c2_173, %c0_174, %c0_175] : memref<1x3x16x128xf32, #tpu.memory_space<vmem>>, vector<1x1x16x128xf32>
    %491 = vector.shape_cast %490 : vector<1x1x16x128xf32> to vector<16x128xf32>
    %492 = vector.shape_cast %489 : vector<16x128xf32> to vector<1x1x16x128xf32>
    tpu.vector_store %arg7[%c0_172, %c2_173, %c0_174, %c0_175], %492 {strides = array<i32>} : memref<1x3x16x128xf32, #tpu.memory_space<vmem>>, vector<1x1x16x128xf32>,
    return
  }
  func.func @transform_0(%arg0: i32, %arg1: i32) -> (i32, i32, i32) {
    %c1_i32 = arith.constant 1 : i32
    %0 = arith.muli %arg0, %c1_i32 : i32
    %1 = arith.addi %0, %arg1 : i32
    %c0_i32 = arith.constant 0 : i32
    %c0_i32_0 = arith.constant 0 : i32
    %c0_i32_1 = arith.constant 0 : i32
    return %c0_i32, %1, %c0_i32_0 : i32, i32, i32
  }
  func.func @transform_1(%arg0: i32, %arg1: i32) -> (i32, i32, i32) {
    %c1_i32 = arith.constant 1 : i32
    %0 = arith.muli %arg0, %c1_i32 : i32
    %1 = arith.addi %0, %arg1 : i32
    %c0_i32 = arith.constant 0 : i32
    %c0_i32_0 = arith.constant 0 : i32
    %c0_i32_1 = arith.constant 0 : i32
    return %c0_i32, %1, %c0_i32_0 : i32, i32, i32
  }
  func.func @transform_2(%arg0: i32, %arg1: i32) -> (i32, i32, i32) {
    %c1_i32 = arith.constant 1 : i32
    %0 = arith.muli %arg0, %c1_i32 : i32
    %1 = arith.addi %0, %arg1 : i32
    %c0_i32 = arith.constant 0 : i32
    %c0_i32_0 = arith.constant 0 : i32
    %c0_i32_1 = arith.constant 0 : i32
    return %c0_i32, %1, %c0_i32_0 : i32, i32, i32
  }
  func.func @transform_3(%arg0: i32, %arg1: i32) -> (i32, i32, i32) {
    %c1_i32 = arith.constant 1 : i32
    %0 = arith.muli %arg0, %c1_i32 : i32
    %1 = arith.addi %0, %arg1 : i32
    %c0_i32 = arith.constant 0 : i32
    %c0_i32_0 = arith.constant 0 : i32
    %c0_i32_1 = arith.constant 0 : i32
    return %c0_i32, %1, %c0_i32_0 : i32, i32, i32
  }
  func.func @transform_4(%arg0: i32, %arg1: i32) -> (i32, i32, i32, i32) {
    %c0_i32 = arith.constant 0 : i32
    %c0_i32_0 = arith.constant 0 : i32
    %c0_i32_1 = arith.constant 0 : i32
    %c0_i32_2 = arith.constant 0 : i32
    return %arg0, %c0_i32, %c0_i32_0, %c0_i32_1 : i32, i32, i32, i32
  }
  func.func @transform_5(%arg0: i32, %arg1: i32) -> (i32, i32, i32, i32) {
    %c0_i32 = arith.constant 0 : i32
    %c0_i32_0 = arith.constant 0 : i32
    %c0_i32_1 = arith.constant 0 : i32
    %c0_i32_2 = arith.constant 0 : i32
    return %arg0, %c0_i32, %c0_i32_0, %c0_i32_1 : i32, i32, i32, i32
  }
}

</mosaic_0001>

<llo_original>
// kernel: _multiscale_loss_sums.2
$region0: #{_multiscale_loss_sums.2}
  #allocation0 [shape = 'u32[]', space=smem, size = 0x4, offset = 0x4, fixed_abs, tag = 'smem constant byte address 0x4 - core index']
  #allocation1 [shape = 'u32[72,128]{1,0:T(1,128)}', space=vmem, size = 0x9000, scoped, tag = 'internal scratch']
  %s0 = inlined_call_operand.vmem [shape: f32[16,16,128], index: 0, kind: input, shape index: {}]
  %s1 = inlined_call_operand.vmem [shape: f32[16,16,128], index: 1, kind: input, shape index: {}]
  %s2 = inlined_call_operand.vmem [shape: f32[1,16,128], index: 2, kind: input, shape index: {}]
  %s3 = inlined_call_operand.vmem [shape: f32[1,4,16,128], index: 3, kind: input, shape index: {}]
  %s4 = inlined_call_operand.vmem [shape: f32[1,3,16,128], index: 4, kind: output, shape index: {0}]
  %s5 = inlined_call_operand.vmem [shape: f32[1,3,16,128], index: 5, kind: output, shape index: {1}]
  %6 = xla_tuple %s4, %s5
  %s7 = sld [smem:[#allocation0]]
  $region38: #{_multiscale_loss_sums.2} parent=0
    _
  %s9 = ssub.s32 1, %s7
  %s10 = scalar_select 0, %s9, %s7
  $region1: #{_multiscale_loss_sums.2} parent=0
    #allocation2 [shape = 'u8[32768]{0}', space=vmem, size = 0x8000, dematerialized = true, scoped, tag = 'FusionAdapter Buffer %fusion.1 = f32[4,16,128]{2,1,0:T(8,128)} fusion(%param_3.1), kind=kLoop, calls=%fused_computation.3.clone, metadata={op_name="jit(_multiscale_loss_sums)/reshape" stack_frame_id=26}']
    // Predicated region
    $region2: #{_multiscale_loss_sums.2} parent=1 // pred_check
      _
    $region3: #{_multiscale_loss_sums.2} parent=1 // pred_check_branch
      %12 = sbr.rel (0) target = $region5
    $region4: #{_multiscale_loss_sums.2} parent=1 // pred_region
      %s13 = sadd.s32 0, 0
      %s14 = smul.u32 2, %s13
      %p15 = scmp.lt.s32.totalorder %s14, 1
      %s16 = scalar_select %p15, %s14, 1
      %s17 = smul.addr %s16, 8
      %s18 = scalar_lea.vmem %s0, %s17
      %s19 = sadd.s32 0, 0
      %s20 = smul.u32 2, %s19
    $region5: #{_multiscale_loss_sums.2} parent=1 // pred_fallthru
      _
    // Predicated region
    $region6: #{_multiscale_loss_sums.2} parent=1 // pred_check
      _
    $region7: #{_multiscale_loss_sums.2} parent=1 // pred_check_branch
      %22 = sbr.rel (0) target = $region9
    $region8: #{_multiscale_loss_sums.2} parent=1 // pred_region
      %s23 = sadd.s32 0, 0
      %s24 = smul.u32 2, %s23
      %p25 = scmp.lt.s32.totalorder %s24, 1
      %s26 = scalar_select %p25, %s24, 1
      %s27 = smul.addr %s26, 8
      %s28 = scalar_lea.vmem %s1, %s27
      %s29 = sadd.s32 0, 0
      %s30 = smul.u32 2, %s29
    $region9: #{_multiscale_loss_sums.2} parent=1 // pred_fallthru
      _
    // Predicated region
    $region10: #{_multiscale_loss_sums.2} parent=1 // pred_check
      _
    $region11: #{_multiscale_loss_sums.2} parent=1 // pred_check_branch
      %32 = sbr.rel (0) target = $region13
    $region12: #{_multiscale_loss_sums.2} parent=1 // pred_region
      %s33 = sadd.s32 0, 0
      %s34 = smul.u32 2, %s33
      %p35 = scmp.lt.s32.totalorder %s34, 1
      %s36 = scalar_select %p35, %s34, 1
      %s37 = smul.addr %s36, 8
      %s38 = scalar_lea.vmem %s3, %s37
      %s39 = sadd.s32 0, 0
      %s40 = smul.u32 2, %s39
    $region13: #{_multiscale_loss_sums.2} parent=1 // pred_fallthru
      _
    // Predicated region
    $region14: #{_multiscale_loss_sums.2} parent=1 // pred_check
      _
    $region15: #{_multiscale_loss_sums.2} parent=1 // pred_check_branch
      %42 = sbr.rel (0) target = $region17
    $region16: #{_multiscale_loss_sums.2} parent=1 // pred_region
      %s43 = sadd.s32 0, 0
      %s44 = smul.u32 2, %s43
      %p45 = scmp.lt.s32.totalorder %s44, 1
      %s46 = scalar_select %p45, %s44, 1
      %s47 = smul.addr %s46, 8
      %s48 = scalar_lea.vmem %s2, %s47
      %s49 = sadd.s32 0, 0
      %s50 = smul.u32 2, %s49
    $region17: #{_multiscale_loss_sums.2} parent=1 // pred_fallthru
      _
    %s51 = sadd.s32 0, 0
    %s52 = smul.u32 2, %s51
    %p53 = scmp.lt.s32.totalorder %s52, 1
    %s54 = scalar_select %p53, %s52, 1
    %s55 = smul.addr %s54, 8
    %s56 = scalar_lea.vmem %s0, %s55
    %s57 = sadd.s32 0, 0
    %s58 = smul.u32 2, %s57
    %p59 = scmp.lt.s32.totalorder %s58, 1
    %s60 = scalar_select %p59, %s58, 1
    %s61 = smul.addr %s60, 8
    %s62 = scalar_lea.vmem %s1, %s61
    %s63 = sadd.s32 0, 0
    %s64 = smul.u32 2, %s63
    %p65 = scmp.lt.s32.totalorder %s64, 1
    %s66 = scalar_select %p65, %s64, 1
    %s67 = smul.addr %s66, 8
    %s68 = scalar_lea.vmem %s3, %s67
    %s69 = sadd.s32 0, 0
    %s70 = smul.u32 2, %s69
    %p71 = scmp.lt.s32.totalorder %s70, 1
    %s72 = scalar_select %p71, %s70, 1
    %s73 = smul.addr %s72, 8
    %s74 = scalar_lea.vmem %s2, %s73
    %s75 = sadd.s32 0, 0
    %s76 = smul.u32 2, %s75
    %p77 = scmp.lt.s32.totalorder %s76, 1
    %s78 = scalar_select %p77, %s76, 1
    %s79 = smul.addr %s78, 8
    %s80 = scalar_lea.vmem %s0, %s79
    %s81 = sadd.s32 0, 0
    %s82 = smul.u32 2, %s81
    %s83 = sadd.s32 0, 0
    %s84 = smul.u32 2, %s83
    %p85 = scmp.lt.s32.totalorder %s84, 1
    %s86 = scalar_select %p85, %s84, 1
    %s87 = smul.addr %s86, 8
    %s88 = scalar_lea.vmem %s1, %s87
    %s89 = sadd.s32 0, 0
    %s90 = smul.u32 2, %s89
    %s91 = sadd.s32 0, 0
    %s92 = smul.u32 2, %s91
    %p93 = scmp.lt.s32.totalorder %s92, 1
    %s94 = scalar_select %p93, %s92, 1
    %s95 = smul.addr %s94, 8
    %s96 = scalar_lea.vmem %s3, %s95
    %s97 = sadd.s32 0, 0
    %s98 = smul.u32 2, %s97
    %s99 = sadd.s32 0, 0
    %s100 = smul.u32 2, %s99
    %p101 = scmp.lt.s32.totalorder %s100, 1
    %s102 = scalar_select %p101, %s100, 1
    %s103 = smul.addr %s102, 8
    %s104 = scalar_lea.vmem %s2, %s103
    %s105 = sadd.s32 0, 0
    %s106 = smul.u32 2, %s105
    %v107 = vld [vmem:[%s96] sm:$0xff]
    %s109 = ssub.s32 256, 1
    %110 = vst [vmem:[#allocation2] sm:%s109] %v107
    %s111 = scalar_lea.vmem %s96, 8
    %v112 = vld [vmem:[%s111] sm:$0xff]
    %s113 = scalar_lea.vmem [#allocation2], 8
    %s115 = ssub.s32 256, 1
    %116 = vst [vmem:[%s113] sm:%s115] %v112
    %s117 = scalar_lea.vmem %s96, 16
    %v118 = vld [vmem:[%s117] sm:$0xff]
    %s119 = scalar_lea.vmem [#allocation2], 16
    %s121 = ssub.s32 256, 1
    %122 = vst [vmem:[%s119] sm:%s121] %v118
    %s123 = scalar_lea.vmem %s96, 24
    %v124 = vld [vmem:[%s123] sm:$0xff]
    %s125 = scalar_lea.vmem [#allocation2], 24
    %s127 = ssub.s32 256, 1
    %128 = vst [vmem:[%s125] sm:%s127] %v124
    %s129 = scalar_lea.vmem %s96, 32
    %v130 = vld [vmem:[%s129] sm:$0xff]
    %s131 = scalar_lea.vmem [#allocation2], 32
    %s133 = ssub.s32 256, 1
    %134 = vst [vmem:[%s131] sm:%s133] %v130
    %s135 = scalar_lea.vmem %s96, 40
    %v136 = vld [vmem:[%s135] sm:$0xff]
    %s137 = scalar_lea.vmem [#allocation2], 40
    %s139 = ssub.s32 256, 1
    %140 = vst [vmem:[%s137] sm:%s139] %v136
    %s141 = scalar_lea.vmem %s96, 48
    %v142 = vld [vmem:[%s141] sm:$0xff]
    %s143 = scalar_lea.vmem [#allocation2], 48
    %s145 = ssub.s32 256, 1
    %146 = vst [vmem:[%s143] sm:%s145] %v142
    %s147 = scalar_lea.vmem %s96, 56
    %v148 = vld [vmem:[%s147] sm:$0xff]
    %s149 = scalar_lea.vmem [#allocation2], 56
    %s151 = ssub.s32 256, 1
    %152 = vst [vmem:[%s149] sm:%s151] %v148
    %p153 = scmp.eq.s32.totalorder 0, 0
    // Predicated region
    $region18: #{_multiscale_loss_sums.2} parent=1 // pred_check
      %p154 = pneg %p153
    $region19: #{_multiscale_loss_sums.2} parent=1 // pred_check_branch
      %156 = sbr.rel (%p154) target = $region21
    $region20: #{_multiscale_loss_sums.2} parent=1 // pred_region
      %157 = vst [vmem:[%s4] sm:$0xff] 0.0
      %158 = vst [vmem:[%s4 + $0x8] sm:$0xff] 0.0
      %159 = vst [vmem:[%s4 + $0x10] sm:$0xff] 0.0
      %160 = vst [vmem:[%s4 + $0x18] sm:$0xff] 0.0
      %161 = vst [vmem:[%s4 + $0x20] sm:$0xff] 0.0
      %162 = vst [vmem:[%s4 + $0x28] sm:$0xff] 0.0
      %163 = vst [vmem:[%s5] sm:$0xff] 0.0
      %164 = vst [vmem:[%s5 + $0x8] sm:$0xff] 0.0
      %165 = vst [vmem:[%s5 + $0x10] sm:$0xff] 0.0
      %166 = vst [vmem:[%s5 + $0x18] sm:$0xff] 0.0
      %167 = vst [vmem:[%s5 + $0x20] sm:$0xff] 0.0
      %168 = vst [vmem:[%s5 + $0x28] sm:$0xff] 0.0
    $region21: #{_multiscale_loss_sums.2} parent=1 // pred_fallthru
      _
    %v169 = vld [vmem:[%s80] sm:$0xff]
    %v170 = vld [vmem:[%s80 + $0x8] sm:$0xff]
    %v171 = vld [vmem:[%s88] sm:$0xff]
    %v172 = vld [vmem:[%s88 + $0x8] sm:$0xff]
    %v173 = vsub.f32 %v171, %v169
    %v174 = vsub.f32 %v172, %v170
    %v175 = vand.u32 2147483647, %v173
    %v176 = vand.u32 2147483647, %v174
    %vm177 = vcmp.lt.f32.partialorder %v169, 192.0
    %vm178 = vcmp.lt.f32.partialorder %v170, 192.0
    %v179 = vsel %vm177, 1, 0
    %v180 = vsel %vm178, 1, 0
    %v181 = vcvt.s32.f32 %v179
    %v182 = vcvt.s32.f32 %v180
    %v183 = vmin.f32 %v175, 1.0
    %v184 = vmin.f32 %v176, 1.0
    %v185 = vmul.f32 %v183, 0.5
    %v186 = vmul.f32 %v184, 0.5
    %v187 = vsub.f32 %v175, %v185
    %v188 = vsub.f32 %v176, %v186
    %v189 = vmul.f32 %v183, %v187
    %v190 = vmul.f32 %v184, %v188
    %v191 = vmul.f32 %v189, %v181
    %v192 = vmul.f32 %v190, %v182
    %v193 = vadd.f32 %v191, 0.0
    %v194 = vadd.f32 %v192, 0.0
    %v195 = vadd.f32 %v181, 0.0
    %v196 = vadd.f32 %v182, 0.0
    %s197 = sadd.s32 0, 16
    %s198 = scalar_lea.vmem %s80, %s197
    %v199 = vld [vmem:[%s198] sm:$0xff]
    %v200 = vld [vmem:[%s198 + $0x8] sm:$0xff]
    %s201 = scalar_lea.vmem %s88, %s197
    %v202 = vld [vmem:[%s201] sm:$0xff]
    %v203 = vld [vmem:[%s201 + $0x8] sm:$0xff]
    %v204 = vsub.f32 %v202, %v199
    %v205 = vsub.f32 %v203, %v200
    %v206 = vand.u32 2147483647, %v204
    %v207 = vand.u32 2147483647, %v205
    %vm208 = vcmp.lt.f32.partialorder %v199, 192.0
    %vm209 = vcmp.lt.f32.partialorder %v200, 192.0
    %v210 = vsel %vm208, 1, 0
    %v211 = vsel %vm209, 1, 0
    %v212 = vcvt.s32.f32 %v210
    %v213 = vcvt.s32.f32 %v211
    %v214 = vmin.f32 %v206, 1.0
    %v215 = vmin.f32 %v207, 1.0
    %v216 = vmul.f32 %v214, 0.5
    %v217 = vmul.f32 %v215, 0.5
    %v218 = vsub.f32 %v206, %v216
    %v219 = vsub.f32 %v207, %v217
    %v220 = vmul.f32 %v214, %v218
    %v221 = vmul.f32 %v215, %v219
    %v222 = vmul.f32 %v220, %v212
    %v223 = vmul.f32 %v221, %v213
    %v224 = vadd.f32 %v193, %v222
    %v225 = vadd.f32 %v194, %v223
    %v226 = vadd.f32 %v195, %v212
    %v227 = vadd.f32 %v196, %v213
    %v228 = vadd.f32 %v169, %v199
    %v229 = vadd.f32 %v170, %v200
    %s230 = sadd.s32 0, 64
    %s231 = scalar_lea.vmem %s80, %s230
    %v232 = vld [vmem:[%s231] sm:$0xff]
    %v233 = vld [vmem:[%s231 + $0x8] sm:$0xff]
    %s234 = scalar_lea.vmem %s88, %s230
    %v235 = vld [vmem:[%s234] sm:$0xff]
    %v236 = vld [vmem:[%s234 + $0x8] sm:$0xff]
    %v237 = vsub.f32 %v235, %v232
    %v238 = vsub.f32 %v236, %v233
    %v239 = vand.u32 2147483647, %v237
    %v240 = vand.u32 2147483647, %v238
    %vm241 = vcmp.lt.f32.partialorder %v232, 192.0
    %vm242 = vcmp.lt.f32.partialorder %v233, 192.0
    %v243 = vsel %vm241, 1, 0
    %v244 = vsel %vm242, 1, 0
    %v245 = vcvt.s32.f32 %v243
    %v246 = vcvt.s32.f32 %v244
    %v247 = vmin.f32 %v239, 1.0
    %v248 = vmin.f32 %v240, 1.0
    %v249 = vmul.f32 %v247, 0.5
    %v250 = vmul.f32 %v248, 0.5
    %v251 = vsub.f32 %v239, %v249
    %v252 = vsub.f32 %v240, %v250
    %v253 = vmul.f32 %v247, %v251
    %v254 = vmul.f32 %v248, %v252
    %v255 = vmul.f32 %v253, %v245
    %v256 = vmul.f32 %v254, %v246
    %v257 = vadd.f32 %v224, %v255
    %v258 = vadd.f32 %v225, %v256
    %v259 = vadd.f32 %v226, %v245
    %v260 = vadd.f32 %v227, %v246
    %v261 = vadd.f32 %v228, %v232
    %v262 = vadd.f32 %v229, %v233
    %s263 = sadd.s32 0, 80
    %s264 = scalar_lea.vmem %s80, %s263
    %v265 = vld [vmem:[%s264] sm:$0xff]
    %v266 = vld [vmem:[%s264 + $0x8] sm:$0xff]
    %s267 = scalar_lea.vmem %s88, %s263
    %v268 = vld [vmem:[%s267] sm:$0xff]
    %v269 = vld [vmem:[%s267 + $0x8] sm:$0xff]
    %v270 = vsub.f32 %v268, %v265
    %v271 = vsub.f32 %v269, %v266
    %v272 = vand.u32 2147483647, %v270
    %v273 = vand.u32 2147483647, %v271
    %vm274 = vcmp.lt.f32.partialorder %v265, 192.0
    %vm275 = vcmp.lt.f32.partialorder %v266, 192.0
    %v276 = vsel %vm274, 1, 0
    %v277 = vsel %vm275, 1, 0
    %v278 = vcvt.s32.f32 %v276
    %v279 = vcvt.s32.f32 %v277
    %v280 = vmin.f32 %v272, 1.0
    %v281 = vmin.f32 %v273, 1.0
    %v282 = vmul.f32 %v280, 0.5
    %v283 = vmul.f32 %v281, 0.5
    %v284 = vsub.f32 %v272, %v282
    %v285 = vsub.f32 %v273, %v283
    %v286 = vmul.f32 %v280, %v284
    %v287 = vmul.f32 %v281, %v285
    %v288 = vmul.f32 %v286, %v278
    %v289 = vmul.f32 %v287, %v279
    %v290 = vadd.f32 %v257, %v288
    %v291 = vadd.f32 %v258, %v289
    %v292 = vadd.f32 %v259, %v278
    %v293 = vadd.f32 %v260, %v279
    %v294 = vadd.f32 %v261, %v265
    %v295 = vadd.f32 %v262, %v266
    %v296 = vmul.f32 %v294, 0.25
    %v297 = vmul.f32 %v295, 0.25
    %v298 = vld [vmem:[#allocation2] sm:$0xff]
    %v299 = vld [vmem:[#allocation2 + $0x8] sm:$0xff]
    %v300 = vsub.f32 %v298, %v296
    %v301 = vsub.f32 %v299, %v297
    %v302 = vand.u32 2147483647, %v300
    %v303 = vand.u32 2147483647, %v301
    %vm304 = vcmp.lt.f32.partialorder %v296, 192.0
    %vm305 = vcmp.lt.f32.partialorder %v297, 192.0
    %v306 = vsel %vm304, 1, 0
    %v307 = vsel %vm305, 1, 0
    %v308 = vcvt.s32.f32 %v306
    %v309 = vcvt.s32.f32 %v307
    %v310 = vmin.f32 %v302, 1.0
    %v311 = vmin.f32 %v303, 1.0
    %v312 = vmul.f32 %v310, 0.5
    %v313 = vmul.f32 %v311, 0.5
    %v314 = vsub.f32 %v302, %v312
    %v315 = vsub.f32 %v303, %v313
    %v316 = vmul.f32 %v310, %v314
    %v317 = vmul.f32 %v311, %v315
    %v318 = vmul.f32 %v316, %v308
    %v319 = vmul.f32 %v317, %v309
    %v320 = vadd.f32 %v318, 0.0
    %v321 = vadd.f32 %v319, 0.0
    %v322 = vadd.f32 %v308, 0.0
    %v323 = vadd.f32 %v309, 0.0
    %s324 = sadd.s32 0, 32
    %s325 = scalar_lea.vmem %s80, %s324
    %v326 = vld [vmem:[%s325] sm:$0xff]
    %v327 = vld [vmem:[%s325 + $0x8] sm:$0xff]
    %s328 = scalar_lea.vmem %s88, %s324
    %v329 = vld [vmem:[%s328] sm:$0xff]
    %v330 = vld [vmem:[%s328 + $0x8] sm:$0xff]
    %v331 = vsub.f32 %v329, %v326
    %v332 = vsub.f32 %v330, %v327
    %v333 = vand.u32 2147483647, %v331
    %v334 = vand.u32 2147483647, %v332
    %vm335 = vcmp.lt.f32.partialorder %v326, 192.0
    %vm336 = vcmp.lt.f32.partialorder %v327, 192.0
    %v337 = vsel %vm335, 1, 0
    %v338 = vsel %vm336, 1, 0
    %v339 = vcvt.s32.f32 %v337
    %v340 = vcvt.s32.f32 %v338
    %v341 = vmin.f32 %v333, 1.0
    %v342 = vmin.f32 %v334, 1.0
    %v343 = vmul.f32 %v341, 0.5
    %v344 = vmul.f32 %v342, 0.5
    %v345 = vsub.f32 %v333, %v343
    %v346 = vsub.f32 %v334, %v344
    %v347 = vmul.f32 %v341, %v345
    %v348 = vmul.f32 %v342, %v346
    %v349 = vmul.f32 %v347, %v339
    %v350 = vmul.f32 %v348, %v340
    %v351 = vadd.f32 %v290, %v349
    %v352 = vadd.f32 %v291, %v350
    %v353 = vadd.f32 %v292, %v339
    %v354 = vadd.f32 %v293, %v340
    %s355 = sadd.s32 0, 48
    %s356 = scalar_lea.vmem %s80, %s355
    %v357 = vld [vmem:[%s356] sm:$0xff]
    %v358 = vld [vmem:[%s356 + $0x8] sm:$0xff]
    %s359 = scalar_lea.vmem %s88, %s355
    %v360 = vld [vmem:[%s359] sm:$0xff]
    %v361 = vld [vmem:[%s359 + $0x8] sm:$0xff]
    %v362 = vsub.f32 %v360, %v357
    %v363 = vsub.f32 %v361, %v358
    %v364 = vand.u32 2147483647, %v362
    %v365 = vand.u32 2147483647, %v363
    %vm366 = vcmp.lt.f32.partialorder %v357, 192.0
    %vm367 = vcmp.lt.f32.partialorder %v358, 192.0
    %v368 = vsel %vm366, 1, 0
    %v369 = vsel %vm367, 1, 0
    %v370 = vcvt.s32.f32 %v368
    %v371 = vcvt.s32.f32 %v369
    %v372 = vmin.f32 %v364, 1.0
    %v373 = vmin.f32 %v365, 1.0
    %v374 = vmul.f32 %v372, 0.5
    %v375 = vmul.f32 %v373, 0.5
    %v376 = vsub.f32 %v364, %v374
    %v377 = vsub.f32 %v365, %v375
    %v378 = vmul.f32 %v372, %v376
    %v379 = vmul.f32 %v373, %v377
    %v380 = vmul.f32 %v378, %v370
    %v381 = vmul.f32 %v379, %v371
    %v382 = vadd.f32 %v351, %v380
    %v383 = vadd.f32 %v352, %v381
    %v384 = vadd.f32 %v353, %v370
    %v385 = vadd.f32 %v354, %v371
    %v386 = vadd.f32 %v326, %v357
    %v387 = vadd.f32 %v327, %v358
    %s388 = sadd.s32 0, 96
    %s389 = scalar_lea.vmem %s80, %s388
    %v390 = vld [vmem:[%s389] sm:$0xff]
    %v391 = vld [vmem:[%s389 + $0x8] sm:$0xff]
    %s392 = scalar_lea.vmem %s88, %s388
    %v393 = vld [vmem:[%s392] sm:$0xff]
    %v394 = vld [vmem:[%s392 + $0x8] sm:$0xff]
    %v395 = vsub.f32 %v393, %v390
    %v396 = vsub.f32 %v394, %v391
    %v397 = vand.u32 2147483647, %v395
    %v398 = vand.u32 2147483647, %v396
    %vm399 = vcmp.lt.f32.partialorder %v390, 192.0
    %vm400 = vcmp.lt.f32.partialorder %v391, 192.0
    %v401 = vsel %vm399, 1, 0
    %v402 = vsel %vm400, 1, 0
    %v403 = vcvt.s32.f32 %v401
    %v404 = vcvt.s32.f32 %v402
    %v405 = vmin.f32 %v397, 1.0
    %v406 = vmin.f32 %v398, 1.0
    %v407 = vmul.f32 %v405, 0.5
    %v408 = vmul.f32 %v406, 0.5
    %v409 = vsub.f32 %v397, %v407
    %v410 = vsub.f32 %v398, %v408
    %v411 = vmul.f32 %v405, %v409
    %v412 = vmul.f32 %v406, %v410
    %v413 = vmul.f32 %v411, %v403
    %v414 = vmul.f32 %v412, %v404
    %v415 = vadd.f32 %v382, %v413
    %v416 = vadd.f32 %v383, %v414
    %v417 = vadd.f32 %v384, %v403
    %v418 = vadd.f32 %v385, %v404
    %v419 = vadd.f32 %v386, %v390
    %v420 = vadd.f32 %v387, %v391
    %s421 = sadd.s32 0, 112
    %s422 = scalar_lea.vmem %s80, %s421
    %v423 = vld [vmem:[%s422] sm:$0xff]
    %v424 = vld [vmem:[%s422 + $0x8] sm:$0xff]
    %s425 = scalar_lea.vmem %s88, %s421
    %v426 = vld [vmem:[%s425] sm:$0xff]
    %v427 = vld [vmem:[%s425 + $0x8] sm:$0xff]
    %v428 = vsub.f32 %v426, %v423
    %v429 = vsub.f32 %v427, %v424
    %v430 = vand.u32 2147483647, %v428
    %v431 = vand.u32 2147483647, %v429
    %vm432 = vcmp.lt.f32.partialorder %v423, 192.0
    %vm433 = vcmp.lt.f32.partialorder %v424, 192.0
    %v434 = vsel %vm432, 1, 0
    %v435 = vsel %vm433, 1, 0
    %v436 = vcvt.s32.f32 %v434
    %v437 = vcvt.s32.f32 %v435
    %v438 = vmin.f32 %v430, 1.0
    %v439 = vmin.f32 %v431, 1.0
    %v440 = vmul.f32 %v438, 0.5
    %v441 = vmul.f32 %v439, 0.5
    %v442 = vsub.f32 %v430, %v440
    %v443 = vsub.f32 %v431, %v441
    %v444 = vmul.f32 %v438, %v442
    %v445 = vmul.f32 %v439, %v443
    %v446 = vmul.f32 %v444, %v436
    %v447 = vmul.f32 %v445, %v437
    %v448 = vadd.f32 %v415, %v446
    %v449 = vadd.f32 %v416, %v447
    %v450 = vadd.f32 %v417, %v436
    %v451 = vadd.f32 %v418, %v437
    %v452 = vadd.f32 %v419, %v423
    %v453 = vadd.f32 %v420, %v424
    %v454 = vmul.f32 %v452, 0.25
    %v455 = vmul.f32 %v453, 0.25
    %s456 = scalar_lea.vmem [#allocation2], %s197
    %v457 = vld [vmem:[%s456] sm:$0xff]
    %v458 = vld [vmem:[%s456 + $0x8] sm:$0xff]
    %v459 = vsub.f32 %v457, %v454
    %v460 = vsub.f32 %v458, %v455
    %v461 = vand.u32 2147483647, %v459
    %v462 = vand.u32 2147483647, %v460
    %vm463 = vcmp.lt.f32.partialorder %v454, 192.0
    %vm464 = vcmp.lt.f32.partialorder %v455, 192.0
    %v465 = vsel %vm463, 1, 0
    %v466 = vsel %vm464, 1, 0
    %v467 = vcvt.s32.f32 %v465
    %v468 = vcvt.s32.f32 %v466
    %v469 = vmin.f32 %v461, 1.0
    %v470 = vmin.f32 %v462, 1.0
    %v471 = vmul.f32 %v469, 0.5
    %v472 = vmul.f32 %v470, 0.5
    %v473 = vsub.f32 %v461, %v471
    %v474 = vsub.f32 %v462, %v472
    %v475 = vmul.f32 %v469, %v473
    %v476 = vmul.f32 %v470, %v474
    %v477 = vmul.f32 %v475, %v467
    %v478 = vmul.f32 %v476, %v468
    %v479 = vadd.f32 %v320, %v477
    %v480 = vadd.f32 %v321, %v478
    %v481 = vadd.f32 %v322, %v467
    %v482 = vadd.f32 %v323, %v468
    %v483 = vadd.f32 %v294, %v452
    %v484 = vadd.f32 %v295, %v453
    %s485 = sadd.s32 0, 128
    %s486 = scalar_lea.vmem %s80, %s485
    %v487 = vld [vmem:[%s486] sm:$0xff]
    %v488 = vld [vmem:[%s486 + $0x8] sm:$0xff]
    %s489 = scalar_lea.vmem %s88, %s485
    %v490 = vld [vmem:[%s489] sm:$0xff]
    %v491 = vld [vmem:[%s489 + $0x8] sm:$0xff]
    %v492 = vsub.f32 %v490, %v487
    %v493 = vsub.f32 %v491, %v488
    %v494 = vand.u32 2147483647, %v492
    %v495 = vand.u32 2147483647, %v493
    %vm496 = vcmp.lt.f32.partialorder %v487, 192.0
    %vm497 = vcmp.lt.f32.partialorder %v488, 192.0
    %v498 = vsel %vm496, 1, 0
    %v499 = vsel %vm497, 1, 0
    %v500 = vcvt.s32.f32 %v498
    %v501 = vcvt.s32.f32 %v499
    %v502 = vmin.f32 %v494, 1.0
    %v503 = vmin.f32 %v495, 1.0
    %v504 = vmul.f32 %v502, 0.5
    %v505 = vmul.f32 %v503, 0.5
    %v506 = vsub.f32 %v494, %v504
    %v507 = vsub.f32 %v495, %v505
    %v508 = vmul.f32 %v502, %v506
    %v509 = vmul.f32 %v503, %v507
    %v510 = vmul.f32 %v508, %v500
    %v511 = vmul.f32 %v509, %v501
    %v512 = vadd.f32 %v448, %v510
    %v513 = vadd.f32 %v449, %v511
    %v514 = vadd.f32 %v450, %v500
    %v515 = vadd.f32 %v451, %v501
    %s516 = sadd.s32 0, 144
    %s517 = scalar_lea.vmem %s80, %s516
    %v518 = vld [vmem:[%s517] sm:$0xff]
    %v519 = vld [vmem:[%s517 + $0x8] sm:$0xff]
    %s520 = scalar_lea.vmem %s88, %s516
    %v521 = vld [vmem:[%s520] sm:$0xff]
    %v522 = vld [vmem:[%s520 + $0x8] sm:$0xff]
    %v523 = vsub.f32 %v521, %v518
    %v524 = vsub.f32 %v522, %v519
    %v525 = vand.u32 2147483647, %v523
    %v526 = vand.u32 2147483647, %v524
    %vm527 = vcmp.lt.f32.partialorder %v518, 192.0
    %vm528 = vcmp.lt.f32.partialorder %v519, 192.0
    %v529 = vsel %vm527, 1, 0
    %v530 = vsel %vm528, 1, 0
    %v531 = vcvt.s32.f32 %v529
    %v532 = vcvt.s32.f32 %v530
    %v533 = vmin.f32 %v525, 1.0
    %v534 = vmin.f32 %v526, 1.0
    %v535 = vmul.f32 %v533, 0.5
    %v536 = vmul.f32 %v534, 0.5
    %v537 = vsub.f32 %v525, %v535
    %v538 = vsub.f32 %v526, %v536
    %v539 = vmul.f32 %v533, %v537
    %v540 = vmul.f32 %v534, %v538
    %v541 = vmul.f32 %v539, %v531
    %v542 = vmul.f32 %v540, %v532
    %v543 = vadd.f32 %v512, %v541
    %v544 = vadd.f32 %v513, %v542
    %v545 = vadd.f32 %v514, %v531
    %v546 = vadd.f32 %v515, %v532
    %v547 = vadd.f32 %v487, %v518
    %v548 = vadd.f32 %v488, %v519
    %s549 = sadd.s32 0, 192
    %s550 = scalar_lea.vmem %s80, %s549
    %v551 = vld [vmem:[%s550] sm:$0xff]
    %v552 = vld [vmem:[%s550 + $0x8] sm:$0xff]
    %s553 = scalar_lea.vmem %s88, %s549
    %v554 = vld [vmem:[%s553] sm:$0xff]
    %v555 = vld [vmem:[%s553 + $0x8] sm:$0xff]
    %v556 = vsub.f32 %v554, %v551
    %v557 = vsub.f32 %v555, %v552
    %v558 = vand.u32 2147483647, %v556
    %v559 = vand.u32 2147483647, %v557
    %vm560 = vcmp.lt.f32.partialorder %v551, 192.0
    %vm561 = vcmp.lt.f32.partialorder %v552, 192.0
    %v562 = vsel %vm560, 1, 0
    %v563 = vsel %vm561, 1, 0
    %v564 = vcvt.s32.f32 %v562
    %v565 = vcvt.s32.f32 %v563
    %v566 = vmin.f32 %v558, 1.0
    %v567 = vmin.f32 %v559, 1.0
    %v568 = vmul.f32 %v566, 0.5
    %v569 = vmul.f32 %v567, 0.5
    %v570 = vsub.f32 %v558, %v568
    %v571 = vsub.f32 %v559, %v569
    %v572 = vmul.f32 %v566, %v570
    %v573 = vmul.f32 %v567, %v571
    %v574 = vmul.f32 %v572, %v564
    %v575 = vmul.f32 %v573, %v565
    %v576 = vadd.f32 %v543, %v574
    %v577 = vadd.f32 %v544, %v575
    %v578 = vadd.f32 %v545, %v564
    %v579 = vadd.f32 %v546, %v565
    %v580 = vadd.f32 %v547, %v551
    %v581 = vadd.f32 %v548, %v552
    %s582 = sadd.s32 0, 208
    %s583 = scalar_lea.vmem %s80, %s582
    %v584 = vld [vmem:[%s583] sm:$0xff]
    %v585 = vld [vmem:[%s583 + $0x8] sm:$0xff]
    %s586 = scalar_lea.vmem %s88, %s582
    %v587 = vld [vmem:[%s586] sm:$0xff]
    %v588 = vld [vmem:[%s586 + $0x8] sm:$0xff]
    %v589 = vsub.f32 %v587, %v584
    %v590 = vsub.f32 %v588, %v585
    %v591 = vand.u32 2147483647, %v589
    %v592 = vand.u32 2147483647, %v590
    %vm593 = vcmp.lt.f32.partialorder %v584, 192.0
    %vm594 = vcmp.lt.f32.partialorder %v585, 192.0
    %v595 = vsel %vm593, 1, 0
    %v596 = vsel %vm594, 1, 0
    %v597 = vcvt.s32.f32 %v595
    %v598 = vcvt.s32.f32 %v596
    %v599 = vmin.f32 %v591, 1.0
    %v600 = vmin.f32 %v592, 1.0
    %v601 = vmul.f32 %v599, 0.5
    %v602 = vmul.f32 %v600, 0.5
    %v603 = vsub.f32 %v591, %v601
    %v604 = vsub.f32 %v592, %v602
    %v605 = vmul.f32 %v599, %v603
    %v606 = vmul.f32 %v600, %v604
    %v607 = vmul.f32 %v605, %v597
    %v608 = vmul.f32 %v606, %v598
    %v609 = vadd.f32 %v576, %v607
    %v610 = vadd.f32 %v577, %v608
    %v611 = vadd.f32 %v578, %v597
    %v612 = vadd.f32 %v579, %v598
    %v613 = vadd.f32 %v580, %v584
    %v614 = vadd.f32 %v581, %v585
    %v615 = vmul.f32 %v613, 0.25
    %v616 = vmul.f32 %v614, 0.25
    %s617 = scalar_lea.vmem [#allocation2], %s324
    %v618 = vld [vmem:[%s617] sm:$0xff]
    %v619 = vld [vmem:[%s617 + $0x8] sm:$0xff]
    %v620 = vsub.f32 %v618, %v615
    %v621 = vsub.f32 %v619, %v616
    %v622 = vand.u32 2147483647, %v620
    %v623 = vand.u32 2147483647, %v621
    %vm624 = vcmp.lt.f32.partialorder %v615, 192.0
    %vm625 = vcmp.lt.f32.partialorder %v616, 192.0
    %v626 = vsel %vm624, 1, 0
    %v627 = vsel %vm625, 1, 0
    %v628 = vcvt.s32.f32 %v626
    %v629 = vcvt.s32.f32 %v627
    %v630 = vmin.f32 %v622, 1.0
    %v631 = vmin.f32 %v623, 1.0
    %v632 = vmul.f32 %v630, 0.5
    %v633 = vmul.f32 %v631, 0.5
    %v634 = vsub.f32 %v622, %v632
    %v635 = vsub.f32 %v623, %v633
    %v636 = vmul.f32 %v630, %v634
    %v637 = vmul.f32 %v631, %v635
    %v638 = vmul.f32 %v636, %v628
    %v639 = vmul.f32 %v637, %v629
    %v640 = vadd.f32 %v479, %v638
    %v641 = vadd.f32 %v480, %v639
    %v642 = vadd.f32 %v481, %v628
    %v643 = vadd.f32 %v482, %v629
    %v644 = vadd.f32 %v483, %v613
    %v645 = vadd.f32 %v484, %v614
    %s646 = sadd.s32 0, 160
    %s647 = scalar_lea.vmem %s80, %s646
    %v648 = vld [vmem:[%s647] sm:$0xff]
    %v649 = vld [vmem:[%s647 + $0x8] sm:$0xff]
    %s650 = scalar_lea.vmem %s88, %s646
    %v651 = vld [vmem:[%s650] sm:$0xff]
    %v652 = vld [vmem:[%s650 + $0x8] sm:$0xff]
    %v653 = vsub.f32 %v651, %v648
    %v654 = vsub.f32 %v652, %v649
    %v655 = vand.u32 2147483647, %v653
    %v656 = vand.u32 2147483647, %v654
    %vm657 = vcmp.lt.f32.partialorder %v648, 192.0
    %vm658 = vcmp.lt.f32.partialorder %v649, 192.0
    %v659 = vsel %vm657, 1, 0
    %v660 = vsel %vm658, 1, 0
    %v661 = vcvt.s32.f32 %v659
    %v662 = vcvt.s32.f32 %v660
    %v663 = vmin.f32 %v655, 1.0
    %v664 = vmin.f32 %v656, 1.0
    %v665 = vmul.f32 %v663, 0.5
    %v666 = vmul.f32 %v664, 0.5
    %v667 = vsub.f32 %v655, %v665
    %v668 = vsub.f32 %v656, %v666
    %v669 = vmul.f32 %v663, %v667
    %v670 = vmul.f32 %v664, %v668
    %v671 = vmul.f32 %v669, %v661
    %v672 = vmul.f32 %v670, %v662
    %v673 = vadd.f32 %v609, %v671
    %v674 = vadd.f32 %v610, %v672
    %v675 = vadd.f32 %v611, %v661
    %v676 = vadd.f32 %v612, %v662
    %s677 = sadd.s32 0, 176
    %s678 = scalar_lea.vmem %s80, %s677
    %v679 = vld [vmem:[%s678] sm:$0xff]
    %v680 = vld [vmem:[%s678 + $0x8] sm:$0xff]
    %s681 = scalar_lea.vmem %s88, %s677
    %v682 = vld [vmem:[%s681] sm:$0xff]
    %v683 = vld [vmem:[%s681 + $0x8] sm:$0xff]
    %v684 = vsub.f32 %v682, %v679
    %v685 = vsub.f32 %v683, %v680
    %v686 = vand.u32 2147483647, %v684
    %v687 = vand.u32 2147483647, %v685
    %vm688 = vcmp.lt.f32.partialorder %v679, 192.0
    %vm689 = vcmp.lt.f32.partialorder %v680, 192.0
    %v690 = vsel %vm688, 1, 0
    %v691 = vsel %vm689, 1, 0
    %v692 = vcvt.s32.f32 %v690
    %v693 = vcvt.s32.f32 %v691
    %v694 = vmin.f32 %v686, 1.0
    %v695 = vmin.f32 %v687, 1.0
    %v696 = vmul.f32 %v694, 0.5
    %v697 = vmul.f32 %v695, 0.5
    %v698 = vsub.f32 %v686, %v696
    %v699 = vsub.f32 %v687, %v697
    %v700 = vmul.f32 %v694, %v698
    %v701 = vmul.f32 %v695, %v699
    %v702 = vmul.f32 %v700, %v692
    %v703 = vmul.f32 %v701, %v693
    %v704 = vadd.f32 %v673, %v702
    %v705 = vadd.f32 %v674, %v703
    %v706 = vadd.f32 %v675, %v692
    %v707 = vadd.f32 %v676, %v693
    %v708 = vadd.f32 %v648, %v679
    %v709 = vadd.f32 %v649, %v680
    %s710 = sadd.s32 0, 224
    %s711 = scalar_lea.vmem %s80, %s710
    %v712 = vld [vmem:[%s711] sm:$0xff]
    %v713 = vld [vmem:[%s711 + $0x8] sm:$0xff]
    %s714 = scalar_lea.vmem %s88, %s710
    %v715 = vld [vmem:[%s714] sm:$0xff]
    %v716 = vld [vmem:[%s714 + $0x8] sm:$0xff]
    %v717 = vsub.f32 %v715, %v712
    %v718 = vsub.f32 %v716, %v713
    %v719 = vand.u32 2147483647, %v717
    %v720 = vand.u32 2147483647, %v718
    %vm721 = vcmp.lt.f32.partialorder %v712, 192.0
    %vm722 = vcmp.lt.f32.partialorder %v713, 192.0
    %v723 = vsel %vm721, 1, 0
    %v724 = vsel %vm722, 1, 0
    %v725 = vcvt.s32.f32 %v723
    %v726 = vcvt.s32.f32 %v724
    %v727 = vmin.f32 %v719, 1.0
    %v728 = vmin.f32 %v720, 1.0
    %v729 = vmul.f32 %v727, 0.5
    %v730 = vmul.f32 %v728, 0.5
    %v731 = vsub.f32 %v719, %v729
    %v732 = vsub.f32 %v720, %v730
    %v733 = vmul.f32 %v727, %v731
    %v734 = vmul.f32 %v728, %v732
    %v735 = vmul.f32 %v733, %v725
    %v736 = vmul.f32 %v734, %v726
    %v737 = vadd.f32 %v704, %v735
    %v738 = vadd.f32 %v705, %v736
    %v739 = vadd.f32 %v706, %v725
    %v740 = vadd.f32 %v707, %v726
    %v741 = vadd.f32 %v708, %v712
    %v742 = vadd.f32 %v709, %v713
    %s743 = sadd.s32 0, 240
    %s744 = scalar_lea.vmem %s80, %s743
    %v745 = vld [vmem:[%s744] sm:$0xff]
    %v746 = vld [vmem:[%s744 + $0x8] sm:$0xff]
    %s747 = scalar_lea.vmem %s88, %s743
    %v748 = vld [vmem:[%s747] sm:$0xff]
    %v749 = vld [vmem:[%s747 + $0x8] sm:$0xff]
    %v750 = vsub.f32 %v748, %v745
    %v751 = vsub.f32 %v749, %v746
    %v752 = vand.u32 2147483647, %v750
    %v753 = vand.u32 2147483647, %v751
    %vm754 = vcmp.lt.f32.partialorder %v745, 192.0
    %vm755 = vcmp.lt.f32.partialorder %v746, 192.0
    %v756 = vsel %vm754, 1, 0
    %v757 = vsel %vm755, 1, 0
    %v758 = vcvt.s32.f32 %v756
    %v759 = vcvt.s32.f32 %v757
    %v760 = vmin.f32 %v752, 1.0
    %v761 = vmin.f32 %v753, 1.0
    %v762 = vmul.f32 %v760, 0.5
    %v763 = vmul.f32 %v761, 0.5
    %v764 = vsub.f32 %v752, %v762
    %v765 = vsub.f32 %v753, %v763
    %v766 = vmul.f32 %v760, %v764
    %v767 = vmul.f32 %v761, %v765
    %v768 = vmul.f32 %v766, %v758
    %v769 = vmul.f32 %v767, %v759
    %v770 = vadd.f32 %v737, %v768
    %v771 = vadd.f32 %v738, %v769
    %v772 = vadd.f32 %v739, %v758
    %v773 = vadd.f32 %v740, %v759
    %v774 = vadd.f32 %v741, %v745
    %v775 = vadd.f32 %v742, %v746
    %v776 = vmul.f32 %v774, 0.25
    %v777 = vmul.f32 %v775, 0.25
    %s778 = scalar_lea.vmem [#allocation2], %s355
    %v779 = vld [vmem:[%s778] sm:$0xff]
    %v780 = vld [vmem:[%s778 + $0x8] sm:$0xff]
    %v781 = vsub.f32 %v779, %v776
    %v782 = vsub.f32 %v780, %v777
    %v783 = vand.u32 2147483647, %v781
    %v784 = vand.u32 2147483647, %v782
    %vm785 = vcmp.lt.f32.partialorder %v776, 192.0
    %vm786 = vcmp.lt.f32.partialorder %v777, 192.0
    %v787 = vsel %vm785, 1, 0
    %v788 = vsel %vm786, 1, 0
    %v789 = vcvt.s32.f32 %v787
    %v790 = vcvt.s32.f32 %v788
    %v791 = vmin.f32 %v783, 1.0
    %v792 = vmin.f32 %v784, 1.0
    %v793 = vmul.f32 %v791, 0.5
    %v794 = vmul.f32 %v792, 0.5
    %v795 = vsub.f32 %v783, %v793
    %v796 = vsub.f32 %v784, %v794
    %v797 = vmul.f32 %v791, %v795
    %v798 = vmul.f32 %v792, %v796
    %v799 = vmul.f32 %v797, %v789
    %v800 = vmul.f32 %v798, %v790
    %v801 = vadd.f32 %v640, %v799
    %v802 = vadd.f32 %v641, %v800
    %v803 = vadd.f32 %v642, %v789
    %v804 = vadd.f32 %v643, %v790
    %v805 = vadd.f32 %v644, %v774
    %v806 = vadd.f32 %v645, %v775
    %v807 = vmul.f32 %v805, 0.0625
    %v808 = vmul.f32 %v806, 0.0625
    %v809 = vld [vmem:[%s104] sm:$0xff]
    %v810 = vld [vmem:[%s104 + $0x8] sm:$0xff]
    %v811 = vsub.f32 %v809, %v807
    %v812 = vsub.f32 %v810, %v808
    %v813 = vand.u32 2147483647, %v811
    %v814 = vand.u32 2147483647, %v812
    %vm815 = vcmp.lt.f32.partialorder %v807, 192.0
    %vm816 = vcmp.lt.f32.partialorder %v808, 192.0
    %v817 = vsel %vm815, 1, 0
    %v818 = vsel %vm816, 1, 0
    %v819 = vcvt.s32.f32 %v817
    %v820 = vcvt.s32.f32 %v818
    %v821 = vmin.f32 %v813, 1.0
    %v822 = vmin.f32 %v814, 1.0
    %v823 = vmul.f32 %v821, 0.5
    %v824 = vmul.f32 %v822, 0.5
    %v825 = vsub.f32 %v813, %v823
    %v826 = vsub.f32 %v814, %v824
    %v827 = vmul.f32 %v821, %v825
    %v828 = vmul.f32 %v822, %v826
    %v829 = vmul.f32 %v827, %v819
    %v830 = vmul.f32 %v828, %v820
    %v831 = vadd.f32 %v829, 0.0
    %v832 = vadd.f32 %v830, 0.0
    %v833 = vadd.f32 %v819, 0.0
    %v834 = vadd.f32 %v820, 0.0
    %v835 = vld [vmem:[%s4] sm:$0xff]
    %v836 = vld [vmem:[%s4 + $0x8] sm:$0xff]
    %v837 = vadd.f32 %v835, %v770
    %v838 = vadd.f32 %v836, %v771
    %839 = vst [vmem:[%s4] sm:$0xff] %v837
    %840 = vst [vmem:[%s4 + $0x8] sm:$0xff] %v838
    %v841 = vld [vmem:[%s5] sm:$0xff]
    %v842 = vld [vmem:[%s5 + $0x8] sm:$0xff]
    %v843 = vadd.f32 %v841, %v772
    %v844 = vadd.f32 %v842, %v773
    %845 = vst [vmem:[%s5] sm:$0xff] %v843
    %846 = vst [vmem:[%s5 + $0x8] sm:$0xff] %v844
    %s847 = scalar_lea.vmem %s4, 16
    %v848 = vld [vmem:[%s847] sm:$0xff]
    %v849 = vld [vmem:[%s847 + $0x8] sm:$0xff]
    %v850 = vadd.f32 %v848, %v801
    %v851 = vadd.f32 %v849, %v802
    %852 = vst [vmem:[%s847] sm:$0xff] %v850
    %853 = vst [vmem:[%s847 + $0x8] sm:$0xff] %v851
    %s854 = scalar_lea.vmem %s5, 16
    %v855 = vld [vmem:[%s854] sm:$0xff]
    %v856 = vld [vmem:[%s854 + $0x8] sm:$0xff]
    %v857 = vadd.f32 %v855, %v803
    %v858 = vadd.f32 %v856, %v804
    %859 = vst [vmem:[%s854] sm:$0xff] %v857
    %860 = vst [vmem:[%s854 + $0x8] sm:$0xff] %v858
    %s861 = scalar_lea.vmem %s4, 32
    %v862 = vld [vmem:[%s861] sm:$0xff]
    %v863 = vld [vmem:[%s861 + $0x8] sm:$0xff]
    %v864 = vadd.f32 %v862, %v831
    %v865 = vadd.f32 %v863, %v832
    %866 = vst [vmem:[%s861] sm:$0xff] %v864
    %867 = vst [vmem:[%s861 + $0x8] sm:$0xff] %v865
    %s868 = scalar_lea.vmem %s5, 32
    %v869 = vld [vmem:[%s868] sm:$0xff]
    %v870 = vld [vmem:[%s868 + $0x8] sm:$0xff]
    %v871 = vadd.f32 %v869, %v833
    %v872 = vadd.f32 %v870, %v834
    %873 = vst [vmem:[%s868] sm:$0xff] %v871
    %874 = vst [vmem:[%s868 + $0x8] sm:$0xff] %v872
    // Predicated region
    $region22: #{_multiscale_loss_sums.2} parent=1 // pred_check
      _
    $region23: #{_multiscale_loss_sums.2} parent=1 // pred_check_branch
      %876 = sbr.rel (0) target = $region25
    $region24: #{_multiscale_loss_sums.2} parent=1 // pred_region
      _
    $region25: #{_multiscale_loss_sums.2} parent=1 // pred_fallthru
      _
    // Predicated region
    $region26: #{_multiscale_loss_sums.2} parent=1 // pred_check
      _
    $region27: #{_multiscale_loss_sums.2} parent=1 // pred_check_branch
      %878 = sbr.rel (0) target = $region29
    $region28: #{_multiscale_loss_sums.2} parent=1 // pred_region
      _
    $region29: #{_multiscale_loss_sums.2} parent=1 // pred_fallthru
      _
    // Predicated region
    $region30: #{_multiscale_loss_sums.2} parent=1 // pred_check
      _
    $region31: #{_multiscale_loss_sums.2} parent=1 // pred_check_branch
      %880 = sbr.rel (0) target = $region33
    $region32: #{_multiscale_loss_sums.2} parent=1 // pred_region
      _
    $region33: #{_multiscale_loss_sums.2} parent=1 // pred_fallthru
      _
    // Predicated region
    $region34: #{_multiscale_loss_sums.2} parent=1 // pred_check
      _
    $region35: #{_multiscale_loss_sums.2} parent=1 // pred_check_branch
      %882 = sbr.rel (0) target = $region37
    $region36: #{_multiscale_loss_sums.2} parent=1 // pred_region
      _
    $region37: #{_multiscale_loss_sums.2} parent=1 // pred_fallthru
      _

// kernel: _multiscale_loss_sums.1
$region0: #{_multiscale_loss_sums.1}
  #allocation0 [shape = 'u32[]', space=smem, size = 0x4, offset = 0x4, fixed_abs, tag = 'smem constant byte address 0x4 - core index']
  #allocation1 [shape = 'u32[72,128]{1,0:T(1,128)}', space=vmem, size = 0x9000, scoped, tag = 'internal scratch']
  %s0 = inlined_call_operand.vmem [shape: f32[16,16,128], index: 0, kind: input, shape index: {}]
  %s1 = inlined_call_operand.vmem [shape: f32[16,16,128], index: 1, kind: input, shape index: {}]
  %s2 = inlined_call_operand.vmem [shape: f32[4,16,128], index: 2, kind: input, shape index: {}]
  %s3 = inlined_call_operand.vmem [shape: f32[1,16,128], index: 3, kind: input, shape index: {}]
  %s4 = inlined_call_operand.vmem [shape: f32[1,3,16,128], index: 4, kind: output, shape index: {0}]
  %s5 = inlined_call_operand.vmem [shape: f32[1,3,16,128], index: 5, kind: output, shape index: {1}]
  %6 = xla_tuple %s4, %s5
  %s7 = sld [smem:[#allocation0]]
  $region38: #{_multiscale_loss_sums.1} parent=0
    _
  %s9 = ssub.s32 1, %s7
  %s10 = scalar_select 0, %s9, %s7
  // Predicated region
  $region2: #{_multiscale_loss_sums.1} parent=0 // pred_check
    _
  $region3: #{_multiscale_loss_sums.1} parent=0 // pred_check_branch
    %12 = sbr.rel (0) target = $region5
  $region4: #{_multiscale_loss_sums.1} parent=0 // pred_region
    %s13 = sadd.s32 0, 0
    %s14 = smul.u32 2, %s13
    %p15 = scmp.lt.s32.totalorder %s14, 1
    %s16 = scalar_select %p15, %s14, 1
    %s17 = smul.addr %s16, 8
    %s18 = scalar_lea.vmem %s0, %s17
    %s19 = sadd.s32 0, 0
    %s20 = smul.u32 2, %s19
  $region5: #{_multiscale_loss_sums.1} parent=0 // pred_fallthru
    _
  // Predicated region
  $region6: #{_multiscale_loss_sums.1} parent=0 // pred_check
    _
  $region7: #{_multiscale_loss_sums.1} parent=0 // pred_check_branch
    %22 = sbr.rel (0) target = $region9
  $region8: #{_multiscale_loss_sums.1} parent=0 // pred_region
    %s23 = sadd.s32 0, 0
    %s24 = smul.u32 2, %s23
    %p25 = scmp.lt.s32.totalorder %s24, 1
    %s26 = scalar_select %p25, %s24, 1
    %s27 = smul.addr %s26, 8
    %s28 = scalar_lea.vmem %s1, %s27
    %s29 = sadd.s32 0, 0
    %s30 = smul.u32 2, %s29
  $region9: #{_multiscale_loss_sums.1} parent=0 // pred_fallthru
    _
  // Predicated region
  $region10: #{_multiscale_loss_sums.1} parent=0 // pred_check
    _
  $region11: #{_multiscale_loss_sums.1} parent=0 // pred_check_branch
    %32 = sbr.rel (0) target = $region13
  $region12: #{_multiscale_loss_sums.1} parent=0 // pred_region
    %s33 = sadd.s32 0, 0
    %s34 = smul.u32 2, %s33
    %p35 = scmp.lt.s32.totalorder %s34, 1
    %s36 = scalar_select %p35, %s34, 1
    %s37 = smul.addr %s36, 8
    %s38 = scalar_lea.vmem %s2, %s37
    %s39 = sadd.s32 0, 0
    %s40 = smul.u32 2, %s39
  $region13: #{_multiscale_loss_sums.1} parent=0 // pred_fallthru
    _
  // Predicated region
  $region14: #{_multiscale_loss_sums.1} parent=0 // pred_check
    _
  $region15: #{_multiscale_loss_sums.1} parent=0 // pred_check_branch
    %42 = sbr.rel (0) target = $region17
  $region16: #{_multiscale_loss_sums.1} parent=0 // pred_region
    %s43 = sadd.s32 0, 0
    %s44 = smul.u32 2, %s43
    %p45 = scmp.lt.s32.totalorder %s44, 1
    %s46 = scalar_select %p45, %s44, 1
    %s47 = smul.addr %s46, 8
    %s48 = scalar_lea.vmem %s3, %s47
    %s49 = sadd.s32 0, 0
    %s50 = smul.u32 2, %s49
  $region17: #{_multiscale_loss_sums.1} parent=0 // pred_fallthru
    _
  %s51 = sadd.s32 0, 0
  %s52 = smul.u32 2, %s51
  %p53 = scmp.lt.s32.totalorder %s52, 1
  %s54 = scalar_select %p53, %s52, 1
  %s55 = smul.addr %s54, 8
  %s56 = scalar_lea.vmem %s0, %s55
  %s57 = sadd.s32 0, 0
  %s58 = smul.u32 2, %s57
  %p59 = scmp.lt.s32.totalorder %s58, 1
  %s60 = scalar_select %p59, %s58, 1
  %s61 = smul.addr %s60, 8
  %s62 = scalar_lea.vmem %s1, %s61
  %s63 = sadd.s32 0, 0
  %s64 = smul.u32 2, %s63
  %p65 = scmp.lt.s32.totalorder %s64, 1
  %s66 = scalar_select %p65, %s64, 1
  %s67 = smul.addr %s66, 8
  %s68 = scalar_lea.vmem %s2, %s67
  %s69 = sadd.s32 0, 0
  %s70 = smul.u32 2, %s69
  %p71 = scmp.lt.s32.totalorder %s70, 1
  %s72 = scalar_select %p71, %s70, 1
  %s73 = smul.addr %s72, 8
  %s74 = scalar_lea.vmem %s3, %s73
  %s75 = sadd.s32 0, 0
  %s76 = smul.u32 2, %s75
  %p77 = scmp.lt.s32.totalorder %s76, 1
  %s78 = scalar_select %p77, %s76, 1
  %s79 = smul.addr %s78, 8
  %s80 = scalar_lea.vmem %s0, %s79
  %s81 = sadd.s32 0, 0
  %s82 = smul.u32 2, %s81
  %s83 = sadd.s32 0, 0
  %s84 = smul.u32 2, %s83
  %p85 = scmp.lt.s32.totalorder %s84, 1
  %s86 = scalar_select %p85, %s84, 1
  %s87 = smul.addr %s86, 8
  %s88 = scalar_lea.vmem %s1, %s87
  %s89 = sadd.s32 0, 0
  %s90 = smul.u32 2, %s89
  %s91 = sadd.s32 0, 0
  %s92 = smul.u32 2, %s91
  %p93 = scmp.lt.s32.totalorder %s92, 1
  %s94 = scalar_select %p93, %s92, 1
  %s95 = smul.addr %s94, 8
  %s96 = scalar_lea.vmem %s2, %s95
  %s97 = sadd.s32 0, 0
  %s98 = smul.u32 2, %s97
  %s99 = sadd.s32 0, 0
  %s100 = smul.u32 2, %s99
  %p101 = scmp.lt.s32.totalorder %s100, 1
  %s102 = scalar_select %p101, %s100, 1
  %s103 = smul.addr %s102, 8
  %s104 = scalar_lea.vmem %s3, %s103
  %s105 = sadd.s32 0, 0
  %s106 = smul.u32 2, %s105
  %p107 = scmp.eq.s32.totalorder 0, 0
  // Predicated region
  $region18: #{_multiscale_loss_sums.1} parent=0 // pred_check
    %p108 = pneg %p107
  $region19: #{_multiscale_loss_sums.1} parent=0 // pred_check_branch
    %110 = sbr.rel (%p108) target = $region21
  $region20: #{_multiscale_loss_sums.1} parent=0 // pred_region
    %111 = vst [vmem:[%s4] sm:$0xff] 0.0
    %112 = vst [vmem:[%s4 + $0x8] sm:$0xff] 0.0
    %113 = vst [vmem:[%s4 + $0x10] sm:$0xff] 0.0
    %114 = vst [vmem:[%s4 + $0x18] sm:$0xff] 0.0
    %115 = vst [vmem:[%s4 + $0x20] sm:$0xff] 0.0
    %116 = vst [vmem:[%s4 + $0x28] sm:$0xff] 0.0
    %117 = vst [vmem:[%s5] sm:$0xff] 0.0
    %118 = vst [vmem:[%s5 + $0x8] sm:$0xff] 0.0
    %119 = vst [vmem:[%s5 + $0x10] sm:$0xff] 0.0
    %120 = vst [vmem:[%s5 + $0x18] sm:$0xff] 0.0
    %121 = vst [vmem:[%s5 + $0x20] sm:$0xff] 0.0
    %122 = vst [vmem:[%s5 + $0x28] sm:$0xff] 0.0
  $region21: #{_multiscale_loss_sums.1} parent=0 // pred_fallthru
    _
  %v123 = vld [vmem:[%s80] sm:$0xff]
  %v124 = vld [vmem:[%s80 + $0x8] sm:$0xff]
  %v125 = vld [vmem:[%s88] sm:$0xff]
  %v126 = vld [vmem:[%s88 + $0x8] sm:$0xff]
  %v127 = vsub.f32 %v125, %v123
  %v128 = vsub.f32 %v126, %v124
  %v129 = vand.u32 2147483647, %v127
  %v130 = vand.u32 2147483647, %v128
  %vm131 = vcmp.lt.f32.partialorder %v123, 192.0
  %vm132 = vcmp.lt.f32.partialorder %v124, 192.0
  %v133 = vsel %vm131, 1, 0
  %v134 = vsel %vm132, 1, 0
  %v135 = vcvt.s32.f32 %v133
  %v136 = vcvt.s32.f32 %v134
  %v137 = vmin.f32 %v129, 1.0
  %v138 = vmin.f32 %v130, 1.0
  %v139 = vmul.f32 %v137, 0.5
  %v140 = vmul.f32 %v138, 0.5
  %v141 = vsub.f32 %v129, %v139
  %v142 = vsub.f32 %v130, %v140
  %v143 = vmul.f32 %v137, %v141
  %v144 = vmul.f32 %v138, %v142
  %v145 = vmul.f32 %v143, %v135
  %v146 = vmul.f32 %v144, %v136
  %v147 = vadd.f32 %v145, 0.0
  %v148 = vadd.f32 %v146, 0.0
  %v149 = vadd.f32 %v135, 0.0
  %v150 = vadd.f32 %v136, 0.0
  %s151 = sadd.s32 0, 16
  %s152 = scalar_lea.vmem %s80, %s151
  %v153 = vld [vmem:[%s152] sm:$0xff]
  %v154 = vld [vmem:[%s152 + $0x8] sm:$0xff]
  %s155 = scalar_lea.vmem %s88, %s151
  %v156 = vld [vmem:[%s155] sm:$0xff]
  %v157 = vld [vmem:[%s155 + $0x8] sm:$0xff]
  %v158 = vsub.f32 %v156, %v153
  %v159 = vsub.f32 %v157, %v154
  %v160 = vand.u32 2147483647, %v158
  %v161 = vand.u32 2147483647, %v159
  %vm162 = vcmp.lt.f32.partialorder %v153, 192.0
  %vm163 = vcmp.lt.f32.partialorder %v154, 192.0
  %v164 = vsel %vm162, 1, 0
  %v165 = vsel %vm163, 1, 0
  %v166 = vcvt.s32.f32 %v164
  %v167 = vcvt.s32.f32 %v165
  %v168 = vmin.f32 %v160, 1.0
  %v169 = vmin.f32 %v161, 1.0
  %v170 = vmul.f32 %v168, 0.5
  %v171 = vmul.f32 %v169, 0.5
  %v172 = vsub.f32 %v160, %v170
  %v173 = vsub.f32 %v161, %v171
  %v174 = vmul.f32 %v168, %v172
  %v175 = vmul.f32 %v169, %v173
  %v176 = vmul.f32 %v174, %v166
  %v177 = vmul.f32 %v175, %v167
  %v178 = vadd.f32 %v147, %v176
  %v179 = vadd.f32 %v148, %v177
  %v180 = vadd.f32 %v149, %v166
  %v181 = vadd.f32 %v150, %v167
  %v182 = vadd.f32 %v123, %v153
  %v183 = vadd.f32 %v124, %v154
  %s184 = sadd.s32 0, 64
  %s185 = scalar_lea.vmem %s80, %s184
  %v186 = vld [vmem:[%s185] sm:$0xff]
  %v187 = vld [vmem:[%s185 + $0x8] sm:$0xff]
  %s188 = scalar_lea.vmem %s88, %s184
  %v189 = vld [vmem:[%s188] sm:$0xff]
  %v190 = vld [vmem:[%s188 + $0x8] sm:$0xff]
  %v191 = vsub.f32 %v189, %v186
  %v192 = vsub.f32 %v190, %v187
  %v193 = vand.u32 2147483647, %v191
  %v194 = vand.u32 2147483647, %v192
  %vm195 = vcmp.lt.f32.partialorder %v186, 192.0
  %vm196 = vcmp.lt.f32.partialorder %v187, 192.0
  %v197 = vsel %vm195, 1, 0
  %v198 = vsel %vm196, 1, 0
  %v199 = vcvt.s32.f32 %v197
  %v200 = vcvt.s32.f32 %v198
  %v201 = vmin.f32 %v193, 1.0
  %v202 = vmin.f32 %v194, 1.0
  %v203 = vmul.f32 %v201, 0.5
  %v204 = vmul.f32 %v202, 0.5
  %v205 = vsub.f32 %v193, %v203
  %v206 = vsub.f32 %v194, %v204
  %v207 = vmul.f32 %v201, %v205
  %v208 = vmul.f32 %v202, %v206
  %v209 = vmul.f32 %v207, %v199
  %v210 = vmul.f32 %v208, %v200
  %v211 = vadd.f32 %v178, %v209
  %v212 = vadd.f32 %v179, %v210
  %v213 = vadd.f32 %v180, %v199
  %v214 = vadd.f32 %v181, %v200
  %v215 = vadd.f32 %v182, %v186
  %v216 = vadd.f32 %v183, %v187
  %s217 = sadd.s32 0, 80
  %s218 = scalar_lea.vmem %s80, %s217
  %v219 = vld [vmem:[%s218] sm:$0xff]
  %v220 = vld [vmem:[%s218 + $0x8] sm:$0xff]
  %s221 = scalar_lea.vmem %s88, %s217
  %v222 = vld [vmem:[%s221] sm:$0xff]
  %v223 = vld [vmem:[%s221 + $0x8] sm:$0xff]
  %v224 = vsub.f32 %v222, %v219
  %v225 = vsub.f32 %v223, %v220
  %v226 = vand.u32 2147483647, %v224
  %v227 = vand.u32 2147483647, %v225
  %vm228 = vcmp.lt.f32.partialorder %v219, 192.0
  %vm229 = vcmp.lt.f32.partialorder %v220, 192.0
  %v230 = vsel %vm228, 1, 0
  %v231 = vsel %vm229, 1, 0
  %v232 = vcvt.s32.f32 %v230
  %v233 = vcvt.s32.f32 %v231
  %v234 = vmin.f32 %v226, 1.0
  %v235 = vmin.f32 %v227, 1.0
  %v236 = vmul.f32 %v234, 0.5
  %v237 = vmul.f32 %v235, 0.5
  %v238 = vsub.f32 %v226, %v236
  %v239 = vsub.f32 %v227, %v237
  %v240 = vmul.f32 %v234, %v238
  %v241 = vmul.f32 %v235, %v239
  %v242 = vmul.f32 %v240, %v232
  %v243 = vmul.f32 %v241, %v233
  %v244 = vadd.f32 %v211, %v242
  %v245 = vadd.f32 %v212, %v243
  %v246 = vadd.f32 %v213, %v232
  %v247 = vadd.f32 %v214, %v233
  %v248 = vadd.f32 %v215, %v219
  %v249 = vadd.f32 %v216, %v220
  %v250 = vmul.f32 %v248, 0.25
  %v251 = vmul.f32 %v249, 0.25
  %v252 = vld [vmem:[%s96] sm:$0xff]
  %v253 = vld [vmem:[%s96 + $0x8] sm:$0xff]
  %v254 = vsub.f32 %v252, %v250
  %v255 = vsub.f32 %v253, %v251
  %v256 = vand.u32 2147483647, %v254
  %v257 = vand.u32 2147483647, %v255
  %vm258 = vcmp.lt.f32.partialorder %v250, 192.0
  %vm259 = vcmp.lt.f32.partialorder %v251, 192.0
  %v260 = vsel %vm258, 1, 0
  %v261 = vsel %vm259, 1, 0
  %v262 = vcvt.s32.f32 %v260
  %v263 = vcvt.s32.f32 %v261
  %v264 = vmin.f32 %v256, 1.0
  %v265 = vmin.f32 %v257, 1.0
  %v266 = vmul.f32 %v264, 0.5
  %v267 = vmul.f32 %v265, 0.5
  %v268 = vsub.f32 %v256, %v266
  %v269 = vsub.f32 %v257, %v267
  %v270 = vmul.f32 %v264, %v268
  %v271 = vmul.f32 %v265, %v269
  %v272 = vmul.f32 %v270, %v262
  %v273 = vmul.f32 %v271, %v263
  %v274 = vadd.f32 %v272, 0.0
  %v275 = vadd.f32 %v273, 0.0
  %v276 = vadd.f32 %v262, 0.0
  %v277 = vadd.f32 %v263, 0.0
  %s278 = sadd.s32 0, 32
  %s279 = scalar_lea.vmem %s80, %s278
  %v280 = vld [vmem:[%s279] sm:$0xff]
  %v281 = vld [vmem:[%s279 + $0x8] sm:$0xff]
  %s282 = scalar_lea.vmem %s88, %s278
  %v283 = vld [vmem:[%s282] sm:$0xff]
  %v284 = vld [vmem:[%s282 + $0x8] sm:$0xff]
  %v285 = vsub.f32 %v283, %v280
  %v286 = vsub.f32 %v284, %v281
  %v287 = vand.u32 2147483647, %v285
  %v288 = vand.u32 2147483647, %v286
  %vm289 = vcmp.lt.f32.partialorder %v280, 192.0
  %vm290 = vcmp.lt.f32.partialorder %v281, 192.0
  %v291 = vsel %vm289, 1, 0
  %v292 = vsel %vm290, 1, 0
  %v293 = vcvt.s32.f32 %v291
  %v294 = vcvt.s32.f32 %v292
  %v295 = vmin.f32 %v287, 1.0
  %v296 = vmin.f32 %v288, 1.0
  %v297 = vmul.f32 %v295, 0.5
  %v298 = vmul.f32 %v296, 0.5
  %v299 = vsub.f32 %v287, %v297
  %v300 = vsub.f32 %v288, %v298
  %v301 = vmul.f32 %v295, %v299
  %v302 = vmul.f32 %v296, %v300
  %v303 = vmul.f32 %v301, %v293
  %v304 = vmul.f32 %v302, %v294
  %v305 = vadd.f32 %v244, %v303
  %v306 = vadd.f32 %v245, %v304
  %v307 = vadd.f32 %v246, %v293
  %v308 = vadd.f32 %v247, %v294
  %s309 = sadd.s32 0, 48
  %s310 = scalar_lea.vmem %s80, %s309
  %v311 = vld [vmem:[%s310] sm:$0xff]
  %v312 = vld [vmem:[%s310 + $0x8] sm:$0xff]
  %s313 = scalar_lea.vmem %s88, %s309
  %v314 = vld [vmem:[%s313] sm:$0xff]
  %v315 = vld [vmem:[%s313 + $0x8] sm:$0xff]
  %v316 = vsub.f32 %v314, %v311
  %v317 = vsub.f32 %v315, %v312
  %v318 = vand.u32 2147483647, %v316
  %v319 = vand.u32 2147483647, %v317
  %vm320 = vcmp.lt.f32.partialorder %v311, 192.0
  %vm321 = vcmp.lt.f32.partialorder %v312, 192.0
  %v322 = vsel %vm320, 1, 0
  %v323 = vsel %vm321, 1, 0
  %v324 = vcvt.s32.f32 %v322
  %v325 = vcvt.s32.f32 %v323
  %v326 = vmin.f32 %v318, 1.0
  %v327 = vmin.f32 %v319, 1.0
  %v328 = vmul.f32 %v326, 0.5
  %v329 = vmul.f32 %v327, 0.5
  %v330 = vsub.f32 %v318, %v328
  %v331 = vsub.f32 %v319, %v329
  %v332 = vmul.f32 %v326, %v330
  %v333 = vmul.f32 %v327, %v331
  %v334 = vmul.f32 %v332, %v324
  %v335 = vmul.f32 %v333, %v325
  %v336 = vadd.f32 %v305, %v334
  %v337 = vadd.f32 %v306, %v335
  %v338 = vadd.f32 %v307, %v324
  %v339 = vadd.f32 %v308, %v325
  %v340 = vadd.f32 %v280, %v311
  %v341 = vadd.f32 %v281, %v312
  %s342 = sadd.s32 0, 96
  %s343 = scalar_lea.vmem %s80, %s342
  %v344 = vld [vmem:[%s343] sm:$0xff]
  %v345 = vld [vmem:[%s343 + $0x8] sm:$0xff]
  %s346 = scalar_lea.vmem %s88, %s342
  %v347 = vld [vmem:[%s346] sm:$0xff]
  %v348 = vld [vmem:[%s346 + $0x8] sm:$0xff]
  %v349 = vsub.f32 %v347, %v344
  %v350 = vsub.f32 %v348, %v345
  %v351 = vand.u32 2147483647, %v349
  %v352 = vand.u32 2147483647, %v350
  %vm353 = vcmp.lt.f32.partialorder %v344, 192.0
  %vm354 = vcmp.lt.f32.partialorder %v345, 192.0
  %v355 = vsel %vm353, 1, 0
  %v356 = vsel %vm354, 1, 0
  %v357 = vcvt.s32.f32 %v355
  %v358 = vcvt.s32.f32 %v356
  %v359 = vmin.f32 %v351, 1.0
  %v360 = vmin.f32 %v352, 1.0
  %v361 = vmul.f32 %v359, 0.5
  %v362 = vmul.f32 %v360, 0.5
  %v363 = vsub.f32 %v351, %v361
  %v364 = vsub.f32 %v352, %v362
  %v365 = vmul.f32 %v359, %v363
  %v366 = vmul.f32 %v360, %v364
  %v367 = vmul.f32 %v365, %v357
  %v368 = vmul.f32 %v366, %v358
  %v369 = vadd.f32 %v336, %v367
  %v370 = vadd.f32 %v337, %v368
  %v371 = vadd.f32 %v338, %v357
  %v372 = vadd.f32 %v339, %v358
  %v373 = vadd.f32 %v340, %v344
  %v374 = vadd.f32 %v341, %v345
  %s375 = sadd.s32 0, 112
  %s376 = scalar_lea.vmem %s80, %s375
  %v377 = vld [vmem:[%s376] sm:$0xff]
  %v378 = vld [vmem:[%s376 + $0x8] sm:$0xff]
  %s379 = scalar_lea.vmem %s88, %s375
  %v380 = vld [vmem:[%s379] sm:$0xff]
  %v381 = vld [vmem:[%s379 + $0x8] sm:$0xff]
  %v382 = vsub.f32 %v380, %v377
  %v383 = vsub.f32 %v381, %v378
  %v384 = vand.u32 2147483647, %v382
  %v385 = vand.u32 2147483647, %v383
  %vm386 = vcmp.lt.f32.partialorder %v377, 192.0
  %vm387 = vcmp.lt.f32.partialorder %v378, 192.0
  %v388 = vsel %vm386, 1, 0
  %v389 = vsel %vm387, 1, 0
  %v390 = vcvt.s32.f32 %v388
  %v391 = vcvt.s32.f32 %v389
  %v392 = vmin.f32 %v384, 1.0
  %v393 = vmin.f32 %v385, 1.0
  %v394 = vmul.f32 %v392, 0.5
  %v395 = vmul.f32 %v393, 0.5
  %v396 = vsub.f32 %v384, %v394
  %v397 = vsub.f32 %v385, %v395
  %v398 = vmul.f32 %v392, %v396
  %v399 = vmul.f32 %v393, %v397
  %v400 = vmul.f32 %v398, %v390
  %v401 = vmul.f32 %v399, %v391
  %v402 = vadd.f32 %v369, %v400
  %v403 = vadd.f32 %v370, %v401
  %v404 = vadd.f32 %v371, %v390
  %v405 = vadd.f32 %v372, %v391
  %v406 = vadd.f32 %v373, %v377
  %v407 = vadd.f32 %v374, %v378
  %v408 = vmul.f32 %v406, 0.25
  %v409 = vmul.f32 %v407, 0.25
  %s410 = scalar_lea.vmem %s96, %s151
  %v411 = vld [vmem:[%s410] sm:$0xff]
  %v412 = vld [vmem:[%s410 + $0x8] sm:$0xff]
  %v413 = vsub.f32 %v411, %v408
  %v414 = vsub.f32 %v412, %v409
  %v415 = vand.u32 2147483647, %v413
  %v416 = vand.u32 2147483647, %v414
  %vm417 = vcmp.lt.f32.partialorder %v408, 192.0
  %vm418 = vcmp.lt.f32.partialorder %v409, 192.0
  %v419 = vsel %vm417, 1, 0
  %v420 = vsel %vm418, 1, 0
  %v421 = vcvt.s32.f32 %v419
  %v422 = vcvt.s32.f32 %v420
  %v423 = vmin.f32 %v415, 1.0
  %v424 = vmin.f32 %v416, 1.0
  %v425 = vmul.f32 %v423, 0.5
  %v426 = vmul.f32 %v424, 0.5
  %v427 = vsub.f32 %v415, %v425
  %v428 = vsub.f32 %v416, %v426
  %v429 = vmul.f32 %v423, %v427
  %v430 = vmul.f32 %v424, %v428
  %v431 = vmul.f32 %v429, %v421
  %v432 = vmul.f32 %v430, %v422
  %v433 = vadd.f32 %v274, %v431
  %v434 = vadd.f32 %v275, %v432
  %v435 = vadd.f32 %v276, %v421
  %v436 = vadd.f32 %v277, %v422
  %v437 = vadd.f32 %v248, %v406
  %v438 = vadd.f32 %v249, %v407
  %s439 = sadd.s32 0, 128
  %s440 = scalar_lea.vmem %s80, %s439
  %v441 = vld [vmem:[%s440] sm:$0xff]
  %v442 = vld [vmem:[%s440 + $0x8] sm:$0xff]
  %s443 = scalar_lea.vmem %s88, %s439
  %v444 = vld [vmem:[%s443] sm:$0xff]
  %v445 = vld [vmem:[%s443 + $0x8] sm:$0xff]
  %v446 = vsub.f32 %v444, %v441
  %v447 = vsub.f32 %v445, %v442
  %v448 = vand.u32 2147483647, %v446
  %v449 = vand.u32 2147483647, %v447
  %vm450 = vcmp.lt.f32.partialorder %v441, 192.0
  %vm451 = vcmp.lt.f32.partialorder %v442, 192.0
  %v452 = vsel %vm450, 1, 0
  %v453 = vsel %vm451, 1, 0
  %v454 = vcvt.s32.f32 %v452
  %v455 = vcvt.s32.f32 %v453
  %v456 = vmin.f32 %v448, 1.0
  %v457 = vmin.f32 %v449, 1.0
  %v458 = vmul.f32 %v456, 0.5
  %v459 = vmul.f32 %v457, 0.5
  %v460 = vsub.f32 %v448, %v458
  %v461 = vsub.f32 %v449, %v459
  %v462 = vmul.f32 %v456, %v460
  %v463 = vmul.f32 %v457, %v461
  %v464 = vmul.f32 %v462, %v454
  %v465 = vmul.f32 %v463, %v455
  %v466 = vadd.f32 %v402, %v464
  %v467 = vadd.f32 %v403, %v465
  %v468 = vadd.f32 %v404, %v454
  %v469 = vadd.f32 %v405, %v455
  %s470 = sadd.s32 0, 144
  %s471 = scalar_lea.vmem %s80, %s470
  %v472 = vld [vmem:[%s471] sm:$0xff]
  %v473 = vld [vmem:[%s471 + $0x8] sm:$0xff]
  %s474 = scalar_lea.vmem %s88, %s470
  %v475 = vld [vmem:[%s474] sm:$0xff]
  %v476 = vld [vmem:[%s474 + $0x8] sm:$0xff]
  %v477 = vsub.f32 %v475, %v472
  %v478 = vsub.f32 %v476, %v473
  %v479 = vand.u32 2147483647, %v477
  %v480 = vand.u32 2147483647, %v478
  %vm481 = vcmp.lt.f32.partialorder %v472, 192.0
  %vm482 = vcmp.lt.f32.partialorder %v473, 192.0
  %v483 = vsel %vm481, 1, 0
  %v484 = vsel %vm482, 1, 0
  %v485 = vcvt.s32.f32 %v483
  %v486 = vcvt.s32.f32 %v484
  %v487 = vmin.f32 %v479, 1.0
  %v488 = vmin.f32 %v480, 1.0
  %v489 = vmul.f32 %v487, 0.5
  %v490 = vmul.f32 %v488, 0.5
  %v491 = vsub.f32 %v479, %v489
  %v492 = vsub.f32 %v480, %v490
  %v493 = vmul.f32 %v487, %v491
  %v494 = vmul.f32 %v488, %v492
  %v495 = vmul.f32 %v493, %v485
  %v496 = vmul.f32 %v494, %v486
  %v497 = vadd.f32 %v466, %v495
  %v498 = vadd.f32 %v467, %v496
  %v499 = vadd.f32 %v468, %v485
  %v500 = vadd.f32 %v469, %v486
  %v501 = vadd.f32 %v441, %v472
  %v502 = vadd.f32 %v442, %v473
  %s503 = sadd.s32 0, 192
  %s504 = scalar_lea.vmem %s80, %s503
  %v505 = vld [vmem:[%s504] sm:$0xff]
  %v506 = vld [vmem:[%s504 + $0x8] sm:$0xff]
  %s507 = scalar_lea.vmem %s88, %s503
  %v508 = vld [vmem:[%s507] sm:$0xff]
  %v509 = vld [vmem:[%s507 + $0x8] sm:$0xff]
  %v510 = vsub.f32 %v508, %v505
  %v511 = vsub.f32 %v509, %v506
  %v512 = vand.u32 2147483647, %v510
  %v513 = vand.u32 2147483647, %v511
  %vm514 = vcmp.lt.f32.partialorder %v505, 192.0
  %vm515 = vcmp.lt.f32.partialorder %v506, 192.0
  %v516 = vsel %vm514, 1, 0
  %v517 = vsel %vm515, 1, 0
  %v518 = vcvt.s32.f32 %v516
  %v519 = vcvt.s32.f32 %v517
  %v520 = vmin.f32 %v512, 1.0
  %v521 = vmin.f32 %v513, 1.0
  %v522 = vmul.f32 %v520, 0.5
  %v523 = vmul.f32 %v521, 0.5
  %v524 = vsub.f32 %v512, %v522
  %v525 = vsub.f32 %v513, %v523
  %v526 = vmul.f32 %v520, %v524
  %v527 = vmul.f32 %v521, %v525
  %v528 = vmul.f32 %v526, %v518
  %v529 = vmul.f32 %v527, %v519
  %v530 = vadd.f32 %v497, %v528
  %v531 = vadd.f32 %v498, %v529
  %v532 = vadd.f32 %v499, %v518
  %v533 = vadd.f32 %v500, %v519
  %v534 = vadd.f32 %v501, %v505
  %v535 = vadd.f32 %v502, %v506
  %s536 = sadd.s32 0, 208
  %s537 = scalar_lea.vmem %s80, %s536
  %v538 = vld [vmem:[%s537] sm:$0xff]
  %v539 = vld [vmem:[%s537 + $0x8] sm:$0xff]
  %s540 = scalar_lea.vmem %s88, %s536
  %v541 = vld [vmem:[%s540] sm:$0xff]
  %v542 = vld [vmem:[%s540 + $0x8] sm:$0xff]
  %v543 = vsub.f32 %v541, %v538
  %v544 = vsub.f32 %v542, %v539
  %v545 = vand.u32 2147483647, %v543
  %v546 = vand.u32 2147483647, %v544
  %vm547 = vcmp.lt.f32.partialorder %v538, 192.0
  %vm548 = vcmp.lt.f32.partialorder %v539, 192.0
  %v549 = vsel %vm547, 1, 0
  %v550 = vsel %vm548, 1, 0
  %v551 = vcvt.s32.f32 %v549
  %v552 = vcvt.s32.f32 %v550
  %v553 = vmin.f32 %v545, 1.0
  %v554 = vmin.f32 %v546, 1.0
  %v555 = vmul.f32 %v553, 0.5
  %v556 = vmul.f32 %v554, 0.5
  %v557 = vsub.f32 %v545, %v555
  %v558 = vsub.f32 %v546, %v556
  %v559 = vmul.f32 %v553, %v557
  %v560 = vmul.f32 %v554, %v558
  %v561 = vmul.f32 %v559, %v551
  %v562 = vmul.f32 %v560, %v552
  %v563 = vadd.f32 %v530, %v561
  %v564 = vadd.f32 %v531, %v562
  %v565 = vadd.f32 %v532, %v551
  %v566 = vadd.f32 %v533, %v552
  %v567 = vadd.f32 %v534, %v538
  %v568 = vadd.f32 %v535, %v539
  %v569 = vmul.f32 %v567, 0.25
  %v570 = vmul.f32 %v568, 0.25
  %s571 = scalar_lea.vmem %s96, %s278
  %v572 = vld [vmem:[%s571] sm:$0xff]
  %v573 = vld [vmem:[%s571 + $0x8] sm:$0xff]
  %v574 = vsub.f32 %v572, %v569
  %v575 = vsub.f32 %v573, %v570
  %v576 = vand.u32 2147483647, %v574
  %v577 = vand.u32 2147483647, %v575
  %vm578 = vcmp.lt.f32.partialorder %v569, 192.0
  %vm579 = vcmp.lt.f32.partialorder %v570, 192.0
  %v580 = vsel %vm578, 1, 0
  %v581 = vsel %vm579, 1, 0
  %v582 = vcvt.s32.f32 %v580
  %v583 = vcvt.s32.f32 %v581
  %v584 = vmin.f32 %v576, 1.0
  %v585 = vmin.f32 %v577, 1.0
  %v586 = vmul.f32 %v584, 0.5
  %v587 = vmul.f32 %v585, 0.5
  %v588 = vsub.f32 %v576, %v586
  %v589 = vsub.f32 %v577, %v587
  %v590 = vmul.f32 %v584, %v588
  %v591 = vmul.f32 %v585, %v589
  %v592 = vmul.f32 %v590, %v582
  %v593 = vmul.f32 %v591, %v583
  %v594 = vadd.f32 %v433, %v592
  %v595 = vadd.f32 %v434, %v593
  %v596 = vadd.f32 %v435, %v582
  %v597 = vadd.f32 %v436, %v583
  %v598 = vadd.f32 %v437, %v567
  %v599 = vadd.f32 %v438, %v568
  %s600 = sadd.s32 0, 160
  %s601 = scalar_lea.vmem %s80, %s600
  %v602 = vld [vmem:[%s601] sm:$0xff]
  %v603 = vld [vmem:[%s601 + $0x8] sm:$0xff]
  %s604 = scalar_lea.vmem %s88, %s600
  %v605 = vld [vmem:[%s604] sm:$0xff]
  %v606 = vld [vmem:[%s604 + $0x8] sm:$0xff]
  %v607 = vsub.f32 %v605, %v602
  %v608 = vsub.f32 %v606, %v603
  %v609 = vand.u32 2147483647, %v607
  %v610 = vand.u32 2147483647, %v608
  %vm611 = vcmp.lt.f32.partialorder %v602, 192.0
  %vm612 = vcmp.lt.f32.partialorder %v603, 192.0
  %v613 = vsel %vm611, 1, 0
  %v614 = vsel %vm612, 1, 0
  %v615 = vcvt.s32.f32 %v613
  %v616 = vcvt.s32.f32 %v614
  %v617 = vmin.f32 %v609, 1.0
  %v618 = vmin.f32 %v610, 1.0
  %v619 = vmul.f32 %v617, 0.5
  %v620 = vmul.f32 %v618, 0.5
  %v621 = vsub.f32 %v609, %v619
  %v622 = vsub.f32 %v610, %v620
  %v623 = vmul.f32 %v617, %v621
  %v624 = vmul.f32 %v618, %v622
  %v625 = vmul.f32 %v623, %v615
  %v626 = vmul.f32 %v624, %v616
  %v627 = vadd.f32 %v563, %v625
  %v628 = vadd.f32 %v564, %v626
  %v629 = vadd.f32 %v565, %v615
  %v630 = vadd.f32 %v566, %v616
  %s631 = sadd.s32 0, 176
  %s632 = scalar_lea.vmem %s80, %s631
  %v633 = vld [vmem:[%s632] sm:$0xff]
  %v634 = vld [vmem:[%s632 + $0x8] sm:$0xff]
  %s635 = scalar_lea.vmem %s88, %s631
  %v636 = vld [vmem:[%s635] sm:$0xff]
  %v637 = vld [vmem:[%s635 + $0x8] sm:$0xff]
  %v638 = vsub.f32 %v636, %v633
  %v639 = vsub.f32 %v637, %v634
  %v640 = vand.u32 2147483647, %v638
  %v641 = vand.u32 2147483647, %v639
  %vm642 = vcmp.lt.f32.partialorder %v633, 192.0
  %vm643 = vcmp.lt.f32.partialorder %v634, 192.0
  %v644 = vsel %vm642, 1, 0
  %v645 = vsel %vm643, 1, 0
  %v646 = vcvt.s32.f32 %v644
  %v647 = vcvt.s32.f32 %v645
  %v648 = vmin.f32 %v640, 1.0
  %v649 = vmin.f32 %v641, 1.0
  %v650 = vmul.f32 %v648, 0.5
  %v651 = vmul.f32 %v649, 0.5
  %v652 = vsub.f32 %v640, %v650
  %v653 = vsub.f32 %v641, %v651
  %v654 = vmul.f32 %v648, %v652
  %v655 = vmul.f32 %v649, %v653
  %v656 = vmul.f32 %v654, %v646
  %v657 = vmul.f32 %v655, %v647
  %v658 = vadd.f32 %v627, %v656
  %v659 = vadd.f32 %v628, %v657
  %v660 = vadd.f32 %v629, %v646
  %v661 = vadd.f32 %v630, %v647
  %v662 = vadd.f32 %v602, %v633
  %v663 = vadd.f32 %v603, %v634
  %s664 = sadd.s32 0, 224
  %s665 = scalar_lea.vmem %s80, %s664
  %v666 = vld [vmem:[%s665] sm:$0xff]
  %v667 = vld [vmem:[%s665 + $0x8] sm:$0xff]
  %s668 = scalar_lea.vmem %s88, %s664
  %v669 = vld [vmem:[%s668] sm:$0xff]
  %v670 = vld [vmem:[%s668 + $0x8] sm:$0xff]
  %v671 = vsub.f32 %v669, %v666
  %v672 = vsub.f32 %v670, %v667
  %v673 = vand.u32 2147483647, %v671
  %v674 = vand.u32 2147483647, %v672
  %vm675 = vcmp.lt.f32.partialorder %v666, 192.0
  %vm676 = vcmp.lt.f32.partialorder %v667, 192.0
  %v677 = vsel %vm675, 1, 0
  %v678 = vsel %vm676, 1, 0
  %v679 = vcvt.s32.f32 %v677
  %v680 = vcvt.s32.f32 %v678
  %v681 = vmin.f32 %v673, 1.0
  %v682 = vmin.f32 %v674, 1.0
  %v683 = vmul.f32 %v681, 0.5
  %v684 = vmul.f32 %v682, 0.5
  %v685 = vsub.f32 %v673, %v683
  %v686 = vsub.f32 %v674, %v684
  %v687 = vmul.f32 %v681, %v685
  %v688 = vmul.f32 %v682, %v686
  %v689 = vmul.f32 %v687, %v679
  %v690 = vmul.f32 %v688, %v680
  %v691 = vadd.f32 %v658, %v689
  %v692 = vadd.f32 %v659, %v690
  %v693 = vadd.f32 %v660, %v679
  %v694 = vadd.f32 %v661, %v680
  %v695 = vadd.f32 %v662, %v666
  %v696 = vadd.f32 %v663, %v667
  %s697 = sadd.s32 0, 240
  %s698 = scalar_lea.vmem %s80, %s697
  %v699 = vld [vmem:[%s698] sm:$0xff]
  %v700 = vld [vmem:[%s698 + $0x8] sm:$0xff]
  %s701 = scalar_lea.vmem %s88, %s697
  %v702 = vld [vmem:[%s701] sm:$0xff]
  %v703 = vld [vmem:[%s701 + $0x8] sm:$0xff]
  %v704 = vsub.f32 %v702, %v699
  %v705 = vsub.f32 %v703, %v700
  %v706 = vand.u32 2147483647, %v704
  %v707 = vand.u32 2147483647, %v705
  %vm708 = vcmp.lt.f32.partialorder %v699, 192.0
  %vm709 = vcmp.lt.f32.partialorder %v700, 192.0
  %v710 = vsel %vm708, 1, 0
  %v711 = vsel %vm709, 1, 0
  %v712 = vcvt.s32.f32 %v710
  %v713 = vcvt.s32.f32 %v711
  %v714 = vmin.f32 %v706, 1.0
  %v715 = vmin.f32 %v707, 1.0
  %v716 = vmul.f32 %v714, 0.5
  %v717 = vmul.f32 %v715, 0.5
  %v718 = vsub.f32 %v706, %v716
  %v719 = vsub.f32 %v707, %v717
  %v720 = vmul.f32 %v714, %v718
  %v721 = vmul.f32 %v715, %v719
  %v722 = vmul.f32 %v720, %v712
  %v723 = vmul.f32 %v721, %v713
  %v724 = vadd.f32 %v691, %v722
  %v725 = vadd.f32 %v692, %v723
  %v726 = vadd.f32 %v693, %v712
  %v727 = vadd.f32 %v694, %v713
  %v728 = vadd.f32 %v695, %v699
  %v729 = vadd.f32 %v696, %v700
  %v730 = vmul.f32 %v728, 0.25
  %v731 = vmul.f32 %v729, 0.25
  %s732 = scalar_lea.vmem %s96, %s309
  %v733 = vld [vmem:[%s732] sm:$0xff]
  %v734 = vld [vmem:[%s732 + $0x8] sm:$0xff]
  %v735 = vsub.f32 %v733, %v730
  %v736 = vsub.f32 %v734, %v731
  %v737 = vand.u32 2147483647, %v735
  %v738 = vand.u32 2147483647, %v736
  %vm739 = vcmp.lt.f32.partialorder %v730, 192.0
  %vm740 = vcmp.lt.f32.partialorder %v731, 192.0
  %v741 = vsel %vm739, 1, 0
  %v742 = vsel %vm740, 1, 0
  %v743 = vcvt.s32.f32 %v741
  %v744 = vcvt.s32.f32 %v742
  %v745 = vmin.f32 %v737, 1.0
  %v746 = vmin.f32 %v738, 1.0
  %v747 = vmul.f32 %v745, 0.5
  %v748 = vmul.f32 %v746, 0.5
  %v749 = vsub.f32 %v737, %v747
  %v750 = vsub.f32 %v738, %v748
  %v751 = vmul.f32 %v745, %v749
  %v752 = vmul.f32 %v746, %v750
  %v753 = vmul.f32 %v751, %v743
  %v754 = vmul.f32 %v752, %v744
  %v755 = vadd.f32 %v594, %v753
  %v756 = vadd.f32 %v595, %v754
  %v757 = vadd.f32 %v596, %v743
  %v758 = vadd.f32 %v597, %v744
  %v759 = vadd.f32 %v598, %v728
  %v760 = vadd.f32 %v599, %v729
  %v761 = vmul.f32 %v759, 0.0625
  %v762 = vmul.f32 %v760, 0.0625
  %v763 = vld [vmem:[%s104] sm:$0xff]
  %v764 = vld [vmem:[%s104 + $0x8] sm:$0xff]
  %v765 = vsub.f32 %v763, %v761
  %v766 = vsub.f32 %v764, %v762
  %v767 = vand.u32 2147483647, %v765
  %v768 = vand.u32 2147483647, %v766
  %vm769 = vcmp.lt.f32.partialorder %v761, 192.0
  %vm770 = vcmp.lt.f32.partialorder %v762, 192.0
  %v771 = vsel %vm769, 1, 0
  %v772 = vsel %vm770, 1, 0
  %v773 = vcvt.s32.f32 %v771
  %v774 = vcvt.s32.f32 %v772
  %v775 = vmin.f32 %v767, 1.0
  %v776 = vmin.f32 %v768, 1.0
  %v777 = vmul.f32 %v775, 0.5
  %v778 = vmul.f32 %v776, 0.5
  %v779 = vsub.f32 %v767, %v777
  %v780 = vsub.f32 %v768, %v778
  %v781 = vmul.f32 %v775, %v779
  %v782 = vmul.f32 %v776, %v780
  %v783 = vmul.f32 %v781, %v773
  %v784 = vmul.f32 %v782, %v774
  %v785 = vadd.f32 %v783, 0.0
  %v786 = vadd.f32 %v784, 0.0
  %v787 = vadd.f32 %v773, 0.0
  %v788 = vadd.f32 %v774, 0.0
  %v789 = vld [vmem:[%s4] sm:$0xff]
  %v790 = vld [vmem:[%s4 + $0x8] sm:$0xff]
  %v791 = vadd.f32 %v789, %v724
  %v792 = vadd.f32 %v790, %v725
  %793 = vst [vmem:[%s4] sm:$0xff] %v791
  %794 = vst [vmem:[%s4 + $0x8] sm:$0xff] %v792
  %v795 = vld [vmem:[%s5] sm:$0xff]
  %v796 = vld [vmem:[%s5 + $0x8] sm:$0xff]
  %v797 = vadd.f32 %v795, %v726
  %v798 = vadd.f32 %v796, %v727
  %799 = vst [vmem:[%s5] sm:$0xff] %v797
  %800 = vst [vmem:[%s5 + $0x8] sm:$0xff] %v798
  %s801 = scalar_lea.vmem %s4, 16
  %v802 = vld [vmem:[%s801] sm:$0xff]
  %v803 = vld [vmem:[%s801 + $0x8] sm:$0xff]
  %v804 = vadd.f32 %v802, %v755
  %v805 = vadd.f32 %v803, %v756
  %806 = vst [vmem:[%s801] sm:$0xff] %v804
  %807 = vst [vmem:[%s801 + $0x8] sm:$0xff] %v805
  %s808 = scalar_lea.vmem %s5, 16
  %v809 = vld [vmem:[%s808] sm:$0xff]
  %v810 = vld [vmem:[%s808 + $0x8] sm:$0xff]
  %v811 = vadd.f32 %v809, %v757
  %v812 = vadd.f32 %v810, %v758
  %813 = vst [vmem:[%s808] sm:$0xff] %v811
  %814 = vst [vmem:[%s808 + $0x8] sm:$0xff] %v812
  %s815 = scalar_lea.vmem %s4, 32
  %v816 = vld [vmem:[%s815] sm:$0xff]
  %v817 = vld [vmem:[%s815 + $0x8] sm:$0xff]
  %v818 = vadd.f32 %v816, %v785
  %v819 = vadd.f32 %v817, %v786
  %820 = vst [vmem:[%s815] sm:$0xff] %v818
  %821 = vst [vmem:[%s815 + $0x8] sm:$0xff] %v819
  %s822 = scalar_lea.vmem %s5, 32
  %v823 = vld [vmem:[%s822] sm:$0xff]
  %v824 = vld [vmem:[%s822 + $0x8] sm:$0xff]
  %v825 = vadd.f32 %v823, %v787
  %v826 = vadd.f32 %v824, %v788
  %827 = vst [vmem:[%s822] sm:$0xff] %v825
  %828 = vst [vmem:[%s822 + $0x8] sm:$0xff] %v826
  // Predicated region
  $region22: #{_multiscale_loss_sums.1} parent=0 // pred_check
    _
  $region23: #{_multiscale_loss_sums.1} parent=0 // pred_check_branch
    %830 = sbr.rel (0) target = $region25
  $region24: #{_multiscale_loss_sums.1} parent=0 // pred_region
    _
  $region25: #{_multiscale_loss_sums.1} parent=0 // pred_fallthru
    _
  // Predicated region
  $region26: #{_multiscale_loss_sums.1} parent=0 // pred_check
    _
  $region27: #{_multiscale_loss_sums.1} parent=0 // pred_check_branch
    %832 = sbr.rel (0) target = $region29
  $region28: #{_multiscale_loss_sums.1} parent=0 // pred_region
    _
  $region29: #{_multiscale_loss_sums.1} parent=0 // pred_fallthru
    _
  // Predicated region
  $region30: #{_multiscale_loss_sums.1} parent=0 // pred_check
    _
  $region31: #{_multiscale_loss_sums.1} parent=0 // pred_check_branch
    %834 = sbr.rel (0) target = $region33
  $region32: #{_multiscale_loss_sums.1} parent=0 // pred_region
    _
  $region33: #{_multiscale_loss_sums.1} parent=0 // pred_fallthru
    _
  // Predicated region
  $region34: #{_multiscale_loss_sums.1} parent=0 // pred_check
    _
  $region35: #{_multiscale_loss_sums.1} parent=0 // pred_check_branch
    %836 = sbr.rel (0) target = $region37
  $region36: #{_multiscale_loss_sums.1} parent=0 // pred_region
    _
  $region37: #{_multiscale_loss_sums.1} parent=0 // pred_fallthru
    _

</llo_original>
